<compile_context>
chip_gen: v6e
topology: v6e:2x2x1
jax: 0.10.0
libtpu: 0.0.40
codegen_flags: <defaults>
</compile_context>

<pallas_src>
import functools

import jax
import jax.numpy as jnp
from jax.experimental import pallas as pl
from jax.experimental.pallas import tpu as pltpu


def _fused_cnn_kernel(x_ref, w1_ref, b1_ref, w2_ref, b2_ref, w3_ref, b3_ref,
                      m_ref, o_ref, col1, col64, *, H, W):
    """Fused 3-layer CNN for one batch element, channel-major / lane-dense.

    x_ref : (1, 8, H*W)     f32   input (3 real channels + 5 zero pad rows)
    w1_ref: (64, 9*8)       f32   layer-1 weights, [co, (dy*3+dx)*Cin + ci]
    w2_ref: (64, 9*64)      bf16
    w3_ref: (3,  9*64)      bf16
    b*_ref: (Cout, 1)       f32
    m_ref : (9, 1, H*W)     f32   border masks (1 inside, 0 at "same"-padding
                                  positions) for each 3x3 tap
    o_ref : (1, 3, H*W)     f32   output tile (reshapes directly to NCHW)
    col1  : (9*8,  H*W)     f32   im2col buffer, layer 1      (VMEM scratch)
    col64 : (9*64, H*W)     bf16  im2col buffer, layers 2 & 3 (VMEM scratch)
    """
    HW = H * W

    def conv3x3(h, col_ref, w_ref, b_ref):
        # h: (Cin, H*W) f32.  Each tap's shifted image is a static lane-roll of
        # the flat spatial axis by (dy-1)*W + (dx-1); out-of-image positions
        # are zeroed with the precomputed mask.  Column groups are
        # sublane-aligned slabs (Cin = 8 or 64).
        cin = h.shape[0]
        for dy in range(3):
            for dx in range(3):
                k = dy * 3 + dx
                off = (dy - 1) * W + (dx - 1)
                if off == 0:
                    slab = h                                   # centre tap
                else:
                    slab = pltpu.roll(h, shift=(-off) % HW, axis=1) * m_ref[k]
                col_ref[k * cin:(k + 1) * cin, :] = slab.astype(col_ref.dtype)
        # One large-K MXU matmul: (Cout, 9*Cin) @ (9*Cin, H*W), f32 accumulate.
        return jnp.dot(w_ref[...], col_ref[...],
                       preferred_element_type=jnp.float32) + b_ref[...]

    x = x_ref[0]                                               # (8, H*W) f32
    # ---- layer 1: Conv(3 -> 64) + ReLU (f32, tiny) ----
    h = jnp.maximum(conv3x3(x, col1, w1_ref, b1_ref), 0.0)     # (64, H*W) f32
    # ---- layer 2: Conv(64 -> 64) + ReLU (bf16 operands, f32 accum) ----
    h = jnp.maximum(conv3x3(h, col64, w2_ref, b2_ref), 0.0)    # (64, H*W) f32
    # ---- layer 3: Conv(64 -> 3) (bf16 operands, f32 accum) ----
    y = conv3x3(h, col64, w3_ref, b3_ref)                      # (3,  H*W) f32

    o_ref[0] = y.astype(o_ref.dtype)                           # lane-dense store


@jax.jit
def simple3to3cnn_forward(x_nchw, params):
    """Forward pass equivalent to Simple3to3CNN.forward. Input/output are NCHW."""
    (w1, b1), (w2, b2), (w3, b3) = params
    N, C1, H, W = x_nchw.shape
    C2 = w1.shape[-1]                 # 64
    C3 = w3.shape[-1]                 # 3
    HW = H * W
    C1P = 8                           # pad in-channels to a full f32 sublane group

    # NCHW -> (N, C, H*W): pure reshape (no transpose), then pad C 3->8 with
    # zeros so layer-1 im2col column groups are sublane-aligned.
    x_flat = x_nchw.reshape(N, C1, HW)
    x_flat = jnp.pad(x_flat, ((0, 0), (0, C1P - C1), (0, 0)))

    # Flatten 3x3 taps into the contraction dim and transpose so the matmul is
    # (Cout, 9*Cin) @ (9*Cin, H*W): row r = (dy*3+dx)*Cin + ci matches the
    # in-kernel im2col row ordering.
    w1p = jnp.pad(w1, ((0, 0), (0, 0), (0, C1P - C1), (0, 0)))      # zero rows
    w1f = w1p.reshape(9 * C1P, C2).T                                # (64, 72)  f32
    w2f = w2.reshape(9 * C2, C2).T.astype(jnp.bfloat16)             # (64, 576) bf16
    w3f = w3.reshape(9 * C2, C3).T.astype(jnp.bfloat16)             # (3,  576) bf16
    b1r = b1.reshape(C2, 1)
    b2r = b2.reshape(C2, 1)
    b3r = b3.reshape(C3, 1)

    # Precomputed "same"-padding border masks for the 9 taps (constant, folded
    # by XLA): mask[k, 0, y*W+x] = 1 iff (y+dy-1, x+dx-1) is inside the image.
    yy, xx = jnp.meshgrid(jnp.arange(H), jnp.arange(W), indexing="ij")
    yy = yy.reshape(1, HW)
    xx = xx.reshape(1, HW)
    mask_list = []
    for dy in range(3):
        for dx in range(3):
            r = yy + (dy - 1)
            c = xx + (dx - 1)
            mask_list.append(
                ((r >= 0) & (r < H) & (c >= 0) & (c < W)).astype(jnp.float32))
    masks = jnp.stack(mask_list, axis=0)                             # (9, 1, HW)

    kernel = functools.partial(_fused_cnn_kernel, H=H, W=W)

    y_flat = pl.pallas_call(
        kernel,
        out_shape=jax.ShapeDtypeStruct((N, C3, HW), jnp.float32),
        grid_spec=pltpu.PrefetchScalarGridSpec(
            num_scalar_prefetch=0,
            grid=(N,),
            in_specs=[
                pl.BlockSpec((1, C1P, HW), lambda n: (n, 0, 0)),     # x
                pl.BlockSpec((C2, 9 * C1P), lambda n: (0, 0)),       # w1
                pl.BlockSpec((C2, 1), lambda n: (0, 0)),             # b1
                pl.BlockSpec((C2, 9 * C2), lambda n: (0, 0)),        # w2
                pl.BlockSpec((C2, 1), lambda n: (0, 0)),             # b2
                pl.BlockSpec((C3, 9 * C2), lambda n: (0, 0)),        # w3
                pl.BlockSpec((C3, 1), lambda n: (0, 0)),             # b3
                pl.BlockSpec((9, 1, HW), lambda n: (0, 0, 0)),       # masks
            ],
            out_specs=pl.BlockSpec((1, C3, HW), lambda n: (n, 0, 0)),
            scratch_shapes=[
                pltpu.VMEM((9 * C1P, HW), jnp.float32),    # col1  (layer 1)
                pltpu.VMEM((9 * C2, HW), jnp.bfloat16),    # col64 (layers 2 & 3)
            ],
        ),
        compiler_params=pltpu.CompilerParams(
            dimension_semantics=("parallel",),
            vmem_limit_bytes=32 * 1024 * 1024,
        ),
    )(x_flat, w1f, b1r, w2f, b2r, w3f, b3r, masks)

    # (N, 3, H*W) is already channel-major: a reshape gives NCHW, no transpose.
    return y_flat.reshape(N, C3, H, W)


def init_params(key):
    """Deterministic parameter init matching PyTorch Conv2d shapes (HWIO)."""
    keys = jax.random.split(key, 6)

    def conv_params(kw, kb, cin, cout):
        fan_in = cin * 3 * 3
        bound = 1.0 / jnp.sqrt(fan_in)
        w = jax.random.uniform(kw, (3, 3, cin, cout), jnp.float32, -bound, bound)
        b = jax.random.uniform(kb, (cout,), jnp.float32, -bound, bound)
        return w, b

    w1, b1 = conv_params(keys[0], keys[1], 3, 64)
    w2, b2 = conv_params(keys[2], keys[3], 64, 64)
    w3, b3 = conv_params(keys[4], keys[5], 64, 3)
    return (w1, b1), (w2, b2), (w3, b3)


def _reference_forward(x_nchw, params):
    """Pure-JAX reference (lax conv) with the same bf16 operand rounding on
    layers 2/3 (f32 accumulation), so it matches the kernel's numerics."""
    (w1, b1), (w2, b2), (w3, b3) = params
    x = jnp.transpose(x_nchw, (0, 2, 3, 1))
    dn = ("NHWC", "HWIO", "NHWC")

    def conv(x, w, b):
        return jax.lax.conv_general_dilated(
            x, w, window_strides=(1, 1), padding="SAME", dimension_numbers=dn,
            preferred_element_type=jnp.float32) + b

    h1 = jnp.maximum(conv(x, w1, b1), 0.0)
    h2 = jnp.maximum(
        conv(h1.astype(jnp.bfloat16), w2.astype(jnp.bfloat16), b2), 0.0)
    y = conv(h2.astype(jnp.bfloat16), w3.astype(jnp.bfloat16), b3)
    return jnp.transpose(y, (0, 3, 1, 2))


if __name__ == "__main__":
    key = jax.random.PRNGKey(0)
    k_x, k_p = jax.random.split(key)

    # NCHW input consistent with the module: batch=2, channels=3, 16x16.
    x = jax.random.normal(k_x, (2, 3, 16, 16), jnp.float32)
    params = init_params(k_p)

    out = jax.block_until_ready(simple3to3cnn_forward(x, params))
    assert out.shape == (2, 3, 16, 16), out.shape

    ref = jax.block_until_ready(_reference_forward(x, params))
    # bf16 operands + f32 accumulation on layers 2/3; remaining differences are
    # accumulation order / layer-1 MXU precision mode -> a few e-3 at most.
    max_err = float(jnp.max(jnp.abs(out - ref)))
    assert jnp.allclose(out, ref, atol=1e-2, rtol=1e-2), max_err

    print("KERNEL_OK")
</pallas_src>

<mosaic_0001>
module attributes {stable_mosaic.version = 11 : i64} {
  func.func @_fused_cnn_kernel(%arg0: i32, %arg1: memref<1x8x256xf32, #tpu.memory_space<vmem>>, %arg2: memref<64x72xf32, #tpu.memory_space<vmem>>, %arg3: memref<64x1xf32, #tpu.memory_space<vmem>>, %arg4: memref<64x576xbf16, #tpu.memory_space<vmem>>, %arg5: memref<64x1xf32, #tpu.memory_space<vmem>>, %arg6: memref<3x576xbf16, #tpu.memory_space<vmem>>, %arg7: memref<3x1xf32, #tpu.memory_space<vmem>>, %arg8: memref<9x1x256xf32, #tpu.memory_space<vmem>>, %arg9: memref<1x3x256xf32, #tpu.memory_space<vmem>>, %arg10: memref<72x256xf32, #tpu.memory_space<vmem>>, %arg11: memref<576x256xbf16, #tpu.memory_space<vmem>>) attributes {dimension_semantics = [#tpu.dimension_semantics<parallel>], iteration_bounds = array<i64: 2>, scalar_prefetch = 0 : i64, scratch_operands = 2 : i64, tpu.core_type = #tpu.core_type<tc>, window_params = [{transform_indices = @transform_0, window_bounds = array<i64: 1, 8, 256>}, {pipeline_mode = #tpu.pipeline_mode<synchronous>, transform_indices = @transform_1, window_bounds = array<i64: 64, 72>}, {pipeline_mode = #tpu.pipeline_mode<synchronous>, transform_indices = @transform_2, window_bounds = array<i64: 64, 1>}, {pipeline_mode = #tpu.pipeline_mode<synchronous>, transform_indices = @transform_3, window_bounds = array<i64: 64, 576>}, {pipeline_mode = #tpu.pipeline_mode<synchronous>, transform_indices = @transform_4, window_bounds = array<i64: 64, 1>}, {pipeline_mode = #tpu.pipeline_mode<synchronous>, transform_indices = @transform_5, window_bounds = array<i64: 3, 576>}, {pipeline_mode = #tpu.pipeline_mode<synchronous>, transform_indices = @transform_6, window_bounds = array<i64: 3, 1>}, {pipeline_mode = #tpu.pipeline_mode<synchronous>, transform_indices = @transform_7, window_bounds = array<i64: 9, 1, 256>}, {transform_indices = @transform_8, window_bounds = array<i64: 1, 3, 256>}]} {
    %c0 = arith.constant 0 : index
    %c0_0 = arith.constant 0 : index
    %c0_1 = arith.constant 0 : index
    %0 = vector.load %arg1[%c0, %c0_0, %c0_1] : memref<1x8x256xf32, #tpu.memory_space<vmem>>, vector<1x8x256xf32>
    %1 = vector.shape_cast %0 : vector<1x8x256xf32> to vector<8x256xf32>
    %c17_i32 = arith.constant 17 : i32
    %2 = tpu.dynamic_rotate %1 by %c17_i32 dim 1 : vector<8x256xf32>, i32 -> vector<8x256xf32>
    %c0_2 = arith.constant 0 : index
    %c0_3 = arith.constant 0 : index
    %c0_4 = arith.constant 0 : index
    %3 = vector.load %arg8[%c0_2, %c0_3, %c0_4] : memref<9x1x256xf32, #tpu.memory_space<vmem>>, vector<1x1x256xf32>
    %4 = vector.shape_cast %3 : vector<1x1x256xf32> to vector<1x256xf32>
    %5 = vector.broadcast %4 : vector<1x256xf32> to vector<8x256xf32>
    %6 = arith.mulf %2, %5 : vector<8x256xf32>
    %c0_5 = arith.constant 0 : index
    %c0_6 = arith.constant 0 : index
    %7 = vector.load %arg10[%c0_5, %c0_6] : memref<72x256xf32, #tpu.memory_space<vmem>>, vector<8x256xf32>
    tpu.vector_store %arg10[%c0_5, %c0_6], %6 {strides = array<i32>} : memref<72x256xf32, #tpu.memory_space<vmem>>, vector<8x256xf32>,
    %c16_i32 = arith.constant 16 : i32
    %8 = tpu.dynamic_rotate %1 by %c16_i32 dim 1 : vector<8x256xf32>, i32 -> vector<8x256xf32>
    %c1 = arith.constant 1 : index
    %c0_7 = arith.constant 0 : index
    %c0_8 = arith.constant 0 : index
    %9 = vector.load %arg8[%c1, %c0_7, %c0_8] : memref<9x1x256xf32, #tpu.memory_space<vmem>>, vector<1x1x256xf32>
    %10 = vector.shape_cast %9 : vector<1x1x256xf32> to vector<1x256xf32>
    %11 = vector.broadcast %10 : vector<1x256xf32> to vector<8x256xf32>
    %12 = arith.mulf %8, %11 : vector<8x256xf32>
    %c8 = arith.constant 8 : index
    %c0_9 = arith.constant 0 : index
    %13 = vector.load %arg10[%c8, %c0_9] : memref<72x256xf32, #tpu.memory_space<vmem>>, vector<8x256xf32>
    tpu.vector_store %arg10[%c8, %c0_9], %12 {strides = array<i32>} : memref<72x256xf32, #tpu.memory_space<vmem>>, vector<8x256xf32>,
    %c15_i32 = arith.constant 15 : i32
    %14 = tpu.dynamic_rotate %1 by %c15_i32 dim 1 : vector<8x256xf32>, i32 -> vector<8x256xf32>
    %c2 = arith.constant 2 : index
    %c0_10 = arith.constant 0 : index
    %c0_11 = arith.constant 0 : index
    %15 = vector.load %arg8[%c2, %c0_10, %c0_11] : memref<9x1x256xf32, #tpu.memory_space<vmem>>, vector<1x1x256xf32>
    %16 = vector.shape_cast %15 : vector<1x1x256xf32> to vector<1x256xf32>
    %17 = vector.broadcast %16 : vector<1x256xf32> to vector<8x256xf32>
    %18 = arith.mulf %14, %17 : vector<8x256xf32>
    %c16 = arith.constant 16 : index
    %c0_12 = arith.constant 0 : index
    %19 = vector.load %arg10[%c16, %c0_12] : memref<72x256xf32, #tpu.memory_space<vmem>>, vector<8x256xf32>
    tpu.vector_store %arg10[%c16, %c0_12], %18 {strides = array<i32>} : memref<72x256xf32, #tpu.memory_space<vmem>>, vector<8x256xf32>,
    %c1_i32 = arith.constant 1 : i32
    %20 = tpu.dynamic_rotate %1 by %c1_i32 dim 1 : vector<8x256xf32>, i32 -> vector<8x256xf32>
    %c3 = arith.constant 3 : index
    %c0_13 = arith.constant 0 : index
    %c0_14 = arith.constant 0 : index
    %21 = vector.load %arg8[%c3, %c0_13, %c0_14] : memref<9x1x256xf32, #tpu.memory_space<vmem>>, vector<1x1x256xf32>
    %22 = vector.shape_cast %21 : vector<1x1x256xf32> to vector<1x256xf32>
    %23 = vector.broadcast %22 : vector<1x256xf32> to vector<8x256xf32>
    %24 = arith.mulf %20, %23 : vector<8x256xf32>
    %c24 = arith.constant 24 : index
    %c0_15 = arith.constant 0 : index
    %25 = vector.load %arg10[%c24, %c0_15] : memref<72x256xf32, #tpu.memory_space<vmem>>, vector<8x256xf32>
    tpu.vector_store %arg10[%c24, %c0_15], %24 {strides = array<i32>} : memref<72x256xf32, #tpu.memory_space<vmem>>, vector<8x256xf32>,
    %c32 = arith.constant 32 : index
    %c0_16 = arith.constant 0 : index
    %26 = vector.load %arg10[%c32, %c0_16] : memref<72x256xf32, #tpu.memory_space<vmem>>, vector<8x256xf32>
    tpu.vector_store %arg10[%c32, %c0_16], %1 {strides = array<i32>} : memref<72x256xf32, #tpu.memory_space<vmem>>, vector<8x256xf32>,
    %c255_i32 = arith.constant 255 : i32
    %27 = tpu.dynamic_rotate %1 by %c255_i32 dim 1 : vector<8x256xf32>, i32 -> vector<8x256xf32>
    %c5 = arith.constant 5 : index
    %c0_17 = arith.constant 0 : index
    %c0_18 = arith.constant 0 : index
    %28 = vector.load %arg8[%c5, %c0_17, %c0_18] : memref<9x1x256xf32, #tpu.memory_space<vmem>>, vector<1x1x256xf32>
    %29 = vector.shape_cast %28 : vector<1x1x256xf32> to vector<1x256xf32>
    %30 = vector.broadcast %29 : vector<1x256xf32> to vector<8x256xf32>
    %31 = arith.mulf %27, %30 : vector<8x256xf32>
    %c40 = arith.constant 40 : index
    %c0_19 = arith.constant 0 : index
    %32 = vector.load %arg10[%c40, %c0_19] : memref<72x256xf32, #tpu.memory_space<vmem>>, vector<8x256xf32>
    tpu.vector_store %arg10[%c40, %c0_19], %31 {strides = array<i32>} : memref<72x256xf32, #tpu.memory_space<vmem>>, vector<8x256xf32>,
    %c241_i32 = arith.constant 241 : i32
    %33 = tpu.dynamic_rotate %1 by %c241_i32 dim 1 : vector<8x256xf32>, i32 -> vector<8x256xf32>
    %c6 = arith.constant 6 : index
    %c0_20 = arith.constant 0 : index
    %c0_21 = arith.constant 0 : index
    %34 = vector.load %arg8[%c6, %c0_20, %c0_21] : memref<9x1x256xf32, #tpu.memory_space<vmem>>, vector<1x1x256xf32>
    %35 = vector.shape_cast %34 : vector<1x1x256xf32> to vector<1x256xf32>
    %36 = vector.broadcast %35 : vector<1x256xf32> to vector<8x256xf32>
    %37 = arith.mulf %33, %36 : vector<8x256xf32>
    %c48 = arith.constant 48 : index
    %c0_22 = arith.constant 0 : index
    %38 = vector.load %arg10[%c48, %c0_22] : memref<72x256xf32, #tpu.memory_space<vmem>>, vector<8x256xf32>
    tpu.vector_store %arg10[%c48, %c0_22], %37 {strides = array<i32>} : memref<72x256xf32, #tpu.memory_space<vmem>>, vector<8x256xf32>,
    %c240_i32 = arith.constant 240 : i32
    %39 = tpu.dynamic_rotate %1 by %c240_i32 dim 1 : vector<8x256xf32>, i32 -> vector<8x256xf32>
    %c7 = arith.constant 7 : index
    %c0_23 = arith.constant 0 : index
    %c0_24 = arith.constant 0 : index
    %40 = vector.load %arg8[%c7, %c0_23, %c0_24] : memref<9x1x256xf32, #tpu.memory_space<vmem>>, vector<1x1x256xf32>
    %41 = vector.shape_cast %40 : vector<1x1x256xf32> to vector<1x256xf32>
    %42 = vector.broadcast %41 : vector<1x256xf32> to vector<8x256xf32>
    %43 = arith.mulf %39, %42 : vector<8x256xf32>
    %c56 = arith.constant 56 : index
    %c0_25 = arith.constant 0 : index
    %44 = vector.load %arg10[%c56, %c0_25] : memref<72x256xf32, #tpu.memory_space<vmem>>, vector<8x256xf32>
    tpu.vector_store %arg10[%c56, %c0_25], %43 {strides = array<i32>} : memref<72x256xf32, #tpu.memory_space<vmem>>, vector<8x256xf32>,
    %c239_i32 = arith.constant 239 : i32
    %45 = tpu.dynamic_rotate %1 by %c239_i32 dim 1 : vector<8x256xf32>, i32 -> vector<8x256xf32>
    %c8_26 = arith.constant 8 : index
    %c0_27 = arith.constant 0 : index
    %c0_28 = arith.constant 0 : index
    %46 = vector.load %arg8[%c8_26, %c0_27, %c0_28] : memref<9x1x256xf32, #tpu.memory_space<vmem>>, vector<1x1x256xf32>
    %47 = vector.shape_cast %46 : vector<1x1x256xf32> to vector<1x256xf32>
    %48 = vector.broadcast %47 : vector<1x256xf32> to vector<8x256xf32>
    %49 = arith.mulf %45, %48 : vector<8x256xf32>
    %c64 = arith.constant 64 : index
    %c0_29 = arith.constant 0 : index
    %50 = vector.load %arg10[%c64, %c0_29] : memref<72x256xf32, #tpu.memory_space<vmem>>, vector<8x256xf32>
    tpu.vector_store %arg10[%c64, %c0_29], %49 {strides = array<i32>} : memref<72x256xf32, #tpu.memory_space<vmem>>, vector<8x256xf32>,
    %c0_30 = arith.constant 0 : index
    %c0_31 = arith.constant 0 : index
    %51 = vector.load %arg2[%c0_30, %c0_31] : memref<64x72xf32, #tpu.memory_space<vmem>>, vector<64x72xf32>
    %c0_32 = arith.constant 0 : index
    %c0_33 = arith.constant 0 : index
    %52 = vector.load %arg10[%c0_32, %c0_33] : memref<72x256xf32, #tpu.memory_space<vmem>>, vector<72x256xf32>
    %cst = arith.constant dense<0.000000e+00> : vector<64x256xf32>
    %53 = tpu.matmul %51, %52, %cst {dimension_numbers = #tpu.dot_dimension_numbers<[1], [0], [0], [1], [0, 0, 1, 1], [], []>} : vector<64x72xf32>, vector<72x256xf32>, vector<64x256xf32> -> vector<64x256xf32>
    %c0_34 = arith.constant 0 : index
    %c0_35 = arith.constant 0 : index
    %54 = vector.load %arg3[%c0_34, %c0_35] : memref<64x1xf32, #tpu.memory_space<vmem>>, vector<64x1xf32>
    %55 = vector.broadcast %54 : vector<64x1xf32> to vector<64x256xf32>
    %56 = arith.addf %53, %55 : vector<64x256xf32>
    %cst_36 = arith.constant 0.000000e+00 : f32
    %57 = vector.broadcast %cst_36 : f32 to vector<64x256xf32>
    %58 = arith.maximumf %56, %57 : vector<64x256xf32>
    %c17_i32_37 = arith.constant 17 : i32
    %59 = tpu.dynamic_rotate %58 by %c17_i32_37 dim 1 : vector<64x256xf32>, i32 -> vector<64x256xf32>
    %c0_38 = arith.constant 0 : index
    %c0_39 = arith.constant 0 : index
    %c0_40 = arith.constant 0 : index
    %60 = vector.load %arg8[%c0_38, %c0_39, %c0_40] : memref<9x1x256xf32, #tpu.memory_space<vmem>>, vector<1x1x256xf32>
    %61 = vector.shape_cast %60 : vector<1x1x256xf32> to vector<1x256xf32>
    %62 = vector.broadcast %61 : vector<1x256xf32> to vector<64x256xf32>
    %63 = arith.mulf %59, %62 : vector<64x256xf32>
    %64 = arith.truncf %63 : vector<64x256xf32> to vector<64x256xbf16>
    %c0_41 = arith.constant 0 : index
    %c0_42 = arith.constant 0 : index
    %65 = vector.load %arg11[%c0_41, %c0_42] : memref<576x256xbf16, #tpu.memory_space<vmem>>, vector<64x256xbf16>
    tpu.vector_store %arg11[%c0_41, %c0_42], %64 {strides = array<i32>} : memref<576x256xbf16, #tpu.memory_space<vmem>>, vector<64x256xbf16>,
    %c16_i32_43 = arith.constant 16 : i32
    %66 = tpu.dynamic_rotate %58 by %c16_i32_43 dim 1 : vector<64x256xf32>, i32 -> vector<64x256xf32>
    %c1_44 = arith.constant 1 : index
    %c0_45 = arith.constant 0 : index
    %c0_46 = arith.constant 0 : index
    %67 = vector.load %arg8[%c1_44, %c0_45, %c0_46] : memref<9x1x256xf32, #tpu.memory_space<vmem>>, vector<1x1x256xf32>
    %68 = vector.shape_cast %67 : vector<1x1x256xf32> to vector<1x256xf32>
    %69 = vector.broadcast %68 : vector<1x256xf32> to vector<64x256xf32>
    %70 = arith.mulf %66, %69 : vector<64x256xf32>
    %71 = arith.truncf %70 : vector<64x256xf32> to vector<64x256xbf16>
    %c64_47 = arith.constant 64 : index
    %c0_48 = arith.constant 0 : index
    %72 = vector.load %arg11[%c64_47, %c0_48] : memref<576x256xbf16, #tpu.memory_space<vmem>>, vector<64x256xbf16>
    tpu.vector_store %arg11[%c64_47, %c0_48], %71 {strides = array<i32>} : memref<576x256xbf16, #tpu.memory_space<vmem>>, vector<64x256xbf16>,
    %c15_i32_49 = arith.constant 15 : i32
    %73 = tpu.dynamic_rotate %58 by %c15_i32_49 dim 1 : vector<64x256xf32>, i32 -> vector<64x256xf32>
    %c2_50 = arith.constant 2 : index
    %c0_51 = arith.constant 0 : index
    %c0_52 = arith.constant 0 : index
    %74 = vector.load %arg8[%c2_50, %c0_51, %c0_52] : memref<9x1x256xf32, #tpu.memory_space<vmem>>, vector<1x1x256xf32>
    %75 = vector.shape_cast %74 : vector<1x1x256xf32> to vector<1x256xf32>
    %76 = vector.broadcast %75 : vector<1x256xf32> to vector<64x256xf32>
    %77 = arith.mulf %73, %76 : vector<64x256xf32>
    %78 = arith.truncf %77 : vector<64x256xf32> to vector<64x256xbf16>
    %c128 = arith.constant 128 : index
    %c0_53 = arith.constant 0 : index
    %79 = vector.load %arg11[%c128, %c0_53] : memref<576x256xbf16, #tpu.memory_space<vmem>>, vector<64x256xbf16>
    tpu.vector_store %arg11[%c128, %c0_53], %78 {strides = array<i32>} : memref<576x256xbf16, #tpu.memory_space<vmem>>, vector<64x256xbf16>,
    %c1_i32_54 = arith.constant 1 : i32
    %80 = tpu.dynamic_rotate %58 by %c1_i32_54 dim 1 : vector<64x256xf32>, i32 -> vector<64x256xf32>
    %c3_55 = arith.constant 3 : index
    %c0_56 = arith.constant 0 : index
    %c0_57 = arith.constant 0 : index
    %81 = vector.load %arg8[%c3_55, %c0_56, %c0_57] : memref<9x1x256xf32, #tpu.memory_space<vmem>>, vector<1x1x256xf32>
    %82 = vector.shape_cast %81 : vector<1x1x256xf32> to vector<1x256xf32>
    %83 = vector.broadcast %82 : vector<1x256xf32> to vector<64x256xf32>
    %84 = arith.mulf %80, %83 : vector<64x256xf32>
    %85 = arith.truncf %84 : vector<64x256xf32> to vector<64x256xbf16>
    %c192 = arith.constant 192 : index
    %c0_58 = arith.constant 0 : index
    %86 = vector.load %arg11[%c192, %c0_58] : memref<576x256xbf16, #tpu.memory_space<vmem>>, vector<64x256xbf16>
    tpu.vector_store %arg11[%c192, %c0_58], %85 {strides = array<i32>} : memref<576x256xbf16, #tpu.memory_space<vmem>>, vector<64x256xbf16>,
    %87 = arith.truncf %58 : vector<64x256xf32> to vector<64x256xbf16>
    %c256 = arith.constant 256 : index
    %c0_59 = arith.constant 0 : index
    %88 = vector.load %arg11[%c256, %c0_59] : memref<576x256xbf16, #tpu.memory_space<vmem>>, vector<64x256xbf16>
    tpu.vector_store %arg11[%c256, %c0_59], %87 {strides = array<i32>} : memref<576x256xbf16, #tpu.memory_space<vmem>>, vector<64x256xbf16>,
    %c255_i32_60 = arith.constant 255 : i32
    %89 = tpu.dynamic_rotate %58 by %c255_i32_60 dim 1 : vector<64x256xf32>, i32 -> vector<64x256xf32>
    %c5_61 = arith.constant 5 : index
    %c0_62 = arith.constant 0 : index
    %c0_63 = arith.constant 0 : index
    %90 = vector.load %arg8[%c5_61, %c0_62, %c0_63] : memref<9x1x256xf32, #tpu.memory_space<vmem>>, vector<1x1x256xf32>
    %91 = vector.shape_cast %90 : vector<1x1x256xf32> to vector<1x256xf32>
    %92 = vector.broadcast %91 : vector<1x256xf32> to vector<64x256xf32>
    %93 = arith.mulf %89, %92 : vector<64x256xf32>
    %94 = arith.truncf %93 : vector<64x256xf32> to vector<64x256xbf16>
    %c320 = arith.constant 320 : index
    %c0_64 = arith.constant 0 : index
    %95 = vector.load %arg11[%c320, %c0_64] : memref<576x256xbf16, #tpu.memory_space<vmem>>, vector<64x256xbf16>
    tpu.vector_store %arg11[%c320, %c0_64], %94 {strides = array<i32>} : memref<576x256xbf16, #tpu.memory_space<vmem>>, vector<64x256xbf16>,
    %c241_i32_65 = arith.constant 241 : i32
    %96 = tpu.dynamic_rotate %58 by %c241_i32_65 dim 1 : vector<64x256xf32>, i32 -> vector<64x256xf32>
    %c6_66 = arith.constant 6 : index
    %c0_67 = arith.constant 0 : index
    %c0_68 = arith.constant 0 : index
    %97 = vector.load %arg8[%c6_66, %c0_67, %c0_68] : memref<9x1x256xf32, #tpu.memory_space<vmem>>, vector<1x1x256xf32>
    %98 = vector.shape_cast %97 : vector<1x1x256xf32> to vector<1x256xf32>
    %99 = vector.broadcast %98 : vector<1x256xf32> to vector<64x256xf32>
    %100 = arith.mulf %96, %99 : vector<64x256xf32>
    %101 = arith.truncf %100 : vector<64x256xf32> to vector<64x256xbf16>
    %c384 = arith.constant 384 : index
    %c0_69 = arith.constant 0 : index
    %102 = vector.load %arg11[%c384, %c0_69] : memref<576x256xbf16, #tpu.memory_space<vmem>>, vector<64x256xbf16>
    tpu.vector_store %arg11[%c384, %c0_69], %101 {strides = array<i32>} : memref<576x256xbf16, #tpu.memory_space<vmem>>, vector<64x256xbf16>,
    %c240_i32_70 = arith.constant 240 : i32
    %103 = tpu.dynamic_rotate %58 by %c240_i32_70 dim 1 : vector<64x256xf32>, i32 -> vector<64x256xf32>
    %c7_71 = arith.constant 7 : index
    %c0_72 = arith.constant 0 : index
    %c0_73 = arith.constant 0 : index
    %104 = vector.load %arg8[%c7_71, %c0_72, %c0_73] : memref<9x1x256xf32, #tpu.memory_space<vmem>>, vector<1x1x256xf32>
    %105 = vector.shape_cast %104 : vector<1x1x256xf32> to vector<1x256xf32>
    %106 = vector.broadcast %105 : vector<1x256xf32> to vector<64x256xf32>
    %107 = arith.mulf %103, %106 : vector<64x256xf32>
    %108 = arith.truncf %107 : vector<64x256xf32> to vector<64x256xbf16>
    %c448 = arith.constant 448 : index
    %c0_74 = arith.constant 0 : index
    %109 = vector.load %arg11[%c448, %c0_74] : memref<576x256xbf16, #tpu.memory_space<vmem>>, vector<64x256xbf16>
    tpu.vector_store %arg11[%c448, %c0_74], %108 {strides = array<i32>} : memref<576x256xbf16, #tpu.memory_space<vmem>>, vector<64x256xbf16>,
    %c239_i32_75 = arith.constant 239 : i32
    %110 = tpu.dynamic_rotate %58 by %c239_i32_75 dim 1 : vector<64x256xf32>, i32 -> vector<64x256xf32>
    %c8_76 = arith.constant 8 : index
    %c0_77 = arith.constant 0 : index
    %c0_78 = arith.constant 0 : index
    %111 = vector.load %arg8[%c8_76, %c0_77, %c0_78] : memref<9x1x256xf32, #tpu.memory_space<vmem>>, vector<1x1x256xf32>
    %112 = vector.shape_cast %111 : vector<1x1x256xf32> to vector<1x256xf32>
    %113 = vector.broadcast %112 : vector<1x256xf32> to vector<64x256xf32>
    %114 = arith.mulf %110, %113 : vector<64x256xf32>
    %115 = arith.truncf %114 : vector<64x256xf32> to vector<64x256xbf16>
    %c512 = arith.constant 512 : index
    %c0_79 = arith.constant 0 : index
    %116 = vector.load %arg11[%c512, %c0_79] : memref<576x256xbf16, #tpu.memory_space<vmem>>, vector<64x256xbf16>
    tpu.vector_store %arg11[%c512, %c0_79], %115 {strides = array<i32>} : memref<576x256xbf16, #tpu.memory_space<vmem>>, vector<64x256xbf16>,
    %c0_80 = arith.constant 0 : index
    %c0_81 = arith.constant 0 : index
    %117 = vector.load %arg4[%c0_80, %c0_81] : memref<64x576xbf16, #tpu.memory_space<vmem>>, vector<64x576xbf16>
    %c0_82 = arith.constant 0 : index
    %c0_83 = arith.constant 0 : index
    %118 = vector.load %arg11[%c0_82, %c0_83] : memref<576x256xbf16, #tpu.memory_space<vmem>>, vector<576x256xbf16>
    %cst_84 = arith.constant dense<0.000000e+00> : vector<64x256xf32>
    %119 = tpu.matmul %117, %118, %cst_84 {dimension_numbers = #tpu.dot_dimension_numbers<[1], [0], [0], [1], [0, 0, 1, 1], [], []>} : vector<64x576xbf16>, vector<576x256xbf16>, vector<64x256xf32> -> vector<64x256xf32>
    %c0_85 = arith.constant 0 : index
    %c0_86 = arith.constant 0 : index
    %120 = vector.load %arg5[%c0_85, %c0_86] : memref<64x1xf32, #tpu.memory_space<vmem>>, vector<64x1xf32>
    %121 = vector.broadcast %120 : vector<64x1xf32> to vector<64x256xf32>
    %122 = arith.addf %119, %121 : vector<64x256xf32>
    %cst_87 = arith.constant 0.000000e+00 : f32
    %123 = vector.broadcast %cst_87 : f32 to vector<64x256xf32>
    %124 = arith.maximumf %122, %123 : vector<64x256xf32>
    %c17_i32_88 = arith.constant 17 : i32
    %125 = tpu.dynamic_rotate %124 by %c17_i32_88 dim 1 : vector<64x256xf32>, i32 -> vector<64x256xf32>
    %c0_89 = arith.constant 0 : index
    %c0_90 = arith.constant 0 : index
    %c0_91 = arith.constant 0 : index
    %126 = vector.load %arg8[%c0_89, %c0_90, %c0_91] : memref<9x1x256xf32, #tpu.memory_space<vmem>>, vector<1x1x256xf32>
    %127 = vector.shape_cast %126 : vector<1x1x256xf32> to vector<1x256xf32>
    %128 = vector.broadcast %127 : vector<1x256xf32> to vector<64x256xf32>
    %129 = arith.mulf %125, %128 : vector<64x256xf32>
    %130 = arith.truncf %129 : vector<64x256xf32> to vector<64x256xbf16>
    %c0_92 = arith.constant 0 : index
    %c0_93 = arith.constant 0 : index
    %131 = vector.load %arg11[%c0_92, %c0_93] : memref<576x256xbf16, #tpu.memory_space<vmem>>, vector<64x256xbf16>
    tpu.vector_store %arg11[%c0_92, %c0_93], %130 {strides = array<i32>} : memref<576x256xbf16, #tpu.memory_space<vmem>>, vector<64x256xbf16>,
    %c16_i32_94 = arith.constant 16 : i32
    %132 = tpu.dynamic_rotate %124 by %c16_i32_94 dim 1 : vector<64x256xf32>, i32 -> vector<64x256xf32>
    %c1_95 = arith.constant 1 : index
    %c0_96 = arith.constant 0 : index
    %c0_97 = arith.constant 0 : index
    %133 = vector.load %arg8[%c1_95, %c0_96, %c0_97] : memref<9x1x256xf32, #tpu.memory_space<vmem>>, vector<1x1x256xf32>
    %134 = vector.shape_cast %133 : vector<1x1x256xf32> to vector<1x256xf32>
    %135 = vector.broadcast %134 : vector<1x256xf32> to vector<64x256xf32>
    %136 = arith.mulf %132, %135 : vector<64x256xf32>
    %137 = arith.truncf %136 : vector<64x256xf32> to vector<64x256xbf16>
    %c64_98 = arith.constant 64 : index
    %c0_99 = arith.constant 0 : index
    %138 = vector.load %arg11[%c64_98, %c0_99] : memref<576x256xbf16, #tpu.memory_space<vmem>>, vector<64x256xbf16>
    tpu.vector_store %arg11[%c64_98, %c0_99], %137 {strides = array<i32>} : memref<576x256xbf16, #tpu.memory_space<vmem>>, vector<64x256xbf16>,
    %c15_i32_100 = arith.constant 15 : i32
    %139 = tpu.dynamic_rotate %124 by %c15_i32_100 dim 1 : vector<64x256xf32>, i32 -> vector<64x256xf32>
    %c2_101 = arith.constant 2 : index
    %c0_102 = arith.constant 0 : index
    %c0_103 = arith.constant 0 : index
    %140 = vector.load %arg8[%c2_101, %c0_102, %c0_103] : memref<9x1x256xf32, #tpu.memory_space<vmem>>, vector<1x1x256xf32>
    %141 = vector.shape_cast %140 : vector<1x1x256xf32> to vector<1x256xf32>
    %142 = vector.broadcast %141 : vector<1x256xf32> to vector<64x256xf32>
    %143 = arith.mulf %139, %142 : vector<64x256xf32>
    %144 = arith.truncf %143 : vector<64x256xf32> to vector<64x256xbf16>
    %c128_104 = arith.constant 128 : index
    %c0_105 = arith.constant 0 : index
    %145 = vector.load %arg11[%c128_104, %c0_105] : memref<576x256xbf16, #tpu.memory_space<vmem>>, vector<64x256xbf16>
    tpu.vector_store %arg11[%c128_104, %c0_105], %144 {strides = array<i32>} : memref<576x256xbf16, #tpu.memory_space<vmem>>, vector<64x256xbf16>,
    %c1_i32_106 = arith.constant 1 : i32
    %146 = tpu.dynamic_rotate %124 by %c1_i32_106 dim 1 : vector<64x256xf32>, i32 -> vector<64x256xf32>
    %c3_107 = arith.constant 3 : index
    %c0_108 = arith.constant 0 : index
    %c0_109 = arith.constant 0 : index
    %147 = vector.load %arg8[%c3_107, %c0_108, %c0_109] : memref<9x1x256xf32, #tpu.memory_space<vmem>>, vector<1x1x256xf32>
    %148 = vector.shape_cast %147 : vector<1x1x256xf32> to vector<1x256xf32>
    %149 = vector.broadcast %148 : vector<1x256xf32> to vector<64x256xf32>
    %150 = arith.mulf %146, %149 : vector<64x256xf32>
    %151 = arith.truncf %150 : vector<64x256xf32> to vector<64x256xbf16>
    %c192_110 = arith.constant 192 : index
    %c0_111 = arith.constant 0 : index
    %152 = vector.load %arg11[%c192_110, %c0_111] : memref<576x256xbf16, #tpu.memory_space<vmem>>, vector<64x256xbf16>
    tpu.vector_store %arg11[%c192_110, %c0_111], %151 {strides = array<i32>} : memref<576x256xbf16, #tpu.memory_space<vmem>>, vector<64x256xbf16>,
    %153 = arith.truncf %124 : vector<64x256xf32> to vector<64x256xbf16>
    %c256_112 = arith.constant 256 : index
    %c0_113 = arith.constant 0 : index
    %154 = vector.load %arg11[%c256_112, %c0_113] : memref<576x256xbf16, #tpu.memory_space<vmem>>, vector<64x256xbf16>
    tpu.vector_store %arg11[%c256_112, %c0_113], %153 {strides = array<i32>} : memref<576x256xbf16, #tpu.memory_space<vmem>>, vector<64x256xbf16>,
    %c255_i32_114 = arith.constant 255 : i32
    %155 = tpu.dynamic_rotate %124 by %c255_i32_114 dim 1 : vector<64x256xf32>, i32 -> vector<64x256xf32>
    %c5_115 = arith.constant 5 : index
    %c0_116 = arith.constant 0 : index
    %c0_117 = arith.constant 0 : index
    %156 = vector.load %arg8[%c5_115, %c0_116, %c0_117] : memref<9x1x256xf32, #tpu.memory_space<vmem>>, vector<1x1x256xf32>
    %157 = vector.shape_cast %156 : vector<1x1x256xf32> to vector<1x256xf32>
    %158 = vector.broadcast %157 : vector<1x256xf32> to vector<64x256xf32>
    %159 = arith.mulf %155, %158 : vector<64x256xf32>
    %160 = arith.truncf %159 : vector<64x256xf32> to vector<64x256xbf16>
    %c320_118 = arith.constant 320 : index
    %c0_119 = arith.constant 0 : index
    %161 = vector.load %arg11[%c320_118, %c0_119] : memref<576x256xbf16, #tpu.memory_space<vmem>>, vector<64x256xbf16>
    tpu.vector_store %arg11[%c320_118, %c0_119], %160 {strides = array<i32>} : memref<576x256xbf16, #tpu.memory_space<vmem>>, vector<64x256xbf16>,
    %c241_i32_120 = arith.constant 241 : i32
    %162 = tpu.dynamic_rotate %124 by %c241_i32_120 dim 1 : vector<64x256xf32>, i32 -> vector<64x256xf32>
    %c6_121 = arith.constant 6 : index
    %c0_122 = arith.constant 0 : index
    %c0_123 = arith.constant 0 : index
    %163 = vector.load %arg8[%c6_121, %c0_122, %c0_123] : memref<9x1x256xf32, #tpu.memory_space<vmem>>, vector<1x1x256xf32>
    %164 = vector.shape_cast %163 : vector<1x1x256xf32> to vector<1x256xf32>
    %165 = vector.broadcast %164 : vector<1x256xf32> to vector<64x256xf32>
    %166 = arith.mulf %162, %165 : vector<64x256xf32>
    %167 = arith.truncf %166 : vector<64x256xf32> to vector<64x256xbf16>
    %c384_124 = arith.constant 384 : index
    %c0_125 = arith.constant 0 : index
    %168 = vector.load %arg11[%c384_124, %c0_125] : memref<576x256xbf16, #tpu.memory_space<vmem>>, vector<64x256xbf16>
    tpu.vector_store %arg11[%c384_124, %c0_125], %167 {strides = array<i32>} : memref<576x256xbf16, #tpu.memory_space<vmem>>, vector<64x256xbf16>,
    %c240_i32_126 = arith.constant 240 : i32
    %169 = tpu.dynamic_rotate %124 by %c240_i32_126 dim 1 : vector<64x256xf32>, i32 -> vector<64x256xf32>
    %c7_127 = arith.constant 7 : index
    %c0_128 = arith.constant 0 : index
    %c0_129 = arith.constant 0 : index
    %170 = vector.load %arg8[%c7_127, %c0_128, %c0_129] : memref<9x1x256xf32, #tpu.memory_space<vmem>>, vector<1x1x256xf32>
    %171 = vector.shape_cast %170 : vector<1x1x256xf32> to vector<1x256xf32>
    %172 = vector.broadcast %171 : vector<1x256xf32> to vector<64x256xf32>
    %173 = arith.mulf %169, %172 : vector<64x256xf32>
    %174 = arith.truncf %173 : vector<64x256xf32> to vector<64x256xbf16>
    %c448_130 = arith.constant 448 : index
    %c0_131 = arith.constant 0 : index
    %175 = vector.load %arg11[%c448_130, %c0_131] : memref<576x256xbf16, #tpu.memory_space<vmem>>, vector<64x256xbf16>
    tpu.vector_store %arg11[%c448_130, %c0_131], %174 {strides = array<i32>} : memref<576x256xbf16, #tpu.memory_space<vmem>>, vector<64x256xbf16>,
    %c239_i32_132 = arith.constant 239 : i32
    %176 = tpu.dynamic_rotate %124 by %c239_i32_132 dim 1 : vector<64x256xf32>, i32 -> vector<64x256xf32>
    %c8_133 = arith.constant 8 : index
    %c0_134 = arith.constant 0 : index
    %c0_135 = arith.constant 0 : index
    %177 = vector.load %arg8[%c8_133, %c0_134, %c0_135] : memref<9x1x256xf32, #tpu.memory_space<vmem>>, vector<1x1x256xf32>
    %178 = vector.shape_cast %177 : vector<1x1x256xf32> to vector<1x256xf32>
    %179 = vector.broadcast %178 : vector<1x256xf32> to vector<64x256xf32>
    %180 = arith.mulf %176, %179 : vector<64x256xf32>
    %181 = arith.truncf %180 : vector<64x256xf32> to vector<64x256xbf16>
    %c512_136 = arith.constant 512 : index
    %c0_137 = arith.constant 0 : index
    %182 = vector.load %arg11[%c512_136, %c0_137] : memref<576x256xbf16, #tpu.memory_space<vmem>>, vector<64x256xbf16>
    tpu.vector_store %arg11[%c512_136, %c0_137], %181 {strides = array<i32>} : memref<576x256xbf16, #tpu.memory_space<vmem>>, vector<64x256xbf16>,
    %c0_138 = arith.constant 0 : index
    %c0_139 = arith.constant 0 : index
    %183 = vector.load %arg6[%c0_138, %c0_139] : memref<3x576xbf16, #tpu.memory_space<vmem>>, vector<3x576xbf16>
    %c0_140 = arith.constant 0 : index
    %c0_141 = arith.constant 0 : index
    %184 = vector.load %arg11[%c0_140, %c0_141] : memref<576x256xbf16, #tpu.memory_space<vmem>>, vector<576x256xbf16>
    %cst_142 = arith.constant dense<0.000000e+00> : vector<3x256xf32>
    %185 = tpu.matmul %183, %184, %cst_142 {dimension_numbers = #tpu.dot_dimension_numbers<[1], [0], [0], [1], [0, 0, 1, 1], [], []>} : vector<3x576xbf16>, vector<576x256xbf16>, vector<3x256xf32> -> vector<3x256xf32>
    %c0_143 = arith.constant 0 : index
    %c0_144 = arith.constant 0 : index
    %186 = vector.load %arg7[%c0_143, %c0_144] : memref<3x1xf32, #tpu.memory_space<vmem>>, vector<3x1xf32>
    %187 = vector.broadcast %186 : vector<3x1xf32> to vector<3x256xf32>
    %188 = arith.addf %185, %187 : vector<3x256xf32>
    %c0_145 = arith.constant 0 : index
    %c0_146 = arith.constant 0 : index
    %c0_147 = arith.constant 0 : index
    %189 = vector.load %arg9[%c0_145, %c0_146, %c0_147] : memref<1x3x256xf32, #tpu.memory_space<vmem>>, vector<1x3x256xf32>
    %190 = vector.shape_cast %189 : vector<1x3x256xf32> to vector<3x256xf32>
    %191 = vector.shape_cast %188 : vector<3x256xf32> to vector<1x3x256xf32>
    tpu.vector_store %arg9[%c0_145, %c0_146, %c0_147], %191 {strides = array<i32>} : memref<1x3x256xf32, #tpu.memory_space<vmem>>, vector<1x3x256xf32>,
    return
  }
  func.func @transform_0(%arg0: i32) -> (i32, i32, i32) {
    %c0_i32 = arith.constant 0 : i32
    %c0_i32_0 = arith.constant 0 : i32
    %c0_i32_1 = arith.constant 0 : i32
    return %arg0, %c0_i32, %c0_i32_0 : i32, i32, i32
  }
  func.func @transform_1(%arg0: i32) -> (i32, i32) {
    %c0_i32 = arith.constant 0 : i32
    %c0_i32_0 = arith.constant 0 : i32
    %c0_i32_1 = arith.constant 0 : i32
    return %c0_i32, %c0_i32_0 : i32, i32
  }
  func.func @transform_2(%arg0: i32) -> (i32, i32) {
    %c0_i32 = arith.constant 0 : i32
    %c0_i32_0 = arith.constant 0 : i32
    %c0_i32_1 = arith.constant 0 : i32
    return %c0_i32, %c0_i32_0 : i32, i32
  }
  func.func @transform_3(%arg0: i32) -> (i32, i32) {
    %c0_i32 = arith.constant 0 : i32
    %c0_i32_0 = arith.constant 0 : i32
    %c0_i32_1 = arith.constant 0 : i32
    return %c0_i32, %c0_i32_0 : i32, i32
  }
  func.func @transform_4(%arg0: i32) -> (i32, i32) {
    %c0_i32 = arith.constant 0 : i32
    %c0_i32_0 = arith.constant 0 : i32
    %c0_i32_1 = arith.constant 0 : i32
    return %c0_i32, %c0_i32_0 : i32, i32
  }
  func.func @transform_5(%arg0: i32) -> (i32, i32) {
    %c0_i32 = arith.constant 0 : i32
    %c0_i32_0 = arith.constant 0 : i32
    %c0_i32_1 = arith.constant 0 : i32
    return %c0_i32, %c0_i32_0 : i32, i32
  }
  func.func @transform_6(%arg0: i32) -> (i32, i32) {
    %c0_i32 = arith.constant 0 : i32
    %c0_i32_0 = arith.constant 0 : i32
    %c0_i32_1 = arith.constant 0 : i32
    return %c0_i32, %c0_i32_0 : i32, i32
  }
  func.func @transform_7(%arg0: i32) -> (i32, i32, i32) {
    %c0_i32 = arith.constant 0 : i32
    %c0_i32_0 = arith.constant 0 : i32
    %c0_i32_1 = arith.constant 0 : i32
    %c0_i32_2 = arith.constant 0 : i32
    return %c0_i32, %c0_i32_0, %c0_i32_1 : i32, i32, i32
  }
  func.func @transform_8(%arg0: i32) -> (i32, i32, i32) {
    %c0_i32 = arith.constant 0 : i32
    %c0_i32_0 = arith.constant 0 : i32
    %c0_i32_1 = arith.constant 0 : i32
    return %arg0, %c0_i32, %c0_i32_0 : i32, i32, i32
  }
}

</mosaic_0001>

<llo_original>
// kernel: simple3to3cnn_forward.1
$region0: #{simple3to3cnn_forward.1}
  #allocation0 [shape = 'u32[]', space=smem, size = 0x4, offset = 0x4, fixed_abs, tag = 'smem constant byte address 0x4 - core index']
  #allocation1 [shape = 'u32[144,128]{1,0:T(1,128)}', space=vmem, size = 0x12000, scoped, tag = 'internal scratch']
  #allocation2 [shape = 'f32[72,256]{1,0:T(8,128)}', space=vmem, size = 0x12000, scoped, tag = 'scratch operand']
  #allocation3 [shape = 'bf16[576,256]{1,0:T(8,128)(2,1)}', space=vmem, size = 0x48000, scoped, tag = 'scratch operand']
  %s0 = inlined_call_operand.vmem [shape: f32[2,8,256], index: 0, kind: input, shape index: {}]
  %s1 = inlined_call_operand.vmem [shape: f32[64,72], index: 1, kind: input, shape index: {}]
  %s2 = inlined_call_operand.vmem [shape: f32[64,1], index: 2, kind: input, shape index: {}]
  %s3 = inlined_call_operand.vmem [shape: bf16[64,576], index: 3, kind: input, shape index: {}]
  %s4 = inlined_call_operand.vmem [shape: f32[64,1], index: 4, kind: input, shape index: {}]
  %s5 = inlined_call_operand.vmem [shape: bf16[3,576], index: 5, kind: input, shape index: {}]
  %s6 = inlined_call_operand.vmem [shape: f32[3,1], index: 6, kind: input, shape index: {}]
  %s7 = inlined_call_operand.vmem [shape: f32[9,1,256], index: 7, kind: input, shape index: {}]
  %s8 = inlined_call_operand.vmem [shape: f32[2,3,256], index: 8, kind: output, shape index: {}]
  %s9 = sld [smem:[#allocation0]]
  $region65: #{simple3to3cnn_forward.1} parent=0
    _
  %s11 = ssub.s32 1, %s9
  %s12 = scalar_select 0, %s11, %s9
  loop: start=0, step=1, limit=4
  $region2: #{simple3to3cnn_forward.1} parent=0 // loop_pre_header
    _
  $region3: #{simple3to3cnn_forward.1} parent=0 // loop_header
    %s14 = sphi 0, %s18
    %p15 = scmp.ge.s32.totalorder %s14, 4
    %s24 = sphi 0, %s26
    %s27 = sphi 0, %s24
    %s28 = sphi 0, %s27
    %s44 = sphi 0, %s28
    %s48 = sphi 0, %s48
    %s50 = sphi 0, %s48
    %s51 = sphi 0, %s50
    %s65 = sphi 0, %s51
    %s69 = sphi 0, %s69
    %s71 = sphi 0, %s69
    %s72 = sphi 0, %s71
    %s86 = sphi 0, %s72
    %s90 = sphi 0, %s90
    %s92 = sphi 0, %s90
    %s93 = sphi 0, %s92
    %s107 = sphi 0, %s93
    %s111 = sphi 0, %s111
    %s113 = sphi 0, %s111
    %s114 = sphi 0, %s113
    %s128 = sphi 0, %s114
    %s132 = sphi 0, %s132
    %s134 = sphi 0, %s132
    %s135 = sphi 0, %s134
    %s149 = sphi 0, %s135
    %s153 = sphi 0, %s153
    %s155 = sphi 0, %s153
    %s156 = sphi 0, %s155
    %s170 = sphi 0, %s156
    %s174 = sphi 0, %s174
    %s176 = sphi 0, %s174
    %s177 = sphi 0, %s176
    %s191 = sphi 0, %s177
    %s197 = sphi 0, %s199
    %s200 = sphi 0, %s197
    %s201 = sphi 0, %s200
    %s217 = sphi 0, %s201
  $region4: #{simple3to3cnn_forward.1} parent=0 // loop_header_branch
    %17 = sbr.rel (%p15) target = $region8
  $region5: #{simple3to3cnn_forward.1} parent=0 // loop_body
    %s19 = ssub.s32 %s14, 1
    %s20 = ssub.s32 %s14, 2
    %s21 = sadd.s32 %s14, 1
    %s22 = ssub.s32 %s14, %s21
    %p23 = scmp.eq.s32.totalorder %s22, 0
    %s25 = sadd.s32 %s24, 1
    %s26 = scalar_select %p23, %s24, %s25
    %p29 = pneg %p23
    %p30 = scmp.eq.s32.totalorder %s14, 1
    %p31 = por %p29, %p30
    %p32 = scmp.ne.s32.totalorder %s24, %s27
    %p33 = scmp.eq.s32.totalorder %s14, 0
    %p34 = por %p32, %p33
    %p35 = scmp.ne.s32.totalorder %s24, %s27
    %p36 = scmp.eq.s32.totalorder %s19, 1
    %p37 = por %p35, %p36
    %p38 = scmp.ne.s32.totalorder %s27, %s28
    %p39 = scmp.eq.s32.totalorder %s19, 0
    %p40 = por %p38, %p39
    %p41 = scmp.ne.s32.totalorder %s27, %s28
    %p42 = scmp.eq.s32.totalorder %s20, 1
    %p43 = por %p41, %p42
    %p45 = scmp.ne.s32.totalorder %s28, %s44
    %p46 = scmp.eq.s32.totalorder %s20, 0
    %p47 = por %p45, %p46
    %s49 = sadd.s32 %s48, 1
    %p52 = scmp.eq.s32.totalorder %s14, 1
    %p53 = scmp.ne.s32.totalorder %s48, %s50
    %p54 = scmp.eq.s32.totalorder %s14, 0
    %p55 = por %p53, %p54
    %p56 = scmp.ne.s32.totalorder %s48, %s50
    %p57 = scmp.eq.s32.totalorder %s19, 1
    %p58 = por %p56, %p57
    %p59 = scmp.ne.s32.totalorder %s50, %s51
    %p60 = scmp.eq.s32.totalorder %s19, 0
    %p61 = por %p59, %p60
    %p62 = scmp.ne.s32.totalorder %s50, %s51
    %p63 = scmp.eq.s32.totalorder %s20, 1
    %p64 = por %p62, %p63
    %p66 = scmp.ne.s32.totalorder %s51, %s65
    %p67 = scmp.eq.s32.totalorder %s20, 0
    %p68 = por %p66, %p67
    %s70 = sadd.s32 %s69, 1
    %p73 = scmp.eq.s32.totalorder %s14, 1
    %p74 = scmp.ne.s32.totalorder %s69, %s71
    %p75 = scmp.eq.s32.totalorder %s14, 0
    %p76 = por %p74, %p75
    %p77 = scmp.ne.s32.totalorder %s69, %s71
    %p78 = scmp.eq.s32.totalorder %s19, 1
    %p79 = por %p77, %p78
    %p80 = scmp.ne.s32.totalorder %s71, %s72
    %p81 = scmp.eq.s32.totalorder %s19, 0
    %p82 = por %p80, %p81
    %p83 = scmp.ne.s32.totalorder %s71, %s72
    %p84 = scmp.eq.s32.totalorder %s20, 1
    %p85 = por %p83, %p84
    %p87 = scmp.ne.s32.totalorder %s72, %s86
    %p88 = scmp.eq.s32.totalorder %s20, 0
    %p89 = por %p87, %p88
    %s91 = sadd.s32 %s90, 1
    %p94 = scmp.eq.s32.totalorder %s14, 1
    %p95 = scmp.ne.s32.totalorder %s90, %s92
    %p96 = scmp.eq.s32.totalorder %s14, 0
    %p97 = por %p95, %p96
    %p98 = scmp.ne.s32.totalorder %s90, %s92
    %p99 = scmp.eq.s32.totalorder %s19, 1
    %p100 = por %p98, %p99
    %p101 = scmp.ne.s32.totalorder %s92, %s93
    %p102 = scmp.eq.s32.totalorder %s19, 0
    %p103 = por %p101, %p102
    %p104 = scmp.ne.s32.totalorder %s92, %s93
    %p105 = scmp.eq.s32.totalorder %s20, 1
    %p106 = por %p104, %p105
    %p108 = scmp.ne.s32.totalorder %s93, %s107
    %p109 = scmp.eq.s32.totalorder %s20, 0
    %p110 = por %p108, %p109
    %s112 = sadd.s32 %s111, 1
    %p115 = scmp.eq.s32.totalorder %s14, 1
    %p116 = scmp.ne.s32.totalorder %s111, %s113
    %p117 = scmp.eq.s32.totalorder %s14, 0
    %p118 = por %p116, %p117
    %p119 = scmp.ne.s32.totalorder %s111, %s113
    %p120 = scmp.eq.s32.totalorder %s19, 1
    %p121 = por %p119, %p120
    %p122 = scmp.ne.s32.totalorder %s113, %s114
    %p123 = scmp.eq.s32.totalorder %s19, 0
    %p124 = por %p122, %p123
    %p125 = scmp.ne.s32.totalorder %s113, %s114
    %p126 = scmp.eq.s32.totalorder %s20, 1
    %p127 = por %p125, %p126
    %p129 = scmp.ne.s32.totalorder %s114, %s128
    %p130 = scmp.eq.s32.totalorder %s20, 0
    %p131 = por %p129, %p130
    %s133 = sadd.s32 %s132, 1
    %p136 = scmp.eq.s32.totalorder %s14, 1
    %p137 = scmp.ne.s32.totalorder %s132, %s134
    %p138 = scmp.eq.s32.totalorder %s14, 0
    %p139 = por %p137, %p138
    %p140 = scmp.ne.s32.totalorder %s132, %s134
    %p141 = scmp.eq.s32.totalorder %s19, 1
    %p142 = por %p140, %p141
    %p143 = scmp.ne.s32.totalorder %s134, %s135
    %p144 = scmp.eq.s32.totalorder %s19, 0
    %p145 = por %p143, %p144
    %p146 = scmp.ne.s32.totalorder %s134, %s135
    %p147 = scmp.eq.s32.totalorder %s20, 1
    %p148 = por %p146, %p147
    %p150 = scmp.ne.s32.totalorder %s135, %s149
    %p151 = scmp.eq.s32.totalorder %s20, 0
    %p152 = por %p150, %p151
    %s154 = sadd.s32 %s153, 1
    %p157 = scmp.eq.s32.totalorder %s14, 1
    %p158 = scmp.ne.s32.totalorder %s153, %s155
    %p159 = scmp.eq.s32.totalorder %s14, 0
    %p160 = por %p158, %p159
    %p161 = scmp.ne.s32.totalorder %s153, %s155
    %p162 = scmp.eq.s32.totalorder %s19, 1
    %p163 = por %p161, %p162
    %p164 = scmp.ne.s32.totalorder %s155, %s156
    %p165 = scmp.eq.s32.totalorder %s19, 0
    %p166 = por %p164, %p165
    %p167 = scmp.ne.s32.totalorder %s155, %s156
    %p168 = scmp.eq.s32.totalorder %s20, 1
    %p169 = por %p167, %p168
    %p171 = scmp.ne.s32.totalorder %s156, %s170
    %p172 = scmp.eq.s32.totalorder %s20, 0
    %p173 = por %p171, %p172
    %s175 = sadd.s32 %s174, 1
    %p178 = scmp.eq.s32.totalorder %s14, 1
    %p179 = scmp.ne.s32.totalorder %s174, %s176
    %p180 = scmp.eq.s32.totalorder %s14, 0
    %p181 = por %p179, %p180
    %p182 = scmp.ne.s32.totalorder %s174, %s176
    %p183 = scmp.eq.s32.totalorder %s19, 1
    %p184 = por %p182, %p183
    %p185 = scmp.ne.s32.totalorder %s176, %s177
    %p186 = scmp.eq.s32.totalorder %s19, 0
    %p187 = por %p185, %p186
    %p188 = scmp.ne.s32.totalorder %s176, %s177
    %p189 = scmp.eq.s32.totalorder %s20, 1
    %p190 = por %p188, %p189
    %p192 = scmp.ne.s32.totalorder %s177, %s191
    %p193 = scmp.eq.s32.totalorder %s20, 0
    %p194 = por %p192, %p193
    %s195 = ssub.s32 %s14, %s21
    %p196 = scmp.eq.s32.totalorder %s195, 0
    %s198 = sadd.s32 %s197, 1
    %s199 = scalar_select %p196, %s197, %s198
    %p202 = pneg %p196
    %p203 = scmp.eq.s32.totalorder %s14, 1
    %p204 = por %p202, %p203
    %p205 = scmp.ne.s32.totalorder %s197, %s200
    %p206 = scmp.eq.s32.totalorder %s14, 0
    %p207 = por %p205, %p206
    %p208 = scmp.ne.s32.totalorder %s197, %s200
    %p209 = scmp.eq.s32.totalorder %s19, 1
    %p210 = por %p208, %p209
    %p211 = scmp.ne.s32.totalorder %s200, %s201
    %p212 = scmp.eq.s32.totalorder %s19, 0
    %p213 = por %p211, %p212
    %p214 = scmp.ne.s32.totalorder %s200, %s201
    %p215 = scmp.eq.s32.totalorder %s20, 1
    %p216 = por %p214, %p215
    %p218 = scmp.ne.s32.totalorder %s201, %s217
    %p219 = scmp.eq.s32.totalorder %s20, 0
    %p220 = por %p218, %p219
    %p221 = scmp.le.s32.totalorder 1, %s14
    %p222 = scmp.lt.s32.totalorder %s14, 3
    %p223 = pnand %p221, %p222
    %p224 = pneg %p223
    // Predicated region
    $region9: #{simple3to3cnn_forward.1} parent=5 // pred_check
      _
    $region10: #{simple3to3cnn_forward.1} parent=5 // pred_check_branch
      %226 = sbr.rel (%p223) target = $region12
    $region11: #{simple3to3cnn_forward.1} parent=5 // pred_region
      %s227 = ssub.s32 %s14, 1
      // Predicated region
      $region13: #{simple3to3cnn_forward.1} parent=11 // pred_check
        %p228 = pneg %p61
      $region14: #{simple3to3cnn_forward.1} parent=11 // pred_check_branch
        %230 = sbr.rel (%p228) target = $region16
      $region15: #{simple3to3cnn_forward.1} parent=11 // pred_region
        _
      $region16: #{simple3to3cnn_forward.1} parent=11 // pred_fallthru
        _
      // Predicated region
      $region17: #{simple3to3cnn_forward.1} parent=11 // pred_check
        %p231 = pneg %p82
      $region18: #{simple3to3cnn_forward.1} parent=11 // pred_check_branch
        %233 = sbr.rel (%p231) target = $region20
      $region19: #{simple3to3cnn_forward.1} parent=11 // pred_region
        _
      $region20: #{simple3to3cnn_forward.1} parent=11 // pred_fallthru
        _
      // Predicated region
      $region21: #{simple3to3cnn_forward.1} parent=11 // pred_check
        %p234 = pneg %p103
      $region22: #{simple3to3cnn_forward.1} parent=11 // pred_check_branch
        %236 = sbr.rel (%p234) target = $region24
      $region23: #{simple3to3cnn_forward.1} parent=11 // pred_region
        _
      $region24: #{simple3to3cnn_forward.1} parent=11 // pred_fallthru
        _
      // Predicated region
      $region25: #{simple3to3cnn_forward.1} parent=11 // pred_check
        %p237 = pneg %p124
      $region26: #{simple3to3cnn_forward.1} parent=11 // pred_check_branch
        %239 = sbr.rel (%p237) target = $region28
      $region27: #{simple3to3cnn_forward.1} parent=11 // pred_region
        _
      $region28: #{simple3to3cnn_forward.1} parent=11 // pred_fallthru
        _
      // Predicated region
      $region29: #{simple3to3cnn_forward.1} parent=11 // pred_check
        %p240 = pneg %p145
      $region30: #{simple3to3cnn_forward.1} parent=11 // pred_check_branch
        %242 = sbr.rel (%p240) target = $region32
      $region31: #{simple3to3cnn_forward.1} parent=11 // pred_region
        _
      $region32: #{simple3to3cnn_forward.1} parent=11 // pred_fallthru
        _
      // Predicated region
      $region33: #{simple3to3cnn_forward.1} parent=11 // pred_check
        %p243 = pneg %p166
      $region34: #{simple3to3cnn_forward.1} parent=11 // pred_check_branch
        %245 = sbr.rel (%p243) target = $region36
      $region35: #{simple3to3cnn_forward.1} parent=11 // pred_region
        _
      $region36: #{simple3to3cnn_forward.1} parent=11 // pred_fallthru
        _
      // Predicated region
      $region37: #{simple3to3cnn_forward.1} parent=11 // pred_check
        %p246 = pneg %p187
      $region38: #{simple3to3cnn_forward.1} parent=11 // pred_check_branch
        %248 = sbr.rel (%p246) target = $region40
      $region39: #{simple3to3cnn_forward.1} parent=11 // pred_region
        _
      $region40: #{simple3to3cnn_forward.1} parent=11 // pred_fallthru
        _
    $region12: #{simple3to3cnn_forward.1} parent=5 // pred_fallthru
      _
    %p249 = scmp.lt.s32.totalorder %s14, 2
    // Predicated region
    $region41: #{simple3to3cnn_forward.1} parent=5 // pred_check
      %p250 = pneg %p249
    $region42: #{simple3to3cnn_forward.1} parent=5 // pred_check_branch
      %252 = sbr.rel (%p250) target = $region44
    $region43: #{simple3to3cnn_forward.1} parent=5 // pred_region
      // Predicated region
      $region45: #{simple3to3cnn_forward.1} parent=43 // pred_check
        %p253 = pneg %p34
      $region46: #{simple3to3cnn_forward.1} parent=43 // pred_check_branch
        %255 = sbr.rel (%p253) target = $region48
      $region47: #{simple3to3cnn_forward.1} parent=43 // pred_region
        %p256 = scmp.lt.s32.totalorder %s14, 1
        %s257 = scalar_select %p256, %s14, 1
        %s258 = smul.addr %s257, 2
        %s259 = smul.addr %s258, 8
        %s260 = scalar_lea.vmem %s0, %s259
      $region48: #{simple3to3cnn_forward.1} parent=43 // pred_fallthru
        _
    $region44: #{simple3to3cnn_forward.1} parent=5 // pred_fallthru
      _
    %p261 = scmp.le.s32.totalorder 1, %s14
    %p262 = scmp.lt.s32.totalorder %s14, 3
    %p263 = pnand %p261, %p262
    %p264 = pneg %p263
    // Predicated region
    $region49: #{simple3to3cnn_forward.1} parent=5 // pred_check
      _
    $region50: #{simple3to3cnn_forward.1} parent=5 // pred_check_branch
      %266 = sbr.rel (%p263) target = $region52
    $region51: #{simple3to3cnn_forward.1} parent=5 // pred_region
      %s267 = ssub.s32 %s14, 1
      %p268 = scmp.lt.s32.totalorder %s19, 1
      %s269 = scalar_select %p268, %s19, 1
      %s270 = smul.addr %s269, 2
      %s271 = smul.addr %s270, 8
      %s272 = scalar_lea.vmem %s0, %s271
      %p273 = pneg %p40
      %p274 = pneg %p37
      %p275 = pneg %p61
      %p276 = pneg %p58
      %p277 = pneg %p82
      %p278 = pneg %p79
      %p279 = pneg %p103
      %p280 = pneg %p100
      %p281 = pneg %p124
      %p282 = pneg %p121
      %p283 = pneg %p145
      %p284 = pneg %p142
      %p285 = pneg %p166
      %p286 = pneg %p163
      %p287 = pneg %p187
      %p288 = pneg %p184
      %p289 = pneg %p213
      %p290 = pneg %p210
      %p291 = scmp.lt.s32.totalorder %s19, 1
      %s292 = scalar_select %p291, %s19, 1
      %s293 = smul.addr %s292, 2
      %s294 = smul.addr %s293, 4
      %s295 = scalar_lea.vmem %s8, %s294
      %p296 = scmp.lt.s32.totalorder %s19, 1
      %s297 = scalar_select %p296, %s19, 1
      %s298 = smul.addr %s297, 2
      %s299 = smul.addr %s298, 8
      %s300 = scalar_lea.vmem %s0, %s299
      %p301 = scmp.lt.s32.totalorder %s19, 1
      %s302 = scalar_select %p301, %s19, 1
      %s303 = smul.addr %s302, 2
      %s304 = smul.addr %s303, 4
      %s305 = scalar_lea.vmem %s8, %s304
      %v307 = vld [vmem:[%s300] sm:$0xff]
      %v308 = vld [vmem:[%s300 + $0x8] sm:$0xff]
      %309 = vrot.lane.b32.xlu0 %v307, 17
      %v310 = vpop.permute.xlu0 %309
      %311 = vrot.lane.b32.xlu0 %v308, 17
      %v312 = vpop.permute.xlu0 %311
      %v313 = vlaneseq
      %v314 = vand.u32 %v313, 127
      %vm315 = vcmp.lt.s32.totalorder %v314, 17
      %v316 = vsel %vm315, %v310, %v312
      %v317 = vsel %vm315, %v312, %v310
      %v318 = vld [vmem:[%s7] sm:$0x3]
      %v320 = vlaneseq
      %v321 = vshrl.u32 %v320, 7
      %v322 = vsub.s32 0, %v321
      %v323 = vrot.slane %v318, %v322
      %v324 = vlaneseq
      %v325 = vshrl.u32 %v324, 7
      %v326 = vsub.s32 1, %v325
      %v327 = vrot.slane %v318, %v326
      %v330 = vmul.f32 %v317, %v323
      %v331 = vmul.f32 %v316, %v327
      %332 = vst [vmem:[#allocation2] sm:$0xff] %v330
      %333 = vst [vmem:[#allocation2 + $0x8] sm:$0xff] %v331
      %334 = vrot.lane.b32.xlu0 %v307, 16
      %v335 = vpop.permute.xlu0 %334
      %336 = vrot.lane.b32.xlu0 %v308, 16
      %v337 = vpop.permute.xlu0 %336
      %vm338 = vcmp.lt.s32.totalorder %v314, 16
      %v339 = vsel %vm338, %v335, %v337
      %v340 = vsel %vm338, %v337, %v335
      %s341 = scalar_lea.vmem %s7, 2
      %v342 = vld [vmem:[%s341] sm:$0x3]
      %v344 = vlaneseq
      %v345 = vshrl.u32 %v344, 7
      %v346 = vsub.s32 0, %v345
      %v347 = vrot.slane %v342, %v346
      %v348 = vlaneseq
      %v349 = vshrl.u32 %v348, 7
      %v350 = vsub.s32 1, %v349
      %v351 = vrot.slane %v342, %v350
      %v354 = vmul.f32 %v340, %v347
      %v355 = vmul.f32 %v339, %v351
      %356 = vst [vmem:[#allocation2 + $0x10] sm:$0xff] %v354
      %357 = vst [vmem:[#allocation2 + $0x18] sm:$0xff] %v355
      %358 = vrot.lane.b32.xlu0 %v307, 15
      %v359 = vpop.permute.xlu0 %358
      %360 = vrot.lane.b32.xlu0 %v308, 15
      %v361 = vpop.permute.xlu0 %360
      %vm362 = vcmp.lt.s32.totalorder %v314, 15
      %v363 = vsel %vm362, %v359, %v361
      %v364 = vsel %vm362, %v361, %v359
      %s365 = scalar_lea.vmem %s7, 4
      %v366 = vld [vmem:[%s365] sm:$0x3]
      %v368 = vlaneseq
      %v369 = vshrl.u32 %v368, 7
      %v370 = vsub.s32 0, %v369
      %v371 = vrot.slane %v366, %v370
      %v372 = vlaneseq
      %v373 = vshrl.u32 %v372, 7
      %v374 = vsub.s32 1, %v373
      %v375 = vrot.slane %v366, %v374
      %v378 = vmul.f32 %v364, %v371
      %v379 = vmul.f32 %v363, %v375
      %380 = vst [vmem:[#allocation2 + $0x20] sm:$0xff] %v378
      %381 = vst [vmem:[#allocation2 + $0x28] sm:$0xff] %v379
      %382 = vrot.lane.b32.xlu0 %v307, 1
      %v383 = vpop.permute.xlu0 %382
      %384 = vrot.lane.b32.xlu0 %v308, 1
      %v385 = vpop.permute.xlu0 %384
      %vm386 = vcmp.lt.s32.totalorder %v314, 1
      %v387 = vsel %vm386, %v383, %v385
      %v388 = vsel %vm386, %v385, %v383
      %s389 = scalar_lea.vmem %s7, 6
      %v390 = vld [vmem:[%s389] sm:$0x3]
      %v392 = vlaneseq
      %v393 = vshrl.u32 %v392, 7
      %v394 = vsub.s32 0, %v393
      %v395 = vrot.slane %v390, %v394
      %v396 = vlaneseq
      %v397 = vshrl.u32 %v396, 7
      %v398 = vsub.s32 1, %v397
      %v399 = vrot.slane %v390, %v398
      %v402 = vmul.f32 %v388, %v395
      %v403 = vmul.f32 %v387, %v399
      %404 = vst [vmem:[#allocation2 + $0x30] sm:$0xff] %v402
      %405 = vst [vmem:[#allocation2 + $0x38] sm:$0xff] %v403
      %406 = vst [vmem:[#allocation2 + $0x40] sm:$0xff] %v307
      %407 = vst [vmem:[#allocation2 + $0x48] sm:$0xff] %v308
      %408 = vrot.lane.b32.xlu0 %v307, 127
      %v409 = vpop.permute.xlu0 %408
      %410 = vrot.lane.b32.xlu0 %v308, 127
      %v411 = vpop.permute.xlu0 %410
      %vm412 = vcmp.lt.s32.totalorder %v314, 127
      %v413 = vsel %vm412, %v409, %v411
      %v414 = vsel %vm412, %v411, %v409
      %s415 = scalar_lea.vmem %s7, 10
      %v416 = vld [vmem:[%s415] sm:$0x3]
      %v418 = vlaneseq
      %v419 = vshrl.u32 %v418, 7
      %v420 = vsub.s32 0, %v419
      %v421 = vrot.slane %v416, %v420
      %v422 = vlaneseq
      %v423 = vshrl.u32 %v422, 7
      %v424 = vsub.s32 1, %v423
      %v425 = vrot.slane %v416, %v424
      %v428 = vmul.f32 %v413, %v421
      %v429 = vmul.f32 %v414, %v425
      %430 = vst [vmem:[#allocation2 + $0x50] sm:$0xff] %v428
      %431 = vst [vmem:[#allocation2 + $0x58] sm:$0xff] %v429
      %432 = vrot.lane.b32.xlu0 %v307, 113
      %v433 = vpop.permute.xlu0 %432
      %434 = vrot.lane.b32.xlu0 %v308, 113
      %v435 = vpop.permute.xlu0 %434
      %vm436 = vcmp.lt.s32.totalorder %v314, 113
      %v437 = vsel %vm436, %v433, %v435
      %v438 = vsel %vm436, %v435, %v433
      %s439 = scalar_lea.vmem %s7, 12
      %v440 = vld [vmem:[%s439] sm:$0x3]
      %v442 = vlaneseq
      %v443 = vshrl.u32 %v442, 7
      %v444 = vsub.s32 0, %v443
      %v445 = vrot.slane %v440, %v444
      %v446 = vlaneseq
      %v447 = vshrl.u32 %v446, 7
      %v448 = vsub.s32 1, %v447
      %v449 = vrot.slane %v440, %v448
      %v452 = vmul.f32 %v437, %v445
      %v453 = vmul.f32 %v438, %v449
      %454 = vst [vmem:[#allocation2 + $0x60] sm:$0xff] %v452
      %455 = vst [vmem:[#allocation2 + $0x68] sm:$0xff] %v453
      %456 = vrot.lane.b32.xlu0 %v307, 112
      %v457 = vpop.permute.xlu0 %456
      %458 = vrot.lane.b32.xlu0 %v308, 112
      %v459 = vpop.permute.xlu0 %458
      %vm460 = vcmp.lt.s32.totalorder %v314, 112
      %v461 = vsel %vm460, %v457, %v459
      %v462 = vsel %vm460, %v459, %v457
      %s463 = scalar_lea.vmem %s7, 14
      %v464 = vld [vmem:[%s463] sm:$0x3]
      %v466 = vlaneseq
      %v467 = vshrl.u32 %v466, 7
      %v468 = vsub.s32 0, %v467
      %v469 = vrot.slane %v464, %v468
      %v470 = vlaneseq
      %v471 = vshrl.u32 %v470, 7
      %v472 = vsub.s32 1, %v471
      %v473 = vrot.slane %v464, %v472
      %v476 = vmul.f32 %v461, %v469
      %v477 = vmul.f32 %v462, %v473
      %478 = vst [vmem:[#allocation2 + $0x70] sm:$0xff] %v476
      %479 = vst [vmem:[#allocation2 + $0x78] sm:$0xff] %v477
      %480 = vrot.lane.b32.xlu0 %v307, 111
      %v481 = vpop.permute.xlu0 %480
      %482 = vrot.lane.b32.xlu0 %v308, 111
      %v483 = vpop.permute.xlu0 %482
      %vm484 = vcmp.lt.s32.totalorder %v314, 111
      %v485 = vsel %vm484, %v481, %v483
      %v486 = vsel %vm484, %v483, %v481
      %s487 = scalar_lea.vmem %s7, 16
      %v488 = vld [vmem:[%s487] sm:$0x3]
      %v490 = vlaneseq
      %v491 = vshrl.u32 %v490, 7
      %v492 = vsub.s32 0, %v491
      %v493 = vrot.slane %v488, %v492
      %v494 = vlaneseq
      %v495 = vshrl.u32 %v494, 7
      %v496 = vsub.s32 1, %v495
      %v497 = vrot.slane %v488, %v496
      %v500 = vmul.f32 %v485, %v493
      %v501 = vmul.f32 %v486, %v497
      %502 = vst [vmem:[#allocation2 + $0x80] sm:$0xff] %v500
      %503 = vst [vmem:[#allocation2 + $0x88] sm:$0xff] %v501
      %v504 = vld [vmem:[%s1] sm:$0xff]
      %v505 = vld [vmem:[%s1 + $0x8] sm:$0xff]
      %v506 = vld [vmem:[%s1 + $0x10] sm:$0xff]
      %v507 = vld [vmem:[%s1 + $0x18] sm:$0xff]
      %v508 = vld [vmem:[%s1 + $0x20] sm:$0xff]
      %v509 = vld [vmem:[%s1 + $0x28] sm:$0xff]
      %v510 = vld [vmem:[%s1 + $0x30] sm:$0xff]
      %v511 = vld [vmem:[%s1 + $0x38] sm:$0xff]
      %v512 = vld [vmem:[#allocation2] sm:$0xff]
      %v513 = vld [vmem:[#allocation2 + $0x8] sm:$0xff]
      %v514 = vld [vmem:[#allocation2 + $0x10] sm:$0xff]
      %v515 = vld [vmem:[#allocation2 + $0x18] sm:$0xff]
      %v516 = vld [vmem:[#allocation2 + $0x20] sm:$0xff]
      %v517 = vld [vmem:[#allocation2 + $0x28] sm:$0xff]
      %v518 = vld [vmem:[#allocation2 + $0x30] sm:$0xff]
      %v519 = vld [vmem:[#allocation2 + $0x38] sm:$0xff]
      %v520 = vld [vmem:[#allocation2 + $0x40] sm:$0xff]
      %v521 = vld [vmem:[#allocation2 + $0x48] sm:$0xff]
      %v522 = vld [vmem:[#allocation2 + $0x50] sm:$0xff]
      %v523 = vld [vmem:[#allocation2 + $0x58] sm:$0xff]
      %v524 = vld [vmem:[#allocation2 + $0x60] sm:$0xff]
      %v525 = vld [vmem:[#allocation2 + $0x68] sm:$0xff]
      %v526 = vld [vmem:[#allocation2 + $0x70] sm:$0xff]
      %v527 = vld [vmem:[#allocation2 + $0x78] sm:$0xff]
      %v528 = vld [vmem:[#allocation2 + $0x80] sm:$0xff]
      %v529 = vld [vmem:[#allocation2 + $0x88] sm:$0xff]
      %v530 = vld [vmem:[%s2] sm:$0xff]
      %v531 = vld [vmem:[%s2 + $0x8] sm:$0xff]
      %v532 = vld [vmem:[%s2 + $0x10] sm:$0xff]
      %v533 = vld [vmem:[%s2 + $0x18] sm:$0xff]
      %v534 = vld [vmem:[%s2 + $0x20] sm:$0xff]
      %v535 = vld [vmem:[%s2 + $0x28] sm:$0xff]
      %v536 = vld [vmem:[%s2 + $0x30] sm:$0xff]
      %v537 = vld [vmem:[%s2 + $0x38] sm:$0xff]
      %539 = vset.pattern.permute.xlu0 0
      %540 = vperm.xlu0 %539, %v530
      %v541 = vpop.permute.xlu0 %540
      %544 = vset.pattern.permute.xlu0 0
      %545 = vperm.xlu0 %544, %v531
      %v546 = vpop.permute.xlu0 %545
      %549 = vset.pattern.permute.xlu0 0
      %550 = vperm.xlu0 %549, %v532
      %v551 = vpop.permute.xlu0 %550
      %554 = vset.pattern.permute.xlu0 0
      %555 = vperm.xlu0 %554, %v533
      %v556 = vpop.permute.xlu0 %555
      %559 = vset.pattern.permute.xlu0 0
      %560 = vperm.xlu0 %559, %v534
      %v561 = vpop.permute.xlu0 %560
      %564 = vset.pattern.permute.xlu0 0
      %565 = vperm.xlu0 %564, %v535
      %v566 = vpop.permute.xlu0 %565
      %569 = vset.pattern.permute.xlu0 0
      %570 = vperm.xlu0 %569, %v536
      %v571 = vpop.permute.xlu0 %570
      %574 = vset.pattern.permute.xlu0 0
      %575 = vperm.xlu0 %574, %v537
      %v576 = vpop.permute.xlu0 %575
      %vm578 = vcmask 588800
      %v580 = vsel %vm578, %v504, 0
      %v583 = vsel %vm578, %v505, 0
      %v586 = vsel %vm578, %v506, 0
      %v589 = vsel %vm578, %v507, 0
      %v592 = vsel %vm578, %v508, 0
      %v595 = vsel %vm578, %v509, 0
      %v598 = vsel %vm578, %v510, 0
      %v601 = vsel %vm578, %v511, 0
      %603 = vmatprep.subr.mxu0 0.0
      %604 = vmatpush1.msra.mxu0 0.0
      %605 = vmatprep.subr.mxu0 0.0
      %606 = vmatpush1.msra.mxu0 0.0
      %607 = vmatprep.subr.mxu0 0.0
      %608 = vmatpush1.msra.mxu0 0.0
      %609 = vmatprep.subr.mxu0 0.0
      %610 = vmatpush1.msra.mxu0 0.0
      %611 = vmatprep.subr.mxu0 0.0
      %612 = vmatpush1.msra.mxu0 0.0
      %613 = vmatprep.subr.mxu0 0.0
      %614 = vmatpush1.msra.mxu0 0.0
      %615 = vmatprep.subr.mxu0 0.0
      %616 = vmatpush1.msra.mxu0 0.0
      %617 = vmatprep.subr.mxu0 %v529
      %618 = vmatpush1.msra.mxu0 %v528
      %619 = vmatprep.subr.mxu0 %v527
      %620 = vmatpush1.msra.mxu0 %v526
      %621 = vmatprep.subr.mxu0 %v525
      %622 = vmatpush1.msra.mxu0 %v524
      %623 = vmatprep.subr.mxu0 %v523
      %624 = vmatpush1.msra.mxu0 %v522
      %625 = vmatprep.subr.mxu0 %v521
      %626 = vmatpush1.msra.mxu0 %v520
      %627 = vmatprep.subr.mxu0 %v519
      %628 = vmatpush1.msra.mxu0 %v518
      %629 = vmatprep.subr.mxu0 %v517
      %630 = vmatpush1.msra.mxu0 %v516
      %631 = vmatprep.subr.mxu0 %v515
      %632 = vmatpush1.msra.mxu0 %v514
      %633 = vmatprep.subr.mxu0 %v513
      %634 = vmatpush1.msra.mxu0 %v512
      %635 = vmatprep.subr.mxu0 0.0
      %636 = vmatpush2.msra.mxu0 0.0
      %637 = vmatprep.subr.mxu0 0.0
      %638 = vmatpush2.msra.mxu0 0.0
      %639 = vmatprep.subr.mxu0 0.0
      %640 = vmatpush2.msra.mxu0 0.0
      %641 = vmatprep.subr.mxu0 0.0
      %642 = vmatpush2.msra.mxu0 0.0
      %643 = vmatprep.subr.mxu0 0.0
      %644 = vmatpush2.msra.mxu0 0.0
      %645 = vmatprep.subr.mxu0 0.0
      %646 = vmatpush2.msra.mxu0 0.0
      %647 = vmatprep.subr.mxu0 0.0
      %648 = vmatpush2.msra.mxu0 0.0
      %649 = vmatprep.subr.mxu0 0.0
      %650 = vmatpush2.msra.mxu0 0.0
      %651 = vmatprep.subr.mxu0 0.0
      %652 = vmatpush2.msra.mxu0 0.0
      %653 = vmatprep.subr.mxu0 0.0
      %654 = vmatpush2.msra.mxu0 0.0
      %655 = vmatprep.subr.mxu0 0.0
      %656 = vmatpush2.msra.mxu0 0.0
      %657 = vmatprep.subr.mxu0 0.0
      %658 = vmatpush2.msra.mxu0 0.0
      %659 = vmatprep.subr.mxu0 0.0
      %660 = vmatpush2.msra.mxu0 0.0
      %661 = vmatprep.subr.mxu0 0.0
      %662 = vmatpush2.msra.mxu0 0.0
      %663 = vmatprep.subr.mxu0 0.0
      %664 = vmatpush2.msra.mxu0 0.0
      %665 = vmatprep.subr.mxu0 0.0
      %666 = vmatpush2.msra.mxu0 0.0
      %667 = vmatprep.mubr.f32.mxu0 0.0
      %668 = vmatmul.mubr.f32.gmra.mxu0 %v580
      %v669 = vpop.f32.mrf.mxu0
      %v670 = vadd.f32 %v541, %v669
      %v671 = vpop.f32.mrf.mxu0
      %v672 = vadd.f32 %v541, %v671
      %673 = vmatprep.mubr.f32.mxu0 0.0
      %674 = vmatmul.mubr.f32.gmra.mxu0 %v583
      %v675 = vpop.f32.mrf.mxu0
      %v676 = vadd.f32 %v546, %v675
      %v677 = vpop.f32.mrf.mxu0
      %v678 = vadd.f32 %v546, %v677
      %679 = vmatprep.mubr.f32.mxu0 0.0
      %680 = vmatmul.mubr.f32.gmra.mxu0 %v586
      %v681 = vpop.f32.mrf.mxu0
      %v682 = vadd.f32 %v551, %v681
      %v683 = vpop.f32.mrf.mxu0
      %v684 = vadd.f32 %v551, %v683
      %685 = vmatprep.mubr.f32.mxu0 0.0
      %686 = vmatmul.mubr.f32.gmra.mxu0 %v589
      %v687 = vpop.f32.mrf.mxu0
      %v688 = vadd.f32 %v556, %v687
      %v689 = vpop.f32.mrf.mxu0
      %v690 = vadd.f32 %v556, %v689
      %691 = vmatprep.mubr.f32.mxu0 0.0
      %692 = vmatmul.mubr.f32.gmra.mxu0 %v592
      %v693 = vpop.f32.mrf.mxu0
      %v694 = vadd.f32 %v561, %v693
      %v695 = vpop.f32.mrf.mxu0
      %v696 = vadd.f32 %v561, %v695
      %697 = vmatprep.mubr.f32.mxu0 0.0
      %698 = vmatmul.mubr.f32.gmra.mxu0 %v595
      %v699 = vpop.f32.mrf.mxu0
      %v700 = vadd.f32 %v566, %v699
      %v701 = vpop.f32.mrf.mxu0
      %v702 = vadd.f32 %v566, %v701
      %703 = vmatprep.mubr.f32.mxu0 0.0
      %704 = vmatmul.mubr.f32.gmra.mxu0 %v598
      %v705 = vpop.f32.mrf.mxu0
      %v706 = vadd.f32 %v571, %v705
      %v707 = vpop.f32.mrf.mxu0
      %v708 = vadd.f32 %v571, %v707
      %709 = vmatprep.mubr.f32.mxu0 0.0
      %710 = vmatmul.mubr.f32.gmra.mxu0 %v601
      %v711 = vpop.f32.mrf.mxu0
      %v712 = vadd.f32 %v576, %v711
      %v713 = vpop.f32.mrf.mxu0
      %v714 = vadd.f32 %v576, %v713
      %715 = vdwg.mxu0
      %v716 = vmax.f32 %v670, 0.0
      %v717 = vmax.f32 %v672, 0.0
      %v718 = vmax.f32 %v676, 0.0
      %v719 = vmax.f32 %v678, 0.0
      %v720 = vmax.f32 %v682, 0.0
      %v721 = vmax.f32 %v684, 0.0
      %v722 = vmax.f32 %v688, 0.0
      %v723 = vmax.f32 %v690, 0.0
      %v724 = vmax.f32 %v694, 0.0
      %v725 = vmax.f32 %v696, 0.0
      %v726 = vmax.f32 %v700, 0.0
      %v727 = vmax.f32 %v702, 0.0
      %v728 = vmax.f32 %v706, 0.0
      %v729 = vmax.f32 %v708, 0.0
      %v730 = vmax.f32 %v712, 0.0
      %v731 = vmax.f32 %v714, 0.0
      %732 = vrot.lane.b32.xlu0 %v716, 17
      %v733 = vpop.permute.xlu0 %732
      %734 = vrot.lane.b32.xlu0 %v718, 17
      %v735 = vpop.permute.xlu0 %734
      %736 = vrot.lane.b32.xlu0 %v720, 17
      %v737 = vpop.permute.xlu0 %736
      %738 = vrot.lane.b32.xlu0 %v722, 17
      %v739 = vpop.permute.xlu0 %738
      %740 = vrot.lane.b32.xlu0 %v724, 17
      %v741 = vpop.permute.xlu0 %740
      %742 = vrot.lane.b32.xlu0 %v726, 17
      %v743 = vpop.permute.xlu0 %742
      %744 = vrot.lane.b32.xlu0 %v728, 17
      %v745 = vpop.permute.xlu0 %744
      %746 = vrot.lane.b32.xlu0 %v730, 17
      %v747 = vpop.permute.xlu0 %746
      %748 = vrot.lane.b32.xlu0 %v717, 17
      %v749 = vpop.permute.xlu0 %748
      %750 = vrot.lane.b32.xlu0 %v719, 17
      %v751 = vpop.permute.xlu0 %750
      %752 = vrot.lane.b32.xlu0 %v721, 17
      %v753 = vpop.permute.xlu0 %752
      %754 = vrot.lane.b32.xlu0 %v723, 17
      %v755 = vpop.permute.xlu0 %754
      %756 = vrot.lane.b32.xlu0 %v725, 17
      %v757 = vpop.permute.xlu0 %756
      %758 = vrot.lane.b32.xlu0 %v727, 17
      %v759 = vpop.permute.xlu0 %758
      %760 = vrot.lane.b32.xlu0 %v729, 17
      %v761 = vpop.permute.xlu0 %760
      %762 = vrot.lane.b32.xlu0 %v731, 17
      %v763 = vpop.permute.xlu0 %762
      %v764 = vsel %vm315, %v733, %v749
      %v765 = vsel %vm315, %v735, %v751
      %v766 = vsel %vm315, %v737, %v753
      %v767 = vsel %vm315, %v739, %v755
      %v768 = vsel %vm315, %v741, %v757
      %v769 = vsel %vm315, %v743, %v759
      %v770 = vsel %vm315, %v745, %v761
      %v771 = vsel %vm315, %v747, %v763
      %v772 = vsel %vm315, %v749, %v733
      %v773 = vsel %vm315, %v751, %v735
      %v774 = vsel %vm315, %v753, %v737
      %v775 = vsel %vm315, %v755, %v739
      %v776 = vsel %vm315, %v757, %v741
      %v777 = vsel %vm315, %v759, %v743
      %v778 = vsel %vm315, %v761, %v745
      %v779 = vsel %vm315, %v763, %v747
      %v780 = vld [vmem:[%s7] sm:$0x3]
      %v782 = vlaneseq
      %v783 = vshrl.u32 %v782, 7
      %v784 = vsub.s32 0, %v783
      %v785 = vrot.slane %v780, %v784
      %v786 = vlaneseq
      %v787 = vshrl.u32 %v786, 7
      %v788 = vsub.s32 1, %v787
      %v789 = vrot.slane %v780, %v788
      %v792 = vmul.f32 %v772, %v785
      %v793 = vmul.f32 %v764, %v789
      %v794 = vmul.f32 %v773, %v785
      %v795 = vmul.f32 %v765, %v789
      %v796 = vmul.f32 %v774, %v785
      %v797 = vmul.f32 %v766, %v789
      %v798 = vmul.f32 %v775, %v785
      %v799 = vmul.f32 %v767, %v789
      %v800 = vmul.f32 %v776, %v785
      %v801 = vmul.f32 %v768, %v789
      %v802 = vmul.f32 %v777, %v785
      %v803 = vmul.f32 %v769, %v789
      %v804 = vmul.f32 %v778, %v785
      %v805 = vmul.f32 %v770, %v789
      %v806 = vmul.f32 %v779, %v785
      %v807 = vmul.f32 %v771, %v789
      %v808 = vpack.c.bf16 %v794, %v792
      %v809 = vpack.c.bf16 %v795, %v793
      %v810 = vpack.c.bf16 %v798, %v796
      %v811 = vpack.c.bf16 %v799, %v797
      %v812 = vpack.c.bf16 %v802, %v800
      %v813 = vpack.c.bf16 %v803, %v801
      %v814 = vpack.c.bf16 %v806, %v804
      %v815 = vpack.c.bf16 %v807, %v805
      %v824 = vunpack.c.l.b16 %v808
      %v825 = vunpack.c.l.b16 %v809
      %v826 = vunpack.c.h.b16 %v808
      %v827 = vunpack.c.h.b16 %v809
      %v828 = vunpack.c.l.b16 %v810
      %v829 = vunpack.c.l.b16 %v811
      %v830 = vunpack.c.h.b16 %v810
      %v831 = vunpack.c.h.b16 %v811
      %v832 = vunpack.c.l.b16 %v812
      %v833 = vunpack.c.l.b16 %v813
      %v834 = vunpack.c.h.b16 %v812
      %v835 = vunpack.c.h.b16 %v813
      %v836 = vunpack.c.l.b16 %v814
      %v837 = vunpack.c.l.b16 %v815
      %v838 = vunpack.c.h.b16 %v814
      %v839 = vunpack.c.h.b16 %v815
      %v840 = vpack.c.b16 %v825, %v824
      %v841 = vpack.c.b16 %v827, %v826
      %v842 = vpack.c.b16 %v829, %v828
      %v843 = vpack.c.b16 %v831, %v830
      %v844 = vpack.c.b16 %v833, %v832
      %v845 = vpack.c.b16 %v835, %v834
      %v846 = vpack.c.b16 %v837, %v836
      %v847 = vpack.c.b16 %v839, %v838
      %856 = vst [vmem:[#allocation3] sm:$0xff] %v840
      %857 = vst [vmem:[#allocation3 + $0x8] sm:$0xff] %v841
      %858 = vst [vmem:[#allocation3 + $0x10] sm:$0xff] %v842
      %859 = vst [vmem:[#allocation3 + $0x18] sm:$0xff] %v843
      %860 = vst [vmem:[#allocation3 + $0x20] sm:$0xff] %v844
      %861 = vst [vmem:[#allocation3 + $0x28] sm:$0xff] %v845
      %862 = vst [vmem:[#allocation3 + $0x30] sm:$0xff] %v846
      %863 = vst [vmem:[#allocation3 + $0x38] sm:$0xff] %v847
      %864 = vrot.lane.b32.xlu0 %v716, 16
      %v865 = vpop.permute.xlu0 %864
      %866 = vrot.lane.b32.xlu0 %v718, 16
      %v867 = vpop.permute.xlu0 %866
      %868 = vrot.lane.b32.xlu0 %v720, 16
      %v869 = vpop.permute.xlu0 %868
      %870 = vrot.lane.b32.xlu0 %v722, 16
      %v871 = vpop.permute.xlu0 %870
      %872 = vrot.lane.b32.xlu0 %v724, 16
      %v873 = vpop.permute.xlu0 %872
      %874 = vrot.lane.b32.xlu0 %v726, 16
      %v875 = vpop.permute.xlu0 %874
      %876 = vrot.lane.b32.xlu0 %v728, 16
      %v877 = vpop.permute.xlu0 %876
      %878 = vrot.lane.b32.xlu0 %v730, 16
      %v879 = vpop.permute.xlu0 %878
      %880 = vrot.lane.b32.xlu0 %v717, 16
      %v881 = vpop.permute.xlu0 %880
      %882 = vrot.lane.b32.xlu0 %v719, 16
      %v883 = vpop.permute.xlu0 %882
      %884 = vrot.lane.b32.xlu0 %v721, 16
      %v885 = vpop.permute.xlu0 %884
      %886 = vrot.lane.b32.xlu0 %v723, 16
      %v887 = vpop.permute.xlu0 %886
      %888 = vrot.lane.b32.xlu0 %v725, 16
      %v889 = vpop.permute.xlu0 %888
      %890 = vrot.lane.b32.xlu0 %v727, 16
      %v891 = vpop.permute.xlu0 %890
      %892 = vrot.lane.b32.xlu0 %v729, 16
      %v893 = vpop.permute.xlu0 %892
      %894 = vrot.lane.b32.xlu0 %v731, 16
      %v895 = vpop.permute.xlu0 %894
      %v896 = vsel %vm338, %v865, %v881
      %v897 = vsel %vm338, %v867, %v883
      %v898 = vsel %vm338, %v869, %v885
      %v899 = vsel %vm338, %v871, %v887
      %v900 = vsel %vm338, %v873, %v889
      %v901 = vsel %vm338, %v875, %v891
      %v902 = vsel %vm338, %v877, %v893
      %v903 = vsel %vm338, %v879, %v895
      %v904 = vsel %vm338, %v881, %v865
      %v905 = vsel %vm338, %v883, %v867
      %v906 = vsel %vm338, %v885, %v869
      %v907 = vsel %vm338, %v887, %v871
      %v908 = vsel %vm338, %v889, %v873
      %v909 = vsel %vm338, %v891, %v875
      %v910 = vsel %vm338, %v893, %v877
      %v911 = vsel %vm338, %v895, %v879
      %v912 = vld [vmem:[%s341] sm:$0x3]
      %v914 = vlaneseq
      %v915 = vshrl.u32 %v914, 7
      %v916 = vsub.s32 0, %v915
      %v917 = vrot.slane %v912, %v916
      %v918 = vlaneseq
      %v919 = vshrl.u32 %v918, 7
      %v920 = vsub.s32 1, %v919
      %v921 = vrot.slane %v912, %v920
      %v924 = vmul.f32 %v904, %v917
      %v925 = vmul.f32 %v896, %v921
      %v926 = vmul.f32 %v905, %v917
      %v927 = vmul.f32 %v897, %v921
      %v928 = vmul.f32 %v906, %v917
      %v929 = vmul.f32 %v898, %v921
      %v930 = vmul.f32 %v907, %v917
      %v931 = vmul.f32 %v899, %v921
      %v932 = vmul.f32 %v908, %v917
      %v933 = vmul.f32 %v900, %v921
      %v934 = vmul.f32 %v909, %v917
      %v935 = vmul.f32 %v901, %v921
      %v936 = vmul.f32 %v910, %v917
      %v937 = vmul.f32 %v902, %v921
      %v938 = vmul.f32 %v911, %v917
      %v939 = vmul.f32 %v903, %v921
      %v940 = vpack.c.bf16 %v926, %v924
      %v941 = vpack.c.bf16 %v927, %v925
      %v942 = vpack.c.bf16 %v930, %v928
      %v943 = vpack.c.bf16 %v931, %v929
      %v944 = vpack.c.bf16 %v934, %v932
      %v945 = vpack.c.bf16 %v935, %v933
      %v946 = vpack.c.bf16 %v938, %v936
      %v947 = vpack.c.bf16 %v939, %v937
      %v956 = vunpack.c.l.b16 %v940
      %v957 = vunpack.c.l.b16 %v941
      %v958 = vunpack.c.h.b16 %v940
      %v959 = vunpack.c.h.b16 %v941
      %v960 = vunpack.c.l.b16 %v942
      %v961 = vunpack.c.l.b16 %v943
      %v962 = vunpack.c.h.b16 %v942
      %v963 = vunpack.c.h.b16 %v943
      %v964 = vunpack.c.l.b16 %v944
      %v965 = vunpack.c.l.b16 %v945
      %v966 = vunpack.c.h.b16 %v944
      %v967 = vunpack.c.h.b16 %v945
      %v968 = vunpack.c.l.b16 %v946
      %v969 = vunpack.c.l.b16 %v947
      %v970 = vunpack.c.h.b16 %v946
      %v971 = vunpack.c.h.b16 %v947
      %v972 = vpack.c.b16 %v957, %v956
      %v973 = vpack.c.b16 %v959, %v958
      %v974 = vpack.c.b16 %v961, %v960
      %v975 = vpack.c.b16 %v963, %v962
      %v976 = vpack.c.b16 %v965, %v964
      %v977 = vpack.c.b16 %v967, %v966
      %v978 = vpack.c.b16 %v969, %v968
      %v979 = vpack.c.b16 %v971, %v970
      %988 = vst [vmem:[#allocation3 + $0x40] sm:$0xff] %v972
      %989 = vst [vmem:[#allocation3 + $0x48] sm:$0xff] %v973
      %990 = vst [vmem:[#allocation3 + $0x50] sm:$0xff] %v974
      %991 = vst [vmem:[#allocation3 + $0x58] sm:$0xff] %v975
      %992 = vst [vmem:[#allocation3 + $0x60] sm:$0xff] %v976
      %993 = vst [vmem:[#allocation3 + $0x68] sm:$0xff] %v977
      %994 = vst [vmem:[#allocation3 + $0x70] sm:$0xff] %v978
      %995 = vst [vmem:[#allocation3 + $0x78] sm:$0xff] %v979
      %996 = vrot.lane.b32.xlu0 %v716, 15
      %v997 = vpop.permute.xlu0 %996
      %998 = vrot.lane.b32.xlu0 %v718, 15
      %v999 = vpop.permute.xlu0 %998
      %1000 = vrot.lane.b32.xlu0 %v720, 15
      %v1001 = vpop.permute.xlu0 %1000
      %1002 = vrot.lane.b32.xlu0 %v722, 15
      %v1003 = vpop.permute.xlu0 %1002
      %1004 = vrot.lane.b32.xlu0 %v724, 15
      %v1005 = vpop.permute.xlu0 %1004
      %1006 = vrot.lane.b32.xlu0 %v726, 15
      %v1007 = vpop.permute.xlu0 %1006
      %1008 = vrot.lane.b32.xlu0 %v728, 15
      %v1009 = vpop.permute.xlu0 %1008
      %1010 = vrot.lane.b32.xlu0 %v730, 15
      %v1011 = vpop.permute.xlu0 %1010
      %1012 = vrot.lane.b32.xlu0 %v717, 15
      %v1013 = vpop.permute.xlu0 %1012
      %1014 = vrot.lane.b32.xlu0 %v719, 15
      %v1015 = vpop.permute.xlu0 %1014
      %1016 = vrot.lane.b32.xlu0 %v721, 15
      %v1017 = vpop.permute.xlu0 %1016
      %1018 = vrot.lane.b32.xlu0 %v723, 15
      %v1019 = vpop.permute.xlu0 %1018
      %1020 = vrot.lane.b32.xlu0 %v725, 15
      %v1021 = vpop.permute.xlu0 %1020
      %1022 = vrot.lane.b32.xlu0 %v727, 15
      %v1023 = vpop.permute.xlu0 %1022
      %1024 = vrot.lane.b32.xlu0 %v729, 15
      %v1025 = vpop.permute.xlu0 %1024
      %1026 = vrot.lane.b32.xlu0 %v731, 15
      %v1027 = vpop.permute.xlu0 %1026
      %v1028 = vsel %vm362, %v997, %v1013
      %v1029 = vsel %vm362, %v999, %v1015
      %v1030 = vsel %vm362, %v1001, %v1017
      %v1031 = vsel %vm362, %v1003, %v1019
      %v1032 = vsel %vm362, %v1005, %v1021
      %v1033 = vsel %vm362, %v1007, %v1023
      %v1034 = vsel %vm362, %v1009, %v1025
      %v1035 = vsel %vm362, %v1011, %v1027
      %v1036 = vsel %vm362, %v1013, %v997
      %v1037 = vsel %vm362, %v1015, %v999
      %v1038 = vsel %vm362, %v1017, %v1001
      %v1039 = vsel %vm362, %v1019, %v1003
      %v1040 = vsel %vm362, %v1021, %v1005
      %v1041 = vsel %vm362, %v1023, %v1007
      %v1042 = vsel %vm362, %v1025, %v1009
      %v1043 = vsel %vm362, %v1027, %v1011
      %v1044 = vld [vmem:[%s365] sm:$0x3]
      %v1046 = vlaneseq
      %v1047 = vshrl.u32 %v1046, 7
      %v1048 = vsub.s32 0, %v1047
      %v1049 = vrot.slane %v1044, %v1048
      %v1050 = vlaneseq
      %v1051 = vshrl.u32 %v1050, 7
      %v1052 = vsub.s32 1, %v1051
      %v1053 = vrot.slane %v1044, %v1052
      %v1056 = vmul.f32 %v1036, %v1049
      %v1057 = vmul.f32 %v1028, %v1053
      %v1058 = vmul.f32 %v1037, %v1049
      %v1059 = vmul.f32 %v1029, %v1053
      %v1060 = vmul.f32 %v1038, %v1049
      %v1061 = vmul.f32 %v1030, %v1053
      %v1062 = vmul.f32 %v1039, %v1049
      %v1063 = vmul.f32 %v1031, %v1053
      %v1064 = vmul.f32 %v1040, %v1049
      %v1065 = vmul.f32 %v1032, %v1053
      %v1066 = vmul.f32 %v1041, %v1049
      %v1067 = vmul.f32 %v1033, %v1053
      %v1068 = vmul.f32 %v1042, %v1049
      %v1069 = vmul.f32 %v1034, %v1053
      %v1070 = vmul.f32 %v1043, %v1049
      %v1071 = vmul.f32 %v1035, %v1053
      %v1072 = vpack.c.bf16 %v1058, %v1056
      %v1073 = vpack.c.bf16 %v1059, %v1057
      %v1074 = vpack.c.bf16 %v1062, %v1060
      %v1075 = vpack.c.bf16 %v1063, %v1061
      %v1076 = vpack.c.bf16 %v1066, %v1064
      %v1077 = vpack.c.bf16 %v1067, %v1065
      %v1078 = vpack.c.bf16 %v1070, %v1068
      %v1079 = vpack.c.bf16 %v1071, %v1069
      %v1088 = vunpack.c.l.b16 %v1072
      %v1089 = vunpack.c.l.b16 %v1073
      %v1090 = vunpack.c.h.b16 %v1072
      %v1091 = vunpack.c.h.b16 %v1073
      %v1092 = vunpack.c.l.b16 %v1074
      %v1093 = vunpack.c.l.b16 %v1075
      %v1094 = vunpack.c.h.b16 %v1074
      %v1095 = vunpack.c.h.b16 %v1075
      %v1096 = vunpack.c.l.b16 %v1076
      %v1097 = vunpack.c.l.b16 %v1077
      %v1098 = vunpack.c.h.b16 %v1076
      %v1099 = vunpack.c.h.b16 %v1077
      %v1100 = vunpack.c.l.b16 %v1078
      %v1101 = vunpack.c.l.b16 %v1079
      %v1102 = vunpack.c.h.b16 %v1078
      %v1103 = vunpack.c.h.b16 %v1079
      %v1104 = vpack.c.b16 %v1089, %v1088
      %v1105 = vpack.c.b16 %v1091, %v1090
      %v1106 = vpack.c.b16 %v1093, %v1092
      %v1107 = vpack.c.b16 %v1095, %v1094
      %v1108 = vpack.c.b16 %v1097, %v1096
      %v1109 = vpack.c.b16 %v1099, %v1098
      %v1110 = vpack.c.b16 %v1101, %v1100
      %v1111 = vpack.c.b16 %v1103, %v1102
      %1120 = vst [vmem:[#allocation3 + $0x80] sm:$0xff] %v1104
      %1121 = vst [vmem:[#allocation3 + $0x88] sm:$0xff] %v1105
      %1122 = vst [vmem:[#allocation3 + $0x90] sm:$0xff] %v1106
      %1123 = vst [vmem:[#allocation3 + $0x98] sm:$0xff] %v1107
      %1124 = vst [vmem:[#allocation3 + $0xa0] sm:$0xff] %v1108
      %1125 = vst [vmem:[#allocation3 + $0xa8] sm:$0xff] %v1109
      %1126 = vst [vmem:[#allocation3 + $0xb0] sm:$0xff] %v1110
      %1127 = vst [vmem:[#allocation3 + $0xb8] sm:$0xff] %v1111
      %1128 = vrot.lane.b32.xlu0 %v716, 1
      %v1129 = vpop.permute.xlu0 %1128
      %1130 = vrot.lane.b32.xlu0 %v718, 1
      %v1131 = vpop.permute.xlu0 %1130
      %1132 = vrot.lane.b32.xlu0 %v720, 1
      %v1133 = vpop.permute.xlu0 %1132
      %1134 = vrot.lane.b32.xlu0 %v722, 1
      %v1135 = vpop.permute.xlu0 %1134
      %1136 = vrot.lane.b32.xlu0 %v724, 1
      %v1137 = vpop.permute.xlu0 %1136
      %1138 = vrot.lane.b32.xlu0 %v726, 1
      %v1139 = vpop.permute.xlu0 %1138
      %1140 = vrot.lane.b32.xlu0 %v728, 1
      %v1141 = vpop.permute.xlu0 %1140
      %1142 = vrot.lane.b32.xlu0 %v730, 1
      %v1143 = vpop.permute.xlu0 %1142
      %1144 = vrot.lane.b32.xlu0 %v717, 1
      %v1145 = vpop.permute.xlu0 %1144
      %1146 = vrot.lane.b32.xlu0 %v719, 1
      %v1147 = vpop.permute.xlu0 %1146
      %1148 = vrot.lane.b32.xlu0 %v721, 1
      %v1149 = vpop.permute.xlu0 %1148
      %1150 = vrot.lane.b32.xlu0 %v723, 1
      %v1151 = vpop.permute.xlu0 %1150
      %1152 = vrot.lane.b32.xlu0 %v725, 1
      %v1153 = vpop.permute.xlu0 %1152
      %1154 = vrot.lane.b32.xlu0 %v727, 1
      %v1155 = vpop.permute.xlu0 %1154
      %1156 = vrot.lane.b32.xlu0 %v729, 1
      %v1157 = vpop.permute.xlu0 %1156
      %1158 = vrot.lane.b32.xlu0 %v731, 1
      %v1159 = vpop.permute.xlu0 %1158
      %v1160 = vsel %vm386, %v1129, %v1145
      %v1161 = vsel %vm386, %v1131, %v1147
      %v1162 = vsel %vm386, %v1133, %v1149
      %v1163 = vsel %vm386, %v1135, %v1151
      %v1164 = vsel %vm386, %v1137, %v1153
      %v1165 = vsel %vm386, %v1139, %v1155
      %v1166 = vsel %vm386, %v1141, %v1157
      %v1167 = vsel %vm386, %v1143, %v1159
      %v1168 = vsel %vm386, %v1145, %v1129
      %v1169 = vsel %vm386, %v1147, %v1131
      %v1170 = vsel %vm386, %v1149, %v1133
      %v1171 = vsel %vm386, %v1151, %v1135
      %v1172 = vsel %vm386, %v1153, %v1137
      %v1173 = vsel %vm386, %v1155, %v1139
      %v1174 = vsel %vm386, %v1157, %v1141
      %v1175 = vsel %vm386, %v1159, %v1143
      %v1176 = vld [vmem:[%s389] sm:$0x3]
      %v1178 = vlaneseq
      %v1179 = vshrl.u32 %v1178, 7
      %v1180 = vsub.s32 0, %v1179
      %v1181 = vrot.slane %v1176, %v1180
      %v1182 = vlaneseq
      %v1183 = vshrl.u32 %v1182, 7
      %v1184 = vsub.s32 1, %v1183
      %v1185 = vrot.slane %v1176, %v1184
      %v1188 = vmul.f32 %v1168, %v1181
      %v1189 = vmul.f32 %v1160, %v1185
      %v1190 = vmul.f32 %v1169, %v1181
      %v1191 = vmul.f32 %v1161, %v1185
      %v1192 = vmul.f32 %v1170, %v1181
      %v1193 = vmul.f32 %v1162, %v1185
      %v1194 = vmul.f32 %v1171, %v1181
      %v1195 = vmul.f32 %v1163, %v1185
      %v1196 = vmul.f32 %v1172, %v1181
      %v1197 = vmul.f32 %v1164, %v1185
      %v1198 = vmul.f32 %v1173, %v1181
      %v1199 = vmul.f32 %v1165, %v1185
      %v1200 = vmul.f32 %v1174, %v1181
      %v1201 = vmul.f32 %v1166, %v1185
      %v1202 = vmul.f32 %v1175, %v1181
      %v1203 = vmul.f32 %v1167, %v1185
      %v1204 = vpack.c.bf16 %v1190, %v1188
      %v1205 = vpack.c.bf16 %v1191, %v1189
      %v1206 = vpack.c.bf16 %v1194, %v1192
      %v1207 = vpack.c.bf16 %v1195, %v1193
      %v1208 = vpack.c.bf16 %v1198, %v1196
      %v1209 = vpack.c.bf16 %v1199, %v1197
      %v1210 = vpack.c.bf16 %v1202, %v1200
      %v1211 = vpack.c.bf16 %v1203, %v1201
      %v1220 = vunpack.c.l.b16 %v1204
      %v1221 = vunpack.c.l.b16 %v1205
      %v1222 = vunpack.c.h.b16 %v1204
      %v1223 = vunpack.c.h.b16 %v1205
      %v1224 = vunpack.c.l.b16 %v1206
      %v1225 = vunpack.c.l.b16 %v1207
      %v1226 = vunpack.c.h.b16 %v1206
      %v1227 = vunpack.c.h.b16 %v1207
      %v1228 = vunpack.c.l.b16 %v1208
      %v1229 = vunpack.c.l.b16 %v1209
      %v1230 = vunpack.c.h.b16 %v1208
      %v1231 = vunpack.c.h.b16 %v1209
      %v1232 = vunpack.c.l.b16 %v1210
      %v1233 = vunpack.c.l.b16 %v1211
      %v1234 = vunpack.c.h.b16 %v1210
      %v1235 = vunpack.c.h.b16 %v1211
      %v1236 = vpack.c.b16 %v1221, %v1220
      %v1237 = vpack.c.b16 %v1223, %v1222
      %v1238 = vpack.c.b16 %v1225, %v1224
      %v1239 = vpack.c.b16 %v1227, %v1226
      %v1240 = vpack.c.b16 %v1229, %v1228
      %v1241 = vpack.c.b16 %v1231, %v1230
      %v1242 = vpack.c.b16 %v1233, %v1232
      %v1243 = vpack.c.b16 %v1235, %v1234
      %1252 = vst [vmem:[#allocation3 + $0xc0] sm:$0xff] %v1236
      %1253 = vst [vmem:[#allocation3 + $0xc8] sm:$0xff] %v1237
      %1254 = vst [vmem:[#allocation3 + $0xd0] sm:$0xff] %v1238
      %1255 = vst [vmem:[#allocation3 + $0xd8] sm:$0xff] %v1239
      %1256 = vst [vmem:[#allocation3 + $0xe0] sm:$0xff] %v1240
      %1257 = vst [vmem:[#allocation3 + $0xe8] sm:$0xff] %v1241
      %1258 = vst [vmem:[#allocation3 + $0xf0] sm:$0xff] %v1242
      %1259 = vst [vmem:[#allocation3 + $0xf8] sm:$0xff] %v1243
      %v1260 = vpack.c.bf16 %v718, %v716
      %v1261 = vpack.c.bf16 %v719, %v717
      %v1262 = vpack.c.bf16 %v722, %v720
      %v1263 = vpack.c.bf16 %v723, %v721
      %v1264 = vpack.c.bf16 %v726, %v724
      %v1265 = vpack.c.bf16 %v727, %v725
      %v1266 = vpack.c.bf16 %v730, %v728
      %v1267 = vpack.c.bf16 %v731, %v729
      %v1276 = vunpack.c.l.b16 %v1260
      %v1277 = vunpack.c.l.b16 %v1261
      %v1278 = vunpack.c.h.b16 %v1260
      %v1279 = vunpack.c.h.b16 %v1261
      %v1280 = vunpack.c.l.b16 %v1262
      %v1281 = vunpack.c.l.b16 %v1263
      %v1282 = vunpack.c.h.b16 %v1262
      %v1283 = vunpack.c.h.b16 %v1263
      %v1284 = vunpack.c.l.b16 %v1264
      %v1285 = vunpack.c.l.b16 %v1265
      %v1286 = vunpack.c.h.b16 %v1264
      %v1287 = vunpack.c.h.b16 %v1265
      %v1288 = vunpack.c.l.b16 %v1266
      %v1289 = vunpack.c.l.b16 %v1267
      %v1290 = vunpack.c.h.b16 %v1266
      %v1291 = vunpack.c.h.b16 %v1267
      %v1292 = vpack.c.b16 %v1277, %v1276
      %v1293 = vpack.c.b16 %v1279, %v1278
      %v1294 = vpack.c.b16 %v1281, %v1280
      %v1295 = vpack.c.b16 %v1283, %v1282
      %v1296 = vpack.c.b16 %v1285, %v1284
      %v1297 = vpack.c.b16 %v1287, %v1286
      %v1298 = vpack.c.b16 %v1289, %v1288
      %v1299 = vpack.c.b16 %v1291, %v1290
      %1308 = vst [vmem:[#allocation3 + $0x100] sm:$0xff] %v1292
      %1309 = vst [vmem:[#allocation3 + $0x108] sm:$0xff] %v1293
      %1310 = vst [vmem:[#allocation3 + $0x110] sm:$0xff] %v1294
      %1311 = vst [vmem:[#allocation3 + $0x118] sm:$0xff] %v1295
      %1312 = vst [vmem:[#allocation3 + $0x120] sm:$0xff] %v1296
      %1313 = vst [vmem:[#allocation3 + $0x128] sm:$0xff] %v1297
      %1314 = vst [vmem:[#allocation3 + $0x130] sm:$0xff] %v1298
      %1315 = vst [vmem:[#allocation3 + $0x138] sm:$0xff] %v1299
      %1316 = vrot.lane.b32.xlu0 %v716, 127
      %v1317 = vpop.permute.xlu0 %1316
      %1318 = vrot.lane.b32.xlu0 %v718, 127
      %v1319 = vpop.permute.xlu0 %1318
      %1320 = vrot.lane.b32.xlu0 %v720, 127
      %v1321 = vpop.permute.xlu0 %1320
      %1322 = vrot.lane.b32.xlu0 %v722, 127
      %v1323 = vpop.permute.xlu0 %1322
      %1324 = vrot.lane.b32.xlu0 %v724, 127
      %v1325 = vpop.permute.xlu0 %1324
      %1326 = vrot.lane.b32.xlu0 %v726, 127
      %v1327 = vpop.permute.xlu0 %1326
      %1328 = vrot.lane.b32.xlu0 %v728, 127
      %v1329 = vpop.permute.xlu0 %1328
      %1330 = vrot.lane.b32.xlu0 %v730, 127
      %v1331 = vpop.permute.xlu0 %1330
      %1332 = vrot.lane.b32.xlu0 %v717, 127
      %v1333 = vpop.permute.xlu0 %1332
      %1334 = vrot.lane.b32.xlu0 %v719, 127
      %v1335 = vpop.permute.xlu0 %1334
      %1336 = vrot.lane.b32.xlu0 %v721, 127
      %v1337 = vpop.permute.xlu0 %1336
      %1338 = vrot.lane.b32.xlu0 %v723, 127
      %v1339 = vpop.permute.xlu0 %1338
      %1340 = vrot.lane.b32.xlu0 %v725, 127
      %v1341 = vpop.permute.xlu0 %1340
      %1342 = vrot.lane.b32.xlu0 %v727, 127
      %v1343 = vpop.permute.xlu0 %1342
      %1344 = vrot.lane.b32.xlu0 %v729, 127
      %v1345 = vpop.permute.xlu0 %1344
      %1346 = vrot.lane.b32.xlu0 %v731, 127
      %v1347 = vpop.permute.xlu0 %1346
      %v1348 = vsel %vm412, %v1317, %v1333
      %v1349 = vsel %vm412, %v1319, %v1335
      %v1350 = vsel %vm412, %v1321, %v1337
      %v1351 = vsel %vm412, %v1323, %v1339
      %v1352 = vsel %vm412, %v1325, %v1341
      %v1353 = vsel %vm412, %v1327, %v1343
      %v1354 = vsel %vm412, %v1329, %v1345
      %v1355 = vsel %vm412, %v1331, %v1347
      %v1356 = vsel %vm412, %v1333, %v1317
      %v1357 = vsel %vm412, %v1335, %v1319
      %v1358 = vsel %vm412, %v1337, %v1321
      %v1359 = vsel %vm412, %v1339, %v1323
      %v1360 = vsel %vm412, %v1341, %v1325
      %v1361 = vsel %vm412, %v1343, %v1327
      %v1362 = vsel %vm412, %v1345, %v1329
      %v1363 = vsel %vm412, %v1347, %v1331
      %v1364 = vld [vmem:[%s415] sm:$0x3]
      %v1366 = vlaneseq
      %v1367 = vshrl.u32 %v1366, 7
      %v1368 = vsub.s32 0, %v1367
      %v1369 = vrot.slane %v1364, %v1368
      %v1370 = vlaneseq
      %v1371 = vshrl.u32 %v1370, 7
      %v1372 = vsub.s32 1, %v1371
      %v1373 = vrot.slane %v1364, %v1372
      %v1376 = vmul.f32 %v1348, %v1369
      %v1377 = vmul.f32 %v1356, %v1373
      %v1378 = vmul.f32 %v1349, %v1369
      %v1379 = vmul.f32 %v1357, %v1373
      %v1380 = vmul.f32 %v1350, %v1369
      %v1381 = vmul.f32 %v1358, %v1373
      %v1382 = vmul.f32 %v1351, %v1369
      %v1383 = vmul.f32 %v1359, %v1373
      %v1384 = vmul.f32 %v1352, %v1369
      %v1385 = vmul.f32 %v1360, %v1373
      %v1386 = vmul.f32 %v1353, %v1369
      %v1387 = vmul.f32 %v1361, %v1373
      %v1388 = vmul.f32 %v1354, %v1369
      %v1389 = vmul.f32 %v1362, %v1373
      %v1390 = vmul.f32 %v1355, %v1369
      %v1391 = vmul.f32 %v1363, %v1373
      %v1392 = vpack.c.bf16 %v1378, %v1376
      %v1393 = vpack.c.bf16 %v1379, %v1377
      %v1394 = vpack.c.bf16 %v1382, %v1380
      %v1395 = vpack.c.bf16 %v1383, %v1381
      %v1396 = vpack.c.bf16 %v1386, %v1384
      %v1397 = vpack.c.bf16 %v1387, %v1385
      %v1398 = vpack.c.bf16 %v1390, %v1388
      %v1399 = vpack.c.bf16 %v1391, %v1389
      %v1408 = vunpack.c.l.b16 %v1392
      %v1409 = vunpack.c.l.b16 %v1393
      %v1410 = vunpack.c.h.b16 %v1392
      %v1411 = vunpack.c.h.b16 %v1393
      %v1412 = vunpack.c.l.b16 %v1394
      %v1413 = vunpack.c.l.b16 %v1395
      %v1414 = vunpack.c.h.b16 %v1394
      %v1415 = vunpack.c.h.b16 %v1395
      %v1416 = vunpack.c.l.b16 %v1396
      %v1417 = vunpack.c.l.b16 %v1397
      %v1418 = vunpack.c.h.b16 %v1396
      %v1419 = vunpack.c.h.b16 %v1397
      %v1420 = vunpack.c.l.b16 %v1398
      %v1421 = vunpack.c.l.b16 %v1399
      %v1422 = vunpack.c.h.b16 %v1398
      %v1423 = vunpack.c.h.b16 %v1399
      %v1424 = vpack.c.b16 %v1409, %v1408
      %v1425 = vpack.c.b16 %v1411, %v1410
      %v1426 = vpack.c.b16 %v1413, %v1412
      %v1427 = vpack.c.b16 %v1415, %v1414
      %v1428 = vpack.c.b16 %v1417, %v1416
      %v1429 = vpack.c.b16 %v1419, %v1418
      %v1430 = vpack.c.b16 %v1421, %v1420
      %v1431 = vpack.c.b16 %v1423, %v1422
      %1440 = vst [vmem:[#allocation3 + $0x140] sm:$0xff] %v1424
      %1441 = vst [vmem:[#allocation3 + $0x148] sm:$0xff] %v1425
      %1442 = vst [vmem:[#allocation3 + $0x150] sm:$0xff] %v1426
      %1443 = vst [vmem:[#allocation3 + $0x158] sm:$0xff] %v1427
      %1444 = vst [vmem:[#allocation3 + $0x160] sm:$0xff] %v1428
      %1445 = vst [vmem:[#allocation3 + $0x168] sm:$0xff] %v1429
      %1446 = vst [vmem:[#allocation3 + $0x170] sm:$0xff] %v1430
      %1447 = vst [vmem:[#allocation3 + $0x178] sm:$0xff] %v1431
      %1448 = vrot.lane.b32.xlu0 %v716, 113
      %v1449 = vpop.permute.xlu0 %1448
      %1450 = vrot.lane.b32.xlu0 %v718, 113
      %v1451 = vpop.permute.xlu0 %1450
      %1452 = vrot.lane.b32.xlu0 %v720, 113
      %v1453 = vpop.permute.xlu0 %1452
      %1454 = vrot.lane.b32.xlu0 %v722, 113
      %v1455 = vpop.permute.xlu0 %1454
      %1456 = vrot.lane.b32.xlu0 %v724, 113
      %v1457 = vpop.permute.xlu0 %1456
      %1458 = vrot.lane.b32.xlu0 %v726, 113
      %v1459 = vpop.permute.xlu0 %1458
      %1460 = vrot.lane.b32.xlu0 %v728, 113
      %v1461 = vpop.permute.xlu0 %1460
      %1462 = vrot.lane.b32.xlu0 %v730, 113
      %v1463 = vpop.permute.xlu0 %1462
      %1464 = vrot.lane.b32.xlu0 %v717, 113
      %v1465 = vpop.permute.xlu0 %1464
      %1466 = vrot.lane.b32.xlu0 %v719, 113
      %v1467 = vpop.permute.xlu0 %1466
      %1468 = vrot.lane.b32.xlu0 %v721, 113
      %v1469 = vpop.permute.xlu0 %1468
      %1470 = vrot.lane.b32.xlu0 %v723, 113
      %v1471 = vpop.permute.xlu0 %1470
      %1472 = vrot.lane.b32.xlu0 %v725, 113
      %v1473 = vpop.permute.xlu0 %1472
      %1474 = vrot.lane.b32.xlu0 %v727, 113
      %v1475 = vpop.permute.xlu0 %1474
      %1476 = vrot.lane.b32.xlu0 %v729, 113
      %v1477 = vpop.permute.xlu0 %1476
      %1478 = vrot.lane.b32.xlu0 %v731, 113
      %v1479 = vpop.permute.xlu0 %1478
      %v1480 = vsel %vm436, %v1449, %v1465
      %v1481 = vsel %vm436, %v1451, %v1467
      %v1482 = vsel %vm436, %v1453, %v1469
      %v1483 = vsel %vm436, %v1455, %v1471
      %v1484 = vsel %vm436, %v1457, %v1473
      %v1485 = vsel %vm436, %v1459, %v1475
      %v1486 = vsel %vm436, %v1461, %v1477
      %v1487 = vsel %vm436, %v1463, %v1479
      %v1488 = vsel %vm436, %v1465, %v1449
      %v1489 = vsel %vm436, %v1467, %v1451
      %v1490 = vsel %vm436, %v1469, %v1453
      %v1491 = vsel %vm436, %v1471, %v1455
      %v1492 = vsel %vm436, %v1473, %v1457
      %v1493 = vsel %vm436, %v1475, %v1459
      %v1494 = vsel %vm436, %v1477, %v1461
      %v1495 = vsel %vm436, %v1479, %v1463
      %v1496 = vld [vmem:[%s439] sm:$0x3]
      %v1498 = vlaneseq
      %v1499 = vshrl.u32 %v1498, 7
      %v1500 = vsub.s32 0, %v1499
      %v1501 = vrot.slane %v1496, %v1500
      %v1502 = vlaneseq
      %v1503 = vshrl.u32 %v1502, 7
      %v1504 = vsub.s32 1, %v1503
      %v1505 = vrot.slane %v1496, %v1504
      %v1508 = vmul.f32 %v1480, %v1501
      %v1509 = vmul.f32 %v1488, %v1505
      %v1510 = vmul.f32 %v1481, %v1501
      %v1511 = vmul.f32 %v1489, %v1505
      %v1512 = vmul.f32 %v1482, %v1501
      %v1513 = vmul.f32 %v1490, %v1505
      %v1514 = vmul.f32 %v1483, %v1501
      %v1515 = vmul.f32 %v1491, %v1505
      %v1516 = vmul.f32 %v1484, %v1501
      %v1517 = vmul.f32 %v1492, %v1505
      %v1518 = vmul.f32 %v1485, %v1501
      %v1519 = vmul.f32 %v1493, %v1505
      %v1520 = vmul.f32 %v1486, %v1501
      %v1521 = vmul.f32 %v1494, %v1505
      %v1522 = vmul.f32 %v1487, %v1501
      %v1523 = vmul.f32 %v1495, %v1505
      %v1524 = vpack.c.bf16 %v1510, %v1508
      %v1525 = vpack.c.bf16 %v1511, %v1509
      %v1526 = vpack.c.bf16 %v1514, %v1512
      %v1527 = vpack.c.bf16 %v1515, %v1513
      %v1528 = vpack.c.bf16 %v1518, %v1516
      %v1529 = vpack.c.bf16 %v1519, %v1517
      %v1530 = vpack.c.bf16 %v1522, %v1520
      %v1531 = vpack.c.bf16 %v1523, %v1521
      %v1540 = vunpack.c.l.b16 %v1524
      %v1541 = vunpack.c.l.b16 %v1525
      %v1542 = vunpack.c.h.b16 %v1524
      %v1543 = vunpack.c.h.b16 %v1525
      %v1544 = vunpack.c.l.b16 %v1526
      %v1545 = vunpack.c.l.b16 %v1527
      %v1546 = vunpack.c.h.b16 %v1526
      %v1547 = vunpack.c.h.b16 %v1527
      %v1548 = vunpack.c.l.b16 %v1528
      %v1549 = vunpack.c.l.b16 %v1529
      %v1550 = vunpack.c.h.b16 %v1528
      %v1551 = vunpack.c.h.b16 %v1529
      %v1552 = vunpack.c.l.b16 %v1530
      %v1553 = vunpack.c.l.b16 %v1531
      %v1554 = vunpack.c.h.b16 %v1530
      %v1555 = vunpack.c.h.b16 %v1531
      %v1556 = vpack.c.b16 %v1541, %v1540
      %v1557 = vpack.c.b16 %v1543, %v1542
      %v1558 = vpack.c.b16 %v1545, %v1544
      %v1559 = vpack.c.b16 %v1547, %v1546
      %v1560 = vpack.c.b16 %v1549, %v1548
      %v1561 = vpack.c.b16 %v1551, %v1550
      %v1562 = vpack.c.b16 %v1553, %v1552
      %v1563 = vpack.c.b16 %v1555, %v1554
      %1572 = vst [vmem:[#allocation3 + $0x180] sm:$0xff] %v1556
      %1573 = vst [vmem:[#allocation3 + $0x188] sm:$0xff] %v1557
      %1574 = vst [vmem:[#allocation3 + $0x190] sm:$0xff] %v1558
      %1575 = vst [vmem:[#allocation3 + $0x198] sm:$0xff] %v1559
      %1576 = vst [vmem:[#allocation3 + $0x1a0] sm:$0xff] %v1560
      %1577 = vst [vmem:[#allocation3 + $0x1a8] sm:$0xff] %v1561
      %1578 = vst [vmem:[#allocation3 + $0x1b0] sm:$0xff] %v1562
      %1579 = vst [vmem:[#allocation3 + $0x1b8] sm:$0xff] %v1563
      %1580 = vrot.lane.b32.xlu0 %v716, 112
      %v1581 = vpop.permute.xlu0 %1580
      %1582 = vrot.lane.b32.xlu0 %v718, 112
      %v1583 = vpop.permute.xlu0 %1582
      %1584 = vrot.lane.b32.xlu0 %v720, 112
      %v1585 = vpop.permute.xlu0 %1584
      %1586 = vrot.lane.b32.xlu0 %v722, 112
      %v1587 = vpop.permute.xlu0 %1586
      %1588 = vrot.lane.b32.xlu0 %v724, 112
      %v1589 = vpop.permute.xlu0 %1588
      %1590 = vrot.lane.b32.xlu0 %v726, 112
      %v1591 = vpop.permute.xlu0 %1590
      %1592 = vrot.lane.b32.xlu0 %v728, 112
      %v1593 = vpop.permute.xlu0 %1592
      %1594 = vrot.lane.b32.xlu0 %v730, 112
      %v1595 = vpop.permute.xlu0 %1594
      %1596 = vrot.lane.b32.xlu0 %v717, 112
      %v1597 = vpop.permute.xlu0 %1596
      %1598 = vrot.lane.b32.xlu0 %v719, 112
      %v1599 = vpop.permute.xlu0 %1598
      %1600 = vrot.lane.b32.xlu0 %v721, 112
      %v1601 = vpop.permute.xlu0 %1600
      %1602 = vrot.lane.b32.xlu0 %v723, 112
      %v1603 = vpop.permute.xlu0 %1602
      %1604 = vrot.lane.b32.xlu0 %v725, 112
      %v1605 = vpop.permute.xlu0 %1604
      %1606 = vrot.lane.b32.xlu0 %v727, 112
      %v1607 = vpop.permute.xlu0 %1606
      %1608 = vrot.lane.b32.xlu0 %v729, 112
      %v1609 = vpop.permute.xlu0 %1608
      %1610 = vrot.lane.b32.xlu0 %v731, 112
      %v1611 = vpop.permute.xlu0 %1610
      %v1612 = vsel %vm460, %v1581, %v1597
      %v1613 = vsel %vm460, %v1583, %v1599
      %v1614 = vsel %vm460, %v1585, %v1601
      %v1615 = vsel %vm460, %v1587, %v1603
      %v1616 = vsel %vm460, %v1589, %v1605
      %v1617 = vsel %vm460, %v1591, %v1607
      %v1618 = vsel %vm460, %v1593, %v1609
      %v1619 = vsel %vm460, %v1595, %v1611
      %v1620 = vsel %vm460, %v1597, %v1581
      %v1621 = vsel %vm460, %v1599, %v1583
      %v1622 = vsel %vm460, %v1601, %v1585
      %v1623 = vsel %vm460, %v1603, %v1587
      %v1624 = vsel %vm460, %v1605, %v1589
      %v1625 = vsel %vm460, %v1607, %v1591
      %v1626 = vsel %vm460, %v1609, %v1593
      %v1627 = vsel %vm460, %v1611, %v1595
      %v1628 = vld [vmem:[%s463] sm:$0x3]
      %v1630 = vlaneseq
      %v1631 = vshrl.u32 %v1630, 7
      %v1632 = vsub.s32 0, %v1631
      %v1633 = vrot.slane %v1628, %v1632
      %v1634 = vlaneseq
      %v1635 = vshrl.u32 %v1634, 7
      %v1636 = vsub.s32 1, %v1635
      %v1637 = vrot.slane %v1628, %v1636
      %v1640 = vmul.f32 %v1612, %v1633
      %v1641 = vmul.f32 %v1620, %v1637
      %v1642 = vmul.f32 %v1613, %v1633
      %v1643 = vmul.f32 %v1621, %v1637
      %v1644 = vmul.f32 %v1614, %v1633
      %v1645 = vmul.f32 %v1622, %v1637
      %v1646 = vmul.f32 %v1615, %v1633
      %v1647 = vmul.f32 %v1623, %v1637
      %v1648 = vmul.f32 %v1616, %v1633
      %v1649 = vmul.f32 %v1624, %v1637
      %v1650 = vmul.f32 %v1617, %v1633
      %v1651 = vmul.f32 %v1625, %v1637
      %v1652 = vmul.f32 %v1618, %v1633
      %v1653 = vmul.f32 %v1626, %v1637
      %v1654 = vmul.f32 %v1619, %v1633
      %v1655 = vmul.f32 %v1627, %v1637
      %v1656 = vpack.c.bf16 %v1642, %v1640
      %v1657 = vpack.c.bf16 %v1643, %v1641
      %v1658 = vpack.c.bf16 %v1646, %v1644
      %v1659 = vpack.c.bf16 %v1647, %v1645
      %v1660 = vpack.c.bf16 %v1650, %v1648
      %v1661 = vpack.c.bf16 %v1651, %v1649
      %v1662 = vpack.c.bf16 %v1654, %v1652
      %v1663 = vpack.c.bf16 %v1655, %v1653
      %v1672 = vunpack.c.l.b16 %v1656
      %v1673 = vunpack.c.l.b16 %v1657
      %v1674 = vunpack.c.h.b16 %v1656
      %v1675 = vunpack.c.h.b16 %v1657
      %v1676 = vunpack.c.l.b16 %v1658
      %v1677 = vunpack.c.l.b16 %v1659
      %v1678 = vunpack.c.h.b16 %v1658
      %v1679 = vunpack.c.h.b16 %v1659
      %v1680 = vunpack.c.l.b16 %v1660
      %v1681 = vunpack.c.l.b16 %v1661
      %v1682 = vunpack.c.h.b16 %v1660
      %v1683 = vunpack.c.h.b16 %v1661
      %v1684 = vunpack.c.l.b16 %v1662
      %v1685 = vunpack.c.l.b16 %v1663
      %v1686 = vunpack.c.h.b16 %v1662
      %v1687 = vunpack.c.h.b16 %v1663
      %v1688 = vpack.c.b16 %v1673, %v1672
      %v1689 = vpack.c.b16 %v1675, %v1674
      %v1690 = vpack.c.b16 %v1677, %v1676
      %v1691 = vpack.c.b16 %v1679, %v1678
      %v1692 = vpack.c.b16 %v1681, %v1680
      %v1693 = vpack.c.b16 %v1683, %v1682
      %v1694 = vpack.c.b16 %v1685, %v1684
      %v1695 = vpack.c.b16 %v1687, %v1686
      %1704 = vst [vmem:[#allocation3 + $0x1c0] sm:$0xff] %v1688
      %1705 = vst [vmem:[#allocation3 + $0x1c8] sm:$0xff] %v1689
      %1706 = vst [vmem:[#allocation3 + $0x1d0] sm:$0xff] %v1690
      %1707 = vst [vmem:[#allocation3 + $0x1d8] sm:$0xff] %v1691
      %1708 = vst [vmem:[#allocation3 + $0x1e0] sm:$0xff] %v1692
      %1709 = vst [vmem:[#allocation3 + $0x1e8] sm:$0xff] %v1693
      %1710 = vst [vmem:[#allocation3 + $0x1f0] sm:$0xff] %v1694
      %1711 = vst [vmem:[#allocation3 + $0x1f8] sm:$0xff] %v1695
      %1712 = vrot.lane.b32.xlu0 %v716, 111
      %v1713 = vpop.permute.xlu0 %1712
      %1714 = vrot.lane.b32.xlu0 %v718, 111
      %v1715 = vpop.permute.xlu0 %1714
      %1716 = vrot.lane.b32.xlu0 %v720, 111
      %v1717 = vpop.permute.xlu0 %1716
      %1718 = vrot.lane.b32.xlu0 %v722, 111
      %v1719 = vpop.permute.xlu0 %1718
      %1720 = vrot.lane.b32.xlu0 %v724, 111
      %v1721 = vpop.permute.xlu0 %1720
      %1722 = vrot.lane.b32.xlu0 %v726, 111
      %v1723 = vpop.permute.xlu0 %1722
      %1724 = vrot.lane.b32.xlu0 %v728, 111
      %v1725 = vpop.permute.xlu0 %1724
      %1726 = vrot.lane.b32.xlu0 %v730, 111
      %v1727 = vpop.permute.xlu0 %1726
      %1728 = vrot.lane.b32.xlu0 %v717, 111
      %v1729 = vpop.permute.xlu0 %1728
      %1730 = vrot.lane.b32.xlu0 %v719, 111
      %v1731 = vpop.permute.xlu0 %1730
      %1732 = vrot.lane.b32.xlu0 %v721, 111
      %v1733 = vpop.permute.xlu0 %1732
      %1734 = vrot.lane.b32.xlu0 %v723, 111
      %v1735 = vpop.permute.xlu0 %1734
      %1736 = vrot.lane.b32.xlu0 %v725, 111
      %v1737 = vpop.permute.xlu0 %1736
      %1738 = vrot.lane.b32.xlu0 %v727, 111
      %v1739 = vpop.permute.xlu0 %1738
      %1740 = vrot.lane.b32.xlu0 %v729, 111
      %v1741 = vpop.permute.xlu0 %1740
      %1742 = vrot.lane.b32.xlu0 %v731, 111
      %v1743 = vpop.permute.xlu0 %1742
      %v1744 = vsel %vm484, %v1713, %v1729
      %v1745 = vsel %vm484, %v1715, %v1731
      %v1746 = vsel %vm484, %v1717, %v1733
      %v1747 = vsel %vm484, %v1719, %v1735
      %v1748 = vsel %vm484, %v1721, %v1737
      %v1749 = vsel %vm484, %v1723, %v1739
      %v1750 = vsel %vm484, %v1725, %v1741
      %v1751 = vsel %vm484, %v1727, %v1743
      %v1752 = vsel %vm484, %v1729, %v1713
      %v1753 = vsel %vm484, %v1731, %v1715
      %v1754 = vsel %vm484, %v1733, %v1717
      %v1755 = vsel %vm484, %v1735, %v1719
      %v1756 = vsel %vm484, %v1737, %v1721
      %v1757 = vsel %vm484, %v1739, %v1723
      %v1758 = vsel %vm484, %v1741, %v1725
      %v1759 = vsel %vm484, %v1743, %v1727
      %v1760 = vld [vmem:[%s487] sm:$0x3]
      %v1762 = vlaneseq
      %v1763 = vshrl.u32 %v1762, 7
      %v1764 = vsub.s32 0, %v1763
      %v1765 = vrot.slane %v1760, %v1764
      %v1766 = vlaneseq
      %v1767 = vshrl.u32 %v1766, 7
      %v1768 = vsub.s32 1, %v1767
      %v1769 = vrot.slane %v1760, %v1768
      %v1772 = vmul.f32 %v1744, %v1765
      %v1773 = vmul.f32 %v1752, %v1769
      %v1774 = vmul.f32 %v1745, %v1765
      %v1775 = vmul.f32 %v1753, %v1769
      %v1776 = vmul.f32 %v1746, %v1765
      %v1777 = vmul.f32 %v1754, %v1769
      %v1778 = vmul.f32 %v1747, %v1765
      %v1779 = vmul.f32 %v1755, %v1769
      %v1780 = vmul.f32 %v1748, %v1765
      %v1781 = vmul.f32 %v1756, %v1769
      %v1782 = vmul.f32 %v1749, %v1765
      %v1783 = vmul.f32 %v1757, %v1769
      %v1784 = vmul.f32 %v1750, %v1765
      %v1785 = vmul.f32 %v1758, %v1769
      %v1786 = vmul.f32 %v1751, %v1765
      %v1787 = vmul.f32 %v1759, %v1769
      %v1788 = vpack.c.bf16 %v1774, %v1772
      %v1789 = vpack.c.bf16 %v1775, %v1773
      %v1790 = vpack.c.bf16 %v1778, %v1776
      %v1791 = vpack.c.bf16 %v1779, %v1777
      %v1792 = vpack.c.bf16 %v1782, %v1780
      %v1793 = vpack.c.bf16 %v1783, %v1781
      %v1794 = vpack.c.bf16 %v1786, %v1784
      %v1795 = vpack.c.bf16 %v1787, %v1785
      %v1804 = vunpack.c.l.b16 %v1788
      %v1805 = vunpack.c.l.b16 %v1789
      %v1806 = vunpack.c.h.b16 %v1788
      %v1807 = vunpack.c.h.b16 %v1789
      %v1808 = vunpack.c.l.b16 %v1790
      %v1809 = vunpack.c.l.b16 %v1791
      %v1810 = vunpack.c.h.b16 %v1790
      %v1811 = vunpack.c.h.b16 %v1791
      %v1812 = vunpack.c.l.b16 %v1792
      %v1813 = vunpack.c.l.b16 %v1793
      %v1814 = vunpack.c.h.b16 %v1792
      %v1815 = vunpack.c.h.b16 %v1793
      %v1816 = vunpack.c.l.b16 %v1794
      %v1817 = vunpack.c.l.b16 %v1795
      %v1818 = vunpack.c.h.b16 %v1794
      %v1819 = vunpack.c.h.b16 %v1795
      %v1820 = vpack.c.b16 %v1805, %v1804
      %v1821 = vpack.c.b16 %v1807, %v1806
      %v1822 = vpack.c.b16 %v1809, %v1808
      %v1823 = vpack.c.b16 %v1811, %v1810
      %v1824 = vpack.c.b16 %v1813, %v1812
      %v1825 = vpack.c.b16 %v1815, %v1814
      %v1826 = vpack.c.b16 %v1817, %v1816
      %v1827 = vpack.c.b16 %v1819, %v1818
      %1836 = vst [vmem:[#allocation3 + $0x200] sm:$0xff] %v1820
      %1837 = vst [vmem:[#allocation3 + $0x208] sm:$0xff] %v1821
      %1838 = vst [vmem:[#allocation3 + $0x210] sm:$0xff] %v1822
      %1839 = vst [vmem:[#allocation3 + $0x218] sm:$0xff] %v1823
      %1840 = vst [vmem:[#allocation3 + $0x220] sm:$0xff] %v1824
      %1841 = vst [vmem:[#allocation3 + $0x228] sm:$0xff] %v1825
      %1842 = vst [vmem:[#allocation3 + $0x230] sm:$0xff] %v1826
      %1843 = vst [vmem:[#allocation3 + $0x238] sm:$0xff] %v1827
      %v1844 = vld [vmem:[%s3] sm:$0xff]
      %v1845 = vld [vmem:[%s3 + $0x8] sm:$0xff]
      %v1846 = vld [vmem:[%s3 + $0x10] sm:$0xf]
      %v1847 = vld [vmem:[%s3 + $0x14] sm:$0xff]
      %v1848 = vld [vmem:[%s3 + $0x1c] sm:$0xff]
      %v1849 = vld [vmem:[%s3 + $0x24] sm:$0xf]
      %v1850 = vld [vmem:[%s3 + $0x28] sm:$0xff]
      %v1851 = vld [vmem:[%s3 + $0x30] sm:$0xff]
      %v1852 = vld [vmem:[%s3 + $0x38] sm:$0xf]
      %v1853 = vld [vmem:[%s3 + $0x3c] sm:$0xff]
      %v1854 = vld [vmem:[%s3 + $0x44] sm:$0xff]
      %v1855 = vld [vmem:[%s3 + $0x4c] sm:$0xf]
      %v1856 = vld [vmem:[%s3 + $0x50] sm:$0xff]
      %v1857 = vld [vmem:[%s3 + $0x58] sm:$0xff]
      %v1858 = vld [vmem:[%s3 + $0x60] sm:$0xf]
      %v1859 = vld [vmem:[%s3 + $0x64] sm:$0xff]
      %v1860 = vld [vmem:[%s3 + $0x6c] sm:$0xff]
      %v1861 = vld [vmem:[%s3 + $0x74] sm:$0xf]
      %v1862 = vld [vmem:[%s3 + $0x78] sm:$0xff]
      %v1863 = vld [vmem:[%s3 + $0x80] sm:$0xff]
      %v1864 = vld [vmem:[%s3 + $0x88] sm:$0xf]
      %v1865 = vld [vmem:[%s3 + $0x8c] sm:$0xff]
      %v1866 = vld [vmem:[%s3 + $0x94] sm:$0xff]
      %v1867 = vld [vmem:[%s3 + $0x9c] sm:$0xf]
      %v1868 = vld [vmem:[#allocation3] sm:$0xff]
      %v1869 = vld [vmem:[#allocation3 + $0x8] sm:$0xff]
      %v1870 = vld [vmem:[#allocation3 + $0x10] sm:$0xff]
      %v1871 = vld [vmem:[#allocation3 + $0x18] sm:$0xff]
      %v1872 = vld [vmem:[#allocation3 + $0x20] sm:$0xff]
      %v1873 = vld [vmem:[#allocation3 + $0x28] sm:$0xff]
      %v1874 = vld [vmem:[#allocation3 + $0x30] sm:$0xff]
      %v1875 = vld [vmem:[#allocation3 + $0x38] sm:$0xff]
      %v1876 = vld [vmem:[#allocation3 + $0x40] sm:$0xff]
      %v1877 = vld [vmem:[#allocation3 + $0x48] sm:$0xff]
      %v1878 = vld [vmem:[#allocation3 + $0x50] sm:$0xff]
      %v1879 = vld [vmem:[#allocation3 + $0x58] sm:$0xff]
      %v1880 = vld [vmem:[#allocation3 + $0x60] sm:$0xff]
      %v1881 = vld [vmem:[#allocation3 + $0x68] sm:$0xff]
      %v1882 = vld [vmem:[#allocation3 + $0x70] sm:$0xff]
      %v1883 = vld [vmem:[#allocation3 + $0x78] sm:$0xff]
      %v1884 = vld [vmem:[#allocation3 + $0x80] sm:$0xff]
      %v1885 = vld [vmem:[#allocation3 + $0x88] sm:$0xff]
      %v1886 = vld [vmem:[#allocation3 + $0x90] sm:$0xff]
      %v1887 = vld [vmem:[#allocation3 + $0x98] sm:$0xff]
      %v1888 = vld [vmem:[#allocation3 + $0xa0] sm:$0xff]
      %v1889 = vld [vmem:[#allocation3 + $0xa8] sm:$0xff]
      %v1890 = vld [vmem:[#allocation3 + $0xb0] sm:$0xff]
      %v1891 = vld [vmem:[#allocation3 + $0xb8] sm:$0xff]
      %v1892 = vld [vmem:[#allocation3 + $0xc0] sm:$0xff]
      %v1893 = vld [vmem:[#allocation3 + $0xc8] sm:$0xff]
      %v1894 = vld [vmem:[#allocation3 + $0xd0] sm:$0xff]
      %v1895 = vld [vmem:[#allocation3 + $0xd8] sm:$0xff]
      %v1896 = vld [vmem:[#allocation3 + $0xe0] sm:$0xff]
      %v1897 = vld [vmem:[#allocation3 + $0xe8] sm:$0xff]
      %v1898 = vld [vmem:[#allocation3 + $0xf0] sm:$0xff]
      %v1899 = vld [vmem:[#allocation3 + $0xf8] sm:$0xff]
      %v1900 = vld [vmem:[#allocation3 + $0x100] sm:$0xff]
      %v1901 = vld [vmem:[#allocation3 + $0x108] sm:$0xff]
      %v1902 = vld [vmem:[#allocation3 + $0x110] sm:$0xff]
      %v1903 = vld [vmem:[#allocation3 + $0x118] sm:$0xff]
      %v1904 = vld [vmem:[#allocation3 + $0x120] sm:$0xff]
      %v1905 = vld [vmem:[#allocation3 + $0x128] sm:$0xff]
      %v1906 = vld [vmem:[#allocation3 + $0x130] sm:$0xff]
      %v1907 = vld [vmem:[#allocation3 + $0x138] sm:$0xff]
      %v1908 = vld [vmem:[#allocation3 + $0x140] sm:$0xff]
      %v1909 = vld [vmem:[#allocation3 + $0x148] sm:$0xff]
      %v1910 = vld [vmem:[#allocation3 + $0x150] sm:$0xff]
      %v1911 = vld [vmem:[#allocation3 + $0x158] sm:$0xff]
      %v1912 = vld [vmem:[#allocation3 + $0x160] sm:$0xff]
      %v1913 = vld [vmem:[#allocation3 + $0x168] sm:$0xff]
      %v1914 = vld [vmem:[#allocation3 + $0x170] sm:$0xff]
      %v1915 = vld [vmem:[#allocation3 + $0x178] sm:$0xff]
      %v1916 = vld [vmem:[#allocation3 + $0x180] sm:$0xff]
      %v1917 = vld [vmem:[#allocation3 + $0x188] sm:$0xff]
      %v1918 = vld [vmem:[#allocation3 + $0x190] sm:$0xff]
      %v1919 = vld [vmem:[#allocation3 + $0x198] sm:$0xff]
      %v1920 = vld [vmem:[#allocation3 + $0x1a0] sm:$0xff]
      %v1921 = vld [vmem:[#allocation3 + $0x1a8] sm:$0xff]
      %v1922 = vld [vmem:[#allocation3 + $0x1b0] sm:$0xff]
      %v1923 = vld [vmem:[#allocation3 + $0x1b8] sm:$0xff]
      %v1924 = vld [vmem:[#allocation3 + $0x1c0] sm:$0xff]
      %v1925 = vld [vmem:[#allocation3 + $0x1c8] sm:$0xff]
      %v1926 = vld [vmem:[#allocation3 + $0x1d0] sm:$0xff]
      %v1927 = vld [vmem:[#allocation3 + $0x1d8] sm:$0xff]
      %v1928 = vld [vmem:[#allocation3 + $0x1e0] sm:$0xff]
      %v1929 = vld [vmem:[#allocation3 + $0x1e8] sm:$0xff]
      %v1930 = vld [vmem:[#allocation3 + $0x1f0] sm:$0xff]
      %v1931 = vld [vmem:[#allocation3 + $0x1f8] sm:$0xff]
      %v1932 = vld [vmem:[#allocation3 + $0x200] sm:$0xff]
      %v1933 = vld [vmem:[#allocation3 + $0x208] sm:$0xff]
      %v1934 = vld [vmem:[#allocation3 + $0x210] sm:$0xff]
      %v1935 = vld [vmem:[#allocation3 + $0x218] sm:$0xff]
      %v1936 = vld [vmem:[#allocation3 + $0x220] sm:$0xff]
      %v1937 = vld [vmem:[#allocation3 + $0x228] sm:$0xff]
      %v1938 = vld [vmem:[#allocation3 + $0x230] sm:$0xff]
      %v1939 = vld [vmem:[#allocation3 + $0x238] sm:$0xff]
      %v1940 = vld [vmem:[%s4] sm:$0xff]
      %v1941 = vld [vmem:[%s4 + $0x8] sm:$0xff]
      %v1942 = vld [vmem:[%s4 + $0x10] sm:$0xff]
      %v1943 = vld [vmem:[%s4 + $0x18] sm:$0xff]
      %v1944 = vld [vmem:[%s4 + $0x20] sm:$0xff]
      %v1945 = vld [vmem:[%s4 + $0x28] sm:$0xff]
      %v1946 = vld [vmem:[%s4 + $0x30] sm:$0xff]
      %v1947 = vld [vmem:[%s4 + $0x38] sm:$0xff]
      %1949 = vset.pattern.permute.xlu0 0
      %1950 = vperm.xlu0 %1949, %v1940
      %v1951 = vpop.permute.xlu0 %1950
      %1954 = vset.pattern.permute.xlu0 0
      %1955 = vperm.xlu0 %1954, %v1941
      %v1956 = vpop.permute.xlu0 %1955
      %1959 = vset.pattern.permute.xlu0 0
      %1960 = vperm.xlu0 %1959, %v1942
      %v1961 = vpop.permute.xlu0 %1960
      %1964 = vset.pattern.permute.xlu0 0
      %1965 = vperm.xlu0 %1964, %v1943
      %v1966 = vpop.permute.xlu0 %1965
      %1969 = vset.pattern.permute.xlu0 0
      %1970 = vperm.xlu0 %1969, %v1944
      %v1971 = vpop.permute.xlu0 %1970
      %1974 = vset.pattern.permute.xlu0 0
      %1975 = vperm.xlu0 %1974, %v1945
      %v1976 = vpop.permute.xlu0 %1975
      %1979 = vset.pattern.permute.xlu0 0
      %1980 = vperm.xlu0 %1979, %v1946
      %v1981 = vpop.permute.xlu0 %1980
      %1984 = vset.pattern.permute.xlu0 0
      %1985 = vperm.xlu0 %1984, %v1947
      %v1986 = vpop.permute.xlu0 %1985
      %v2012 = vunpack.c.l.b16 %v1844
      %v2013 = vunpack.c.h.b16 %v1844
      %v2014 = vunpack.c.l.b16 %v1845
      %v2015 = vunpack.c.h.b16 %v1845
      %v2016 = vunpack.c.l.b16 %v1846
      %v2017 = vunpack.c.l.b16 %v1847
      %v2018 = vunpack.c.h.b16 %v1847
      %v2019 = vunpack.c.l.b16 %v1848
      %v2020 = vunpack.c.h.b16 %v1848
      %v2021 = vunpack.c.l.b16 %v1849
      %v2022 = vunpack.c.l.b16 %v1850
      %v2023 = vunpack.c.h.b16 %v1850
      %v2024 = vunpack.c.l.b16 %v1851
      %v2025 = vunpack.c.h.b16 %v1851
      %v2026 = vunpack.c.l.b16 %v1852
      %v2027 = vunpack.c.l.b16 %v1853
      %v2028 = vunpack.c.h.b16 %v1853
      %v2029 = vunpack.c.l.b16 %v1854
      %v2030 = vunpack.c.h.b16 %v1854
      %v2031 = vunpack.c.l.b16 %v1855
      %v2032 = vunpack.c.l.b16 %v1856
      %v2033 = vunpack.c.h.b16 %v1856
      %v2034 = vunpack.c.l.b16 %v1857
      %v2035 = vunpack.c.h.b16 %v1857
      %v2036 = vunpack.c.l.b16 %v1858
      %v2037 = vunpack.c.l.b16 %v1859
      %v2038 = vunpack.c.h.b16 %v1859
      %v2039 = vunpack.c.l.b16 %v1860
      %v2040 = vunpack.c.h.b16 %v1860
      %v2041 = vunpack.c.l.b16 %v1861
      %v2042 = vunpack.c.l.b16 %v1862
      %v2043 = vunpack.c.h.b16 %v1862
      %v2044 = vunpack.c.l.b16 %v1863
      %v2045 = vunpack.c.h.b16 %v1863
      %v2046 = vunpack.c.l.b16 %v1864
      %v2047 = vunpack.c.l.b16 %v1865
      %v2048 = vunpack.c.h.b16 %v1865
      %v2049 = vunpack.c.l.b16 %v1866
      %v2050 = vunpack.c.h.b16 %v1866
      %v2051 = vunpack.c.l.b16 %v1867
      %v2052 = vpack.c.b16 %v2017, %v2012
      %v2053 = vpack.c.b16 %v2018, %v2013
      %v2054 = vpack.c.b16 %v2019, %v2014
      %v2055 = vpack.c.b16 %v2020, %v2015
      %v2056 = vpack.c.b16 %v2021, %v2016
      %v2057 = vpack.c.b16 %v2027, %v2022
      %v2058 = vpack.c.b16 %v2028, %v2023
      %v2059 = vpack.c.b16 %v2029, %v2024
      %v2060 = vpack.c.b16 %v2030, %v2025
      %v2061 = vpack.c.b16 %v2031, %v2026
      %v2062 = vpack.c.b16 %v2037, %v2032
      %v2063 = vpack.c.b16 %v2038, %v2033
      %v2064 = vpack.c.b16 %v2039, %v2034
      %v2065 = vpack.c.b16 %v2040, %v2035
      %v2066 = vpack.c.b16 %v2041, %v2036
      %v2067 = vpack.c.b16 %v2047, %v2042
      %v2068 = vpack.c.b16 %v2048, %v2043
      %v2069 = vpack.c.b16 %v2049, %v2044
      %v2070 = vpack.c.b16 %v2050, %v2045
      %v2071 = vpack.c.b16 %v2051, %v2046
      %v2160 = vunpack.c.l.b16 %v1868
      %v2161 = vunpack.c.h.b16 %v1868
      %v2162 = vunpack.c.l.b16 %v1869
      %v2163 = vunpack.c.h.b16 %v1869
      %v2164 = vunpack.c.l.b16 %v1870
      %v2165 = vunpack.c.h.b16 %v1870
      %v2166 = vunpack.c.l.b16 %v1871
      %v2167 = vunpack.c.h.b16 %v1871
      %v2168 = vunpack.c.l.b16 %v1872
      %v2169 = vunpack.c.h.b16 %v1872
      %v2170 = vunpack.c.l.b16 %v1873
      %v2171 = vunpack.c.h.b16 %v1873
      %v2172 = vunpack.c.l.b16 %v1874
      %v2173 = vunpack.c.h.b16 %v1874
      %v2174 = vunpack.c.l.b16 %v1875
      %v2175 = vunpack.c.h.b16 %v1875
      %v2176 = vunpack.c.l.b16 %v1876
      %v2177 = vunpack.c.h.b16 %v1876
      %v2178 = vunpack.c.l.b16 %v1877
      %v2179 = vunpack.c.h.b16 %v1877
      %v2180 = vunpack.c.l.b16 %v1878
      %v2181 = vunpack.c.h.b16 %v1878
      %v2182 = vunpack.c.l.b16 %v1879
      %v2183 = vunpack.c.h.b16 %v1879
      %v2184 = vunpack.c.l.b16 %v1880
      %v2185 = vunpack.c.h.b16 %v1880
      %v2186 = vunpack.c.l.b16 %v1881
      %v2187 = vunpack.c.h.b16 %v1881
      %v2188 = vunpack.c.l.b16 %v1882
      %v2189 = vunpack.c.h.b16 %v1882
      %v2190 = vunpack.c.l.b16 %v1883
      %v2191 = vunpack.c.h.b16 %v1883
      %v2192 = vunpack.c.l.b16 %v1884
      %v2193 = vunpack.c.h.b16 %v1884
      %v2194 = vunpack.c.l.b16 %v1885
      %v2195 = vunpack.c.h.b16 %v1885
      %v2196 = vunpack.c.l.b16 %v1886
      %v2197 = vunpack.c.h.b16 %v1886
      %v2198 = vunpack.c.l.b16 %v1887
      %v2199 = vunpack.c.h.b16 %v1887
      %v2200 = vunpack.c.l.b16 %v1888
      %v2201 = vunpack.c.h.b16 %v1888
      %v2202 = vunpack.c.l.b16 %v1889
      %v2203 = vunpack.c.h.b16 %v1889
      %v2204 = vunpack.c.l.b16 %v1890
      %v2205 = vunpack.c.h.b16 %v1890
      %v2206 = vunpack.c.l.b16 %v1891
      %v2207 = vunpack.c.h.b16 %v1891
      %v2208 = vunpack.c.l.b16 %v1892
      %v2209 = vunpack.c.h.b16 %v1892
      %v2210 = vunpack.c.l.b16 %v1893
      %v2211 = vunpack.c.h.b16 %v1893
      %v2212 = vunpack.c.l.b16 %v1894
      %v2213 = vunpack.c.h.b16 %v1894
      %v2214 = vunpack.c.l.b16 %v1895
      %v2215 = vunpack.c.h.b16 %v1895
      %v2216 = vunpack.c.l.b16 %v1896
      %v2217 = vunpack.c.h.b16 %v1896
      %v2218 = vunpack.c.l.b16 %v1897
      %v2219 = vunpack.c.h.b16 %v1897
      %v2220 = vunpack.c.l.b16 %v1898
      %v2221 = vunpack.c.h.b16 %v1898
      %v2222 = vunpack.c.l.b16 %v1899
      %v2223 = vunpack.c.h.b16 %v1899
      %v2224 = vunpack.c.l.b16 %v1900
      %v2225 = vunpack.c.h.b16 %v1900
      %v2226 = vunpack.c.l.b16 %v1901
      %v2227 = vunpack.c.h.b16 %v1901
      %v2228 = vunpack.c.l.b16 %v1902
      %v2229 = vunpack.c.h.b16 %v1902
      %v2230 = vunpack.c.l.b16 %v1903
      %v2231 = vunpack.c.h.b16 %v1903
      %v2232 = vunpack.c.l.b16 %v1904
      %v2233 = vunpack.c.h.b16 %v1904
      %v2234 = vunpack.c.l.b16 %v1905
      %v2235 = vunpack.c.h.b16 %v1905
      %v2236 = vunpack.c.l.b16 %v1906
      %v2237 = vunpack.c.h.b16 %v1906
      %v2238 = vunpack.c.l.b16 %v1907
      %v2239 = vunpack.c.h.b16 %v1907
      %v2240 = vunpack.c.l.b16 %v1908
      %v2241 = vunpack.c.h.b16 %v1908
      %v2242 = vunpack.c.l.b16 %v1909
      %v2243 = vunpack.c.h.b16 %v1909
      %v2244 = vunpack.c.l.b16 %v1910
      %v2245 = vunpack.c.h.b16 %v1910
      %v2246 = vunpack.c.l.b16 %v1911
      %v2247 = vunpack.c.h.b16 %v1911
      %v2248 = vunpack.c.l.b16 %v1912
      %v2249 = vunpack.c.h.b16 %v1912
      %v2250 = vunpack.c.l.b16 %v1913
      %v2251 = vunpack.c.h.b16 %v1913
      %v2252 = vunpack.c.l.b16 %v1914
      %v2253 = vunpack.c.h.b16 %v1914
      %v2254 = vunpack.c.l.b16 %v1915
      %v2255 = vunpack.c.h.b16 %v1915
      %v2256 = vunpack.c.l.b16 %v1916
      %v2257 = vunpack.c.h.b16 %v1916
      %v2258 = vunpack.c.l.b16 %v1917
      %v2259 = vunpack.c.h.b16 %v1917
      %v2260 = vunpack.c.l.b16 %v1918
      %v2261 = vunpack.c.h.b16 %v1918
      %v2262 = vunpack.c.l.b16 %v1919
      %v2263 = vunpack.c.h.b16 %v1919
      %v2264 = vunpack.c.l.b16 %v1920
      %v2265 = vunpack.c.h.b16 %v1920
      %v2266 = vunpack.c.l.b16 %v1921
      %v2267 = vunpack.c.h.b16 %v1921
      %v2268 = vunpack.c.l.b16 %v1922
      %v2269 = vunpack.c.h.b16 %v1922
      %v2270 = vunpack.c.l.b16 %v1923
      %v2271 = vunpack.c.h.b16 %v1923
      %v2272 = vunpack.c.l.b16 %v1924
      %v2273 = vunpack.c.h.b16 %v1924
      %v2274 = vunpack.c.l.b16 %v1925
      %v2275 = vunpack.c.h.b16 %v1925
      %v2276 = vunpack.c.l.b16 %v1926
      %v2277 = vunpack.c.h.b16 %v1926
      %v2278 = vunpack.c.l.b16 %v1927
      %v2279 = vunpack.c.h.b16 %v1927
      %v2280 = vunpack.c.l.b16 %v1928
      %v2281 = vunpack.c.h.b16 %v1928
      %v2282 = vunpack.c.l.b16 %v1929
      %v2283 = vunpack.c.h.b16 %v1929
      %v2284 = vunpack.c.l.b16 %v1930
      %v2285 = vunpack.c.h.b16 %v1930
      %v2286 = vunpack.c.l.b16 %v1931
      %v2287 = vunpack.c.h.b16 %v1931
      %v2288 = vunpack.c.l.b16 %v1932
      %v2289 = vunpack.c.h.b16 %v1932
      %v2290 = vunpack.c.l.b16 %v1933
      %v2291 = vunpack.c.h.b16 %v1933
      %v2292 = vunpack.c.l.b16 %v1934
      %v2293 = vunpack.c.h.b16 %v1934
      %v2294 = vunpack.c.l.b16 %v1935
      %v2295 = vunpack.c.h.b16 %v1935
      %v2296 = vunpack.c.l.b16 %v1936
      %v2297 = vunpack.c.h.b16 %v1936
      %v2298 = vunpack.c.l.b16 %v1937
      %v2299 = vunpack.c.h.b16 %v1937
      %v2300 = vunpack.c.l.b16 %v1938
      %v2301 = vunpack.c.h.b16 %v1938
      %v2302 = vunpack.c.l.b16 %v1939
      %v2303 = vunpack.c.h.b16 %v1939
      %v2304 = vpack.c.b16 %v2162, %v2160
      %v2305 = vpack.c.b16 %v2163, %v2161
      %v2306 = vpack.c.b16 %v2166, %v2164
      %v2307 = vpack.c.b16 %v2167, %v2165
      %v2308 = vpack.c.b16 %v2170, %v2168
      %v2309 = vpack.c.b16 %v2171, %v2169
      %v2310 = vpack.c.b16 %v2174, %v2172
      %v2311 = vpack.c.b16 %v2175, %v2173
      %v2312 = vpack.c.b16 %v2178, %v2176
      %v2313 = vpack.c.b16 %v2179, %v2177
      %v2314 = vpack.c.b16 %v2182, %v2180
      %v2315 = vpack.c.b16 %v2183, %v2181
      %v2316 = vpack.c.b16 %v2186, %v2184
      %v2317 = vpack.c.b16 %v2187, %v2185
      %v2318 = vpack.c.b16 %v2190, %v2188
      %v2319 = vpack.c.b16 %v2191, %v2189
      %v2320 = vpack.c.b16 %v2194, %v2192
      %v2321 = vpack.c.b16 %v2195, %v2193
      %v2322 = vpack.c.b16 %v2198, %v2196
      %v2323 = vpack.c.b16 %v2199, %v2197
      %v2324 = vpack.c.b16 %v2202, %v2200
      %v2325 = vpack.c.b16 %v2203, %v2201
      %v2326 = vpack.c.b16 %v2206, %v2204
      %v2327 = vpack.c.b16 %v2207, %v2205
      %v2328 = vpack.c.b16 %v2210, %v2208
      %v2329 = vpack.c.b16 %v2211, %v2209
      %v2330 = vpack.c.b16 %v2214, %v2212
      %v2331 = vpack.c.b16 %v2215, %v2213
      %v2332 = vpack.c.b16 %v2218, %v2216
      %v2333 = vpack.c.b16 %v2219, %v2217
      %v2334 = vpack.c.b16 %v2222, %v2220
      %v2335 = vpack.c.b16 %v2223, %v2221
      %v2336 = vpack.c.b16 %v2226, %v2224
      %v2337 = vpack.c.b16 %v2227, %v2225
      %v2338 = vpack.c.b16 %v2230, %v2228
      %v2339 = vpack.c.b16 %v2231, %v2229
      %v2340 = vpack.c.b16 %v2234, %v2232
      %v2341 = vpack.c.b16 %v2235, %v2233
      %v2342 = vpack.c.b16 %v2238, %v2236
      %v2343 = vpack.c.b16 %v2239, %v2237
      %v2344 = vpack.c.b16 %v2242, %v2240
      %v2345 = vpack.c.b16 %v2243, %v2241
      %v2346 = vpack.c.b16 %v2246, %v2244
      %v2347 = vpack.c.b16 %v2247, %v2245
      %v2348 = vpack.c.b16 %v2250, %v2248
      %v2349 = vpack.c.b16 %v2251, %v2249
      %v2350 = vpack.c.b16 %v2254, %v2252
      %v2351 = vpack.c.b16 %v2255, %v2253
      %v2352 = vpack.c.b16 %v2258, %v2256
      %v2353 = vpack.c.b16 %v2259, %v2257
      %v2354 = vpack.c.b16 %v2262, %v2260
      %v2355 = vpack.c.b16 %v2263, %v2261
      %v2356 = vpack.c.b16 %v2266, %v2264
      %v2357 = vpack.c.b16 %v2267, %v2265
      %v2358 = vpack.c.b16 %v2270, %v2268
      %v2359 = vpack.c.b16 %v2271, %v2269
      %v2360 = vpack.c.b16 %v2274, %v2272
      %v2361 = vpack.c.b16 %v2275, %v2273
      %v2362 = vpack.c.b16 %v2278, %v2276
      %v2363 = vpack.c.b16 %v2279, %v2277
      %v2364 = vpack.c.b16 %v2282, %v2280
      %v2365 = vpack.c.b16 %v2283, %v2281
      %v2366 = vpack.c.b16 %v2286, %v2284
      %v2367 = vpack.c.b16 %v2287, %v2285
      %v2368 = vpack.c.b16 %v2290, %v2288
      %v2369 = vpack.c.b16 %v2291, %v2289
      %v2370 = vpack.c.b16 %v2294, %v2292
      %v2371 = vpack.c.b16 %v2295, %v2293
      %v2372 = vpack.c.b16 %v2298, %v2296
      %v2373 = vpack.c.b16 %v2299, %v2297
      %v2374 = vpack.c.b16 %v2302, %v2300
      %v2375 = vpack.c.b16 %v2303, %v2301
      %vm2448 = vcmask 523264
      %v2450 = vsel %vm2448, %v2056, 0
      %v2453 = vsel %vm2448, %v2061, 0
      %v2456 = vsel %vm2448, %v2066, 0
      %v2459 = vsel %vm2448, %v2071, 0
      %2461 = vmatprep.subr.bf16.mxu0 %v2319
      %2462 = vmatpush1.bf16.msra.mxu0 %v2318
      %2463 = vmatprep.subr.bf16.mxu0 %v2317
      %2464 = vmatpush1.bf16.msra.mxu0 %v2316
      %2465 = vmatprep.subr.bf16.mxu0 %v2315
      %2466 = vmatpush1.bf16.msra.mxu0 %v2314
      %2467 = vmatprep.subr.bf16.mxu0 %v2313
      %2468 = vmatpush1.bf16.msra.mxu0 %v2312
      %2469 = vmatprep.subr.bf16.mxu0 %v2311
      %2470 = vmatpush1.bf16.msra.mxu0 %v2310
      %2471 = vmatprep.subr.bf16.mxu0 %v2309
      %2472 = vmatpush1.bf16.msra.mxu0 %v2308
      %2473 = vmatprep.subr.bf16.mxu0 %v2307
      %2474 = vmatpush1.bf16.msra.mxu0 %v2306
      %2475 = vmatprep.subr.bf16.mxu0 %v2305
      %2476 = vmatpush1.bf16.msra.mxu0 %v2304
      %2477 = vmatprep.subr.bf16.mxu0 %v2335
      %2478 = vmatpush2.bf16.msra.mxu0 %v2334
      %2479 = vmatprep.subr.bf16.mxu0 %v2333
      %2480 = vmatpush2.bf16.msra.mxu0 %v2332
      %2481 = vmatprep.subr.bf16.mxu0 %v2331
      %2482 = vmatpush2.bf16.msra.mxu0 %v2330
      %2483 = vmatprep.subr.bf16.mxu0 %v2329
      %2484 = vmatpush2.bf16.msra.mxu0 %v2328
      %2485 = vmatprep.subr.bf16.mxu0 %v2327
      %2486 = vmatpush2.bf16.msra.mxu0 %v2326
      %2487 = vmatprep.subr.bf16.mxu0 %v2325
      %2488 = vmatpush2.bf16.msra.mxu0 %v2324
      %2489 = vmatprep.subr.bf16.mxu0 %v2323
      %2490 = vmatpush2.bf16.msra.mxu0 %v2322
      %2491 = vmatprep.subr.bf16.mxu0 %v2321
      %2492 = vmatpush2.bf16.msra.mxu0 %v2320
      %2493 = vmatprep.mubr.bf16.mxu0 %v2053
      %2494 = vmatmul.mubr.bf16.gmra.mxu0 %v2052
      %v2495 = vpop.f32.mrf.mxu0
      %v2496 = vadd.f32 %v1951, %v2495
      %v2497 = vpop.f32.mrf.mxu0
      %v2498 = vadd.f32 %v1951, %v2497
      %v2499 = vpop.f32.mrf.mxu0
      %v2500 = vadd.f32 %v1956, %v2499
      %v2501 = vpop.f32.mrf.mxu0
      %v2502 = vadd.f32 %v1956, %v2501
      %2503 = vmatprep.mubr.bf16.mxu0 %v2058
      %2504 = vmatmul.mubr.bf16.gmra.mxu0 %v2057
      %v2505 = vpop.f32.mrf.mxu0
      %v2506 = vadd.f32 %v1961, %v2505
      %v2507 = vpop.f32.mrf.mxu0
      %v2508 = vadd.f32 %v1961, %v2507
      %v2509 = vpop.f32.mrf.mxu0
      %v2510 = vadd.f32 %v1966, %v2509
      %v2511 = vpop.f32.mrf.mxu0
      %v2512 = vadd.f32 %v1966, %v2511
      %2513 = vmatprep.mubr.bf16.mxu0 %v2063
      %2514 = vmatmul.mubr.bf16.gmra.mxu0 %v2062
      %v2515 = vpop.f32.mrf.mxu0
      %v2516 = vadd.f32 %v1971, %v2515
      %v2517 = vpop.f32.mrf.mxu0
      %v2518 = vadd.f32 %v1971, %v2517
      %v2519 = vpop.f32.mrf.mxu0
      %v2520 = vadd.f32 %v1976, %v2519
      %v2521 = vpop.f32.mrf.mxu0
      %v2522 = vadd.f32 %v1976, %v2521
      %2523 = vmatprep.mubr.bf16.mxu0 %v2068
      %2524 = vmatmul.mubr.bf16.gmra.mxu0 %v2067
      %v2525 = vpop.f32.mrf.mxu0
      %v2526 = vadd.f32 %v1981, %v2525
      %v2527 = vpop.f32.mrf.mxu0
      %v2528 = vadd.f32 %v1981, %v2527
      %v2529 = vpop.f32.mrf.mxu0
      %v2530 = vadd.f32 %v1986, %v2529
      %v2531 = vpop.f32.mrf.mxu0
      %v2532 = vadd.f32 %v1986, %v2531
      %2533 = vdwg.mxu0
      %2534 = vmatprep.subr.bf16.mxu0 %v2351
      %2535 = vmatpush1.bf16.msra.mxu0 %v2350
      %2536 = vmatprep.subr.bf16.mxu0 %v2349
      %2537 = vmatpush1.bf16.msra.mxu0 %v2348
      %2538 = vmatprep.subr.bf16.mxu0 %v2347
      %2539 = vmatpush1.bf16.msra.mxu0 %v2346
      %2540 = vmatprep.subr.bf16.mxu0 %v2345
      %2541 = vmatpush1.bf16.msra.mxu0 %v2344
      %2542 = vmatprep.subr.bf16.mxu0 %v2343
      %2543 = vmatpush1.bf16.msra.mxu0 %v2342
      %2544 = vmatprep.subr.bf16.mxu0 %v2341
      %2545 = vmatpush1.bf16.msra.mxu0 %v2340
      %2546 = vmatprep.subr.bf16.mxu0 %v2339
      %2547 = vmatpush1.bf16.msra.mxu0 %v2338
      %2548 = vmatprep.subr.bf16.mxu0 %v2337
      %2549 = vmatpush1.bf16.msra.mxu0 %v2336
      %2550 = vmatprep.subr.bf16.mxu0 %v2367
      %2551 = vmatpush2.bf16.msra.mxu0 %v2366
      %2552 = vmatprep.subr.bf16.mxu0 %v2365
      %2553 = vmatpush2.bf16.msra.mxu0 %v2364
      %2554 = vmatprep.subr.bf16.mxu0 %v2363
      %2555 = vmatpush2.bf16.msra.mxu0 %v2362
      %2556 = vmatprep.subr.bf16.mxu0 %v2361
      %2557 = vmatpush2.bf16.msra.mxu0 %v2360
      %2558 = vmatprep.subr.bf16.mxu0 %v2359
      %2559 = vmatpush2.bf16.msra.mxu0 %v2358
      %2560 = vmatprep.subr.bf16.mxu0 %v2357
      %2561 = vmatpush2.bf16.msra.mxu0 %v2356
      %2562 = vmatprep.subr.bf16.mxu0 %v2355
      %2563 = vmatpush2.bf16.msra.mxu0 %v2354
      %2564 = vmatprep.subr.bf16.mxu0 %v2353
      %2565 = vmatpush2.bf16.msra.mxu0 %v2352
      %2566 = vmatprep.mubr.bf16.mxu0 %v2055
      %2567 = vmatmul.mubr.bf16.gmra.mxu0 %v2054
      %v2568 = vpop.f32.mrf.mxu0
      %v2569 = vadd.f32 %v2496, %v2568
      %v2570 = vpop.f32.mrf.mxu0
      %v2571 = vadd.f32 %v2498, %v2570
      %v2572 = vpop.f32.mrf.mxu0
      %v2573 = vadd.f32 %v2500, %v2572
      %v2574 = vpop.f32.mrf.mxu0
      %v2575 = vadd.f32 %v2502, %v2574
      %2576 = vmatprep.mubr.bf16.mxu0 %v2060
      %2577 = vmatmul.mubr.bf16.gmra.mxu0 %v2059
      %v2578 = vpop.f32.mrf.mxu0
      %v2579 = vadd.f32 %v2506, %v2578
      %v2580 = vpop.f32.mrf.mxu0
      %v2581 = vadd.f32 %v2508, %v2580
      %v2582 = vpop.f32.mrf.mxu0
      %v2583 = vadd.f32 %v2510, %v2582
      %v2584 = vpop.f32.mrf.mxu0
      %v2585 = vadd.f32 %v2512, %v2584
      %2586 = vmatprep.mubr.bf16.mxu0 %v2065
      %2587 = vmatmul.mubr.bf16.gmra.mxu0 %v2064
      %v2588 = vpop.f32.mrf.mxu0
      %v2589 = vadd.f32 %v2516, %v2588
      %v2590 = vpop.f32.mrf.mxu0
      %v2591 = vadd.f32 %v2518, %v2590
      %v2592 = vpop.f32.mrf.mxu0
      %v2593 = vadd.f32 %v2520, %v2592
      %v2594 = vpop.f32.mrf.mxu0
      %v2595 = vadd.f32 %v2522, %v2594
      %2596 = vmatprep.mubr.bf16.mxu0 %v2070
      %2597 = vmatmul.mubr.bf16.gmra.mxu0 %v2069
      %v2598 = vpop.f32.mrf.mxu0
      %v2599 = vadd.f32 %v2526, %v2598
      %v2600 = vpop.f32.mrf.mxu0
      %v2601 = vadd.f32 %v2528, %v2600
      %v2602 = vpop.f32.mrf.mxu0
      %v2603 = vadd.f32 %v2530, %v2602
      %v2604 = vpop.f32.mrf.mxu0
      %v2605 = vadd.f32 %v2532, %v2604
      %2606 = vdwg.mxu0
      %2607 = vmatprep.subr.bf16.mxu0 0
      %2608 = vmatpush1.bf16.msra.mxu0 0
      %2609 = vmatprep.subr.bf16.mxu0 0
      %2610 = vmatpush1.bf16.msra.mxu0 0
      %2611 = vmatprep.subr.bf16.mxu0 0
      %2612 = vmatpush1.bf16.msra.mxu0 0
      %2613 = vmatprep.subr.bf16.mxu0 0
      %2614 = vmatpush1.bf16.msra.mxu0 0
      %2615 = vmatprep.subr.bf16.mxu0 %v2375
      %2616 = vmatpush1.bf16.msra.mxu0 %v2374
      %2617 = vmatprep.subr.bf16.mxu0 %v2373
      %2618 = vmatpush1.bf16.msra.mxu0 %v2372
      %2619 = vmatprep.subr.bf16.mxu0 %v2371
      %2620 = vmatpush1.bf16.msra.mxu0 %v2370
      %2621 = vmatprep.subr.bf16.mxu0 %v2369
      %2622 = vmatpush1.bf16.msra.mxu0 %v2368
      %2623 = vmatprep.subr.bf16.mxu0 0
      %2624 = vmatpush2.bf16.msra.mxu0 0
      %2625 = vmatprep.subr.bf16.mxu0 0
      %2626 = vmatpush2.bf16.msra.mxu0 0
      %2627 = vmatprep.subr.bf16.mxu0 0
      %2628 = vmatpush2.bf16.msra.mxu0 0
      %2629 = vmatprep.subr.bf16.mxu0 0
      %2630 = vmatpush2.bf16.msra.mxu0 0
      %2631 = vmatprep.subr.bf16.mxu0 0
      %2632 = vmatpush2.bf16.msra.mxu0 0
      %2633 = vmatprep.subr.bf16.mxu0 0
      %2634 = vmatpush2.bf16.msra.mxu0 0
      %2635 = vmatprep.subr.bf16.mxu0 0
      %2636 = vmatpush2.bf16.msra.mxu0 0
      %2637 = vmatprep.subr.bf16.mxu0 0
      %2638 = vmatpush2.bf16.msra.mxu0 0
      %2639 = vmatprep.mubr.bf16.mxu0 0
      %2640 = vmatmul.mubr.bf16.gmra.mxu0 %v2450
      %v2641 = vpop.f32.mrf.mxu0
      %v2642 = vadd.f32 %v2569, %v2641
      %v2643 = vpop.f32.mrf.mxu0
      %v2644 = vadd.f32 %v2571, %v2643
      %v2645 = vpop.f32.mrf.mxu0
      %v2646 = vadd.f32 %v2573, %v2645
      %v2647 = vpop.f32.mrf.mxu0
      %v2648 = vadd.f32 %v2575, %v2647
      %2649 = vmatprep.mubr.bf16.mxu0 0
      %2650 = vmatmul.mubr.bf16.gmra.mxu0 %v2453
      %v2651 = vpop.f32.mrf.mxu0
      %v2652 = vadd.f32 %v2579, %v2651
      %v2653 = vpop.f32.mrf.mxu0
      %v2654 = vadd.f32 %v2581, %v2653
      %v2655 = vpop.f32.mrf.mxu0
      %v2656 = vadd.f32 %v2583, %v2655
      %v2657 = vpop.f32.mrf.mxu0
      %v2658 = vadd.f32 %v2585, %v2657
      %2659 = vmatprep.mubr.bf16.mxu0 0
      %2660 = vmatmul.mubr.bf16.gmra.mxu0 %v2456
      %v2661 = vpop.f32.mrf.mxu0
      %v2662 = vadd.f32 %v2589, %v2661
      %v2663 = vpop.f32.mrf.mxu0
      %v2664 = vadd.f32 %v2591, %v2663
      %v2665 = vpop.f32.mrf.mxu0
      %v2666 = vadd.f32 %v2593, %v2665
      %v2667 = vpop.f32.mrf.mxu0
      %v2668 = vadd.f32 %v2595, %v2667
      %2669 = vmatprep.mubr.bf16.mxu0 0
      %2670 = vmatmul.mubr.bf16.gmra.mxu0 %v2459
      %v2671 = vpop.f32.mrf.mxu0
      %v2672 = vadd.f32 %v2599, %v2671
      %v2673 = vpop.f32.mrf.mxu0
      %v2674 = vadd.f32 %v2601, %v2673
      %v2675 = vpop.f32.mrf.mxu0
      %v2676 = vadd.f32 %v2603, %v2675
      %v2677 = vpop.f32.mrf.mxu0
      %v2678 = vadd.f32 %v2605, %v2677
      %2679 = vdwg.mxu0
      %v2680 = vmax.f32 %v2642, 0.0
      %v2681 = vmax.f32 %v2644, 0.0
      %v2682 = vmax.f32 %v2646, 0.0
      %v2683 = vmax.f32 %v2648, 0.0
      %v2684 = vmax.f32 %v2652, 0.0
      %v2685 = vmax.f32 %v2654, 0.0
      %v2686 = vmax.f32 %v2656, 0.0
      %v2687 = vmax.f32 %v2658, 0.0
      %v2688 = vmax.f32 %v2662, 0.0
      %v2689 = vmax.f32 %v2664, 0.0
      %v2690 = vmax.f32 %v2666, 0.0
      %v2691 = vmax.f32 %v2668, 0.0
      %v2692 = vmax.f32 %v2672, 0.0
      %v2693 = vmax.f32 %v2674, 0.0
      %v2694 = vmax.f32 %v2676, 0.0
      %v2695 = vmax.f32 %v2678, 0.0
      %2696 = vrot.lane.b32.xlu0 %v2680, 17
      %v2697 = vpop.permute.xlu0 %2696
      %2698 = vrot.lane.b32.xlu0 %v2682, 17
      %v2699 = vpop.permute.xlu0 %2698
      %2700 = vrot.lane.b32.xlu0 %v2684, 17
      %v2701 = vpop.permute.xlu0 %2700
      %2702 = vrot.lane.b32.xlu0 %v2686, 17
      %v2703 = vpop.permute.xlu0 %2702
      %2704 = vrot.lane.b32.xlu0 %v2688, 17
      %v2705 = vpop.permute.xlu0 %2704
      %2706 = vrot.lane.b32.xlu0 %v2690, 17
      %v2707 = vpop.permute.xlu0 %2706
      %2708 = vrot.lane.b32.xlu0 %v2692, 17
      %v2709 = vpop.permute.xlu0 %2708
      %2710 = vrot.lane.b32.xlu0 %v2694, 17
      %v2711 = vpop.permute.xlu0 %2710
      %2712 = vrot.lane.b32.xlu0 %v2681, 17
      %v2713 = vpop.permute.xlu0 %2712
      %2714 = vrot.lane.b32.xlu0 %v2683, 17
      %v2715 = vpop.permute.xlu0 %2714
      %2716 = vrot.lane.b32.xlu0 %v2685, 17
      %v2717 = vpop.permute.xlu0 %2716
      %2718 = vrot.lane.b32.xlu0 %v2687, 17
      %v2719 = vpop.permute.xlu0 %2718
      %2720 = vrot.lane.b32.xlu0 %v2689, 17
      %v2721 = vpop.permute.xlu0 %2720
      %2722 = vrot.lane.b32.xlu0 %v2691, 17
      %v2723 = vpop.permute.xlu0 %2722
      %2724 = vrot.lane.b32.xlu0 %v2693, 17
      %v2725 = vpop.permute.xlu0 %2724
      %2726 = vrot.lane.b32.xlu0 %v2695, 17
      %v2727 = vpop.permute.xlu0 %2726
      %v2728 = vsel %vm315, %v2697, %v2713
      %v2729 = vsel %vm315, %v2699, %v2715
      %v2730 = vsel %vm315, %v2701, %v2717
      %v2731 = vsel %vm315, %v2703, %v2719
      %v2732 = vsel %vm315, %v2705, %v2721
      %v2733 = vsel %vm315, %v2707, %v2723
      %v2734 = vsel %vm315, %v2709, %v2725
      %v2735 = vsel %vm315, %v2711, %v2727
      %v2736 = vsel %vm315, %v2713, %v2697
      %v2737 = vsel %vm315, %v2715, %v2699
      %v2738 = vsel %vm315, %v2717, %v2701
      %v2739 = vsel %vm315, %v2719, %v2703
      %v2740 = vsel %vm315, %v2721, %v2705
      %v2741 = vsel %vm315, %v2723, %v2707
      %v2742 = vsel %vm315, %v2725, %v2709
      %v2743 = vsel %vm315, %v2727, %v2711
      %v2744 = vld [vmem:[%s7] sm:$0x3]
      %v2746 = vlaneseq
      %v2747 = vshrl.u32 %v2746, 7
      %v2748 = vsub.s32 0, %v2747
      %v2749 = vrot.slane %v2744, %v2748
      %v2750 = vlaneseq
      %v2751 = vshrl.u32 %v2750, 7
      %v2752 = vsub.s32 1, %v2751
      %v2753 = vrot.slane %v2744, %v2752
      %v2756 = vmul.f32 %v2736, %v2749
      %v2757 = vmul.f32 %v2728, %v2753
      %v2758 = vmul.f32 %v2737, %v2749
      %v2759 = vmul.f32 %v2729, %v2753
      %v2760 = vmul.f32 %v2738, %v2749
      %v2761 = vmul.f32 %v2730, %v2753
      %v2762 = vmul.f32 %v2739, %v2749
      %v2763 = vmul.f32 %v2731, %v2753
      %v2764 = vmul.f32 %v2740, %v2749
      %v2765 = vmul.f32 %v2732, %v2753
      %v2766 = vmul.f32 %v2741, %v2749
      %v2767 = vmul.f32 %v2733, %v2753
      %v2768 = vmul.f32 %v2742, %v2749
      %v2769 = vmul.f32 %v2734, %v2753
      %v2770 = vmul.f32 %v2743, %v2749
      %v2771 = vmul.f32 %v2735, %v2753
      %v2772 = vpack.c.bf16 %v2758, %v2756
      %v2773 = vpack.c.bf16 %v2759, %v2757
      %v2774 = vpack.c.bf16 %v2762, %v2760
      %v2775 = vpack.c.bf16 %v2763, %v2761
      %v2776 = vpack.c.bf16 %v2766, %v2764
      %v2777 = vpack.c.bf16 %v2767, %v2765
      %v2778 = vpack.c.bf16 %v2770, %v2768
      %v2779 = vpack.c.bf16 %v2771, %v2769
      %v2788 = vunpack.c.l.b16 %v2772
      %v2789 = vunpack.c.l.b16 %v2773
      %v2790 = vunpack.c.h.b16 %v2772
      %v2791 = vunpack.c.h.b16 %v2773
      %v2792 = vunpack.c.l.b16 %v2774
      %v2793 = vunpack.c.l.b16 %v2775
      %v2794 = vunpack.c.h.b16 %v2774
      %v2795 = vunpack.c.h.b16 %v2775
      %v2796 = vunpack.c.l.b16 %v2776
      %v2797 = vunpack.c.l.b16 %v2777
      %v2798 = vunpack.c.h.b16 %v2776
      %v2799 = vunpack.c.h.b16 %v2777
      %v2800 = vunpack.c.l.b16 %v2778
      %v2801 = vunpack.c.l.b16 %v2779
      %v2802 = vunpack.c.h.b16 %v2778
      %v2803 = vunpack.c.h.b16 %v2779
      %v2804 = vpack.c.b16 %v2789, %v2788
      %v2805 = vpack.c.b16 %v2791, %v2790
      %v2806 = vpack.c.b16 %v2793, %v2792
      %v2807 = vpack.c.b16 %v2795, %v2794
      %v2808 = vpack.c.b16 %v2797, %v2796
      %v2809 = vpack.c.b16 %v2799, %v2798
      %v2810 = vpack.c.b16 %v2801, %v2800
      %v2811 = vpack.c.b16 %v2803, %v2802
      %2820 = vst [vmem:[#allocation3] sm:$0xff] %v2804
      %2821 = vst [vmem:[#allocation3 + $0x8] sm:$0xff] %v2805
      %2822 = vst [vmem:[#allocation3 + $0x10] sm:$0xff] %v2806
      %2823 = vst [vmem:[#allocation3 + $0x18] sm:$0xff] %v2807
      %2824 = vst [vmem:[#allocation3 + $0x20] sm:$0xff] %v2808
      %2825 = vst [vmem:[#allocation3 + $0x28] sm:$0xff] %v2809
      %2826 = vst [vmem:[#allocation3 + $0x30] sm:$0xff] %v2810
      %2827 = vst [vmem:[#allocation3 + $0x38] sm:$0xff] %v2811
      %2828 = vrot.lane.b32.xlu0 %v2680, 16
      %v2829 = vpop.permute.xlu0 %2828
      %2830 = vrot.lane.b32.xlu0 %v2682, 16
      %v2831 = vpop.permute.xlu0 %2830
      %2832 = vrot.lane.b32.xlu0 %v2684, 16
      %v2833 = vpop.permute.xlu0 %2832
      %2834 = vrot.lane.b32.xlu0 %v2686, 16
      %v2835 = vpop.permute.xlu0 %2834
      %2836 = vrot.lane.b32.xlu0 %v2688, 16
      %v2837 = vpop.permute.xlu0 %2836
      %2838 = vrot.lane.b32.xlu0 %v2690, 16
      %v2839 = vpop.permute.xlu0 %2838
      %2840 = vrot.lane.b32.xlu0 %v2692, 16
      %v2841 = vpop.permute.xlu0 %2840
      %2842 = vrot.lane.b32.xlu0 %v2694, 16
      %v2843 = vpop.permute.xlu0 %2842
      %2844 = vrot.lane.b32.xlu0 %v2681, 16
      %v2845 = vpop.permute.xlu0 %2844
      %2846 = vrot.lane.b32.xlu0 %v2683, 16
      %v2847 = vpop.permute.xlu0 %2846
      %2848 = vrot.lane.b32.xlu0 %v2685, 16
      %v2849 = vpop.permute.xlu0 %2848
      %2850 = vrot.lane.b32.xlu0 %v2687, 16
      %v2851 = vpop.permute.xlu0 %2850
      %2852 = vrot.lane.b32.xlu0 %v2689, 16
      %v2853 = vpop.permute.xlu0 %2852
      %2854 = vrot.lane.b32.xlu0 %v2691, 16
      %v2855 = vpop.permute.xlu0 %2854
      %2856 = vrot.lane.b32.xlu0 %v2693, 16
      %v2857 = vpop.permute.xlu0 %2856
      %2858 = vrot.lane.b32.xlu0 %v2695, 16
      %v2859 = vpop.permute.xlu0 %2858
      %v2860 = vsel %vm338, %v2829, %v2845
      %v2861 = vsel %vm338, %v2831, %v2847
      %v2862 = vsel %vm338, %v2833, %v2849
      %v2863 = vsel %vm338, %v2835, %v2851
      %v2864 = vsel %vm338, %v2837, %v2853
      %v2865 = vsel %vm338, %v2839, %v2855
      %v2866 = vsel %vm338, %v2841, %v2857
      %v2867 = vsel %vm338, %v2843, %v2859
      %v2868 = vsel %vm338, %v2845, %v2829
      %v2869 = vsel %vm338, %v2847, %v2831
      %v2870 = vsel %vm338, %v2849, %v2833
      %v2871 = vsel %vm338, %v2851, %v2835
      %v2872 = vsel %vm338, %v2853, %v2837
      %v2873 = vsel %vm338, %v2855, %v2839
      %v2874 = vsel %vm338, %v2857, %v2841
      %v2875 = vsel %vm338, %v2859, %v2843
      %v2876 = vld [vmem:[%s341] sm:$0x3]
      %v2878 = vlaneseq
      %v2879 = vshrl.u32 %v2878, 7
      %v2880 = vsub.s32 0, %v2879
      %v2881 = vrot.slane %v2876, %v2880
      %v2882 = vlaneseq
      %v2883 = vshrl.u32 %v2882, 7
      %v2884 = vsub.s32 1, %v2883
      %v2885 = vrot.slane %v2876, %v2884
      %v2888 = vmul.f32 %v2868, %v2881
      %v2889 = vmul.f32 %v2860, %v2885
      %v2890 = vmul.f32 %v2869, %v2881
      %v2891 = vmul.f32 %v2861, %v2885
      %v2892 = vmul.f32 %v2870, %v2881
      %v2893 = vmul.f32 %v2862, %v2885
      %v2894 = vmul.f32 %v2871, %v2881
      %v2895 = vmul.f32 %v2863, %v2885
      %v2896 = vmul.f32 %v2872, %v2881
      %v2897 = vmul.f32 %v2864, %v2885
      %v2898 = vmul.f32 %v2873, %v2881
      %v2899 = vmul.f32 %v2865, %v2885
      %v2900 = vmul.f32 %v2874, %v2881
      %v2901 = vmul.f32 %v2866, %v2885
      %v2902 = vmul.f32 %v2875, %v2881
      %v2903 = vmul.f32 %v2867, %v2885
      %v2904 = vpack.c.bf16 %v2890, %v2888
      %v2905 = vpack.c.bf16 %v2891, %v2889
      %v2906 = vpack.c.bf16 %v2894, %v2892
      %v2907 = vpack.c.bf16 %v2895, %v2893
      %v2908 = vpack.c.bf16 %v2898, %v2896
      %v2909 = vpack.c.bf16 %v2899, %v2897
      %v2910 = vpack.c.bf16 %v2902, %v2900
      %v2911 = vpack.c.bf16 %v2903, %v2901
      %v2920 = vunpack.c.l.b16 %v2904
      %v2921 = vunpack.c.l.b16 %v2905
      %v2922 = vunpack.c.h.b16 %v2904
      %v2923 = vunpack.c.h.b16 %v2905
      %v2924 = vunpack.c.l.b16 %v2906
      %v2925 = vunpack.c.l.b16 %v2907
      %v2926 = vunpack.c.h.b16 %v2906
      %v2927 = vunpack.c.h.b16 %v2907
      %v2928 = vunpack.c.l.b16 %v2908
      %v2929 = vunpack.c.l.b16 %v2909
      %v2930 = vunpack.c.h.b16 %v2908
      %v2931 = vunpack.c.h.b16 %v2909
      %v2932 = vunpack.c.l.b16 %v2910
      %v2933 = vunpack.c.l.b16 %v2911
      %v2934 = vunpack.c.h.b16 %v2910
      %v2935 = vunpack.c.h.b16 %v2911
      %v2936 = vpack.c.b16 %v2921, %v2920
      %v2937 = vpack.c.b16 %v2923, %v2922
      %v2938 = vpack.c.b16 %v2925, %v2924
      %v2939 = vpack.c.b16 %v2927, %v2926
      %v2940 = vpack.c.b16 %v2929, %v2928
      %v2941 = vpack.c.b16 %v2931, %v2930
      %v2942 = vpack.c.b16 %v2933, %v2932
      %v2943 = vpack.c.b16 %v2935, %v2934
      %2952 = vst [vmem:[#allocation3 + $0x40] sm:$0xff] %v2936
      %2953 = vst [vmem:[#allocation3 + $0x48] sm:$0xff] %v2937
      %2954 = vst [vmem:[#allocation3 + $0x50] sm:$0xff] %v2938
      %2955 = vst [vmem:[#allocation3 + $0x58] sm:$0xff] %v2939
      %2956 = vst [vmem:[#allocation3 + $0x60] sm:$0xff] %v2940
      %2957 = vst [vmem:[#allocation3 + $0x68] sm:$0xff] %v2941
      %2958 = vst [vmem:[#allocation3 + $0x70] sm:$0xff] %v2942
      %2959 = vst [vmem:[#allocation3 + $0x78] sm:$0xff] %v2943
      %2960 = vrot.lane.b32.xlu0 %v2680, 15
      %v2961 = vpop.permute.xlu0 %2960
      %2962 = vrot.lane.b32.xlu0 %v2682, 15
      %v2963 = vpop.permute.xlu0 %2962
      %2964 = vrot.lane.b32.xlu0 %v2684, 15
      %v2965 = vpop.permute.xlu0 %2964
      %2966 = vrot.lane.b32.xlu0 %v2686, 15
      %v2967 = vpop.permute.xlu0 %2966
      %2968 = vrot.lane.b32.xlu0 %v2688, 15
      %v2969 = vpop.permute.xlu0 %2968
      %2970 = vrot.lane.b32.xlu0 %v2690, 15
      %v2971 = vpop.permute.xlu0 %2970
      %2972 = vrot.lane.b32.xlu0 %v2692, 15
      %v2973 = vpop.permute.xlu0 %2972
      %2974 = vrot.lane.b32.xlu0 %v2694, 15
      %v2975 = vpop.permute.xlu0 %2974
      %2976 = vrot.lane.b32.xlu0 %v2681, 15
      %v2977 = vpop.permute.xlu0 %2976
      %2978 = vrot.lane.b32.xlu0 %v2683, 15
      %v2979 = vpop.permute.xlu0 %2978
      %2980 = vrot.lane.b32.xlu0 %v2685, 15
      %v2981 = vpop.permute.xlu0 %2980
      %2982 = vrot.lane.b32.xlu0 %v2687, 15
      %v2983 = vpop.permute.xlu0 %2982
      %2984 = vrot.lane.b32.xlu0 %v2689, 15
      %v2985 = vpop.permute.xlu0 %2984
      %2986 = vrot.lane.b32.xlu0 %v2691, 15
      %v2987 = vpop.permute.xlu0 %2986
      %2988 = vrot.lane.b32.xlu0 %v2693, 15
      %v2989 = vpop.permute.xlu0 %2988
      %2990 = vrot.lane.b32.xlu0 %v2695, 15
      %v2991 = vpop.permute.xlu0 %2990
      %v2992 = vsel %vm362, %v2961, %v2977
      %v2993 = vsel %vm362, %v2963, %v2979
      %v2994 = vsel %vm362, %v2965, %v2981
      %v2995 = vsel %vm362, %v2967, %v2983
      %v2996 = vsel %vm362, %v2969, %v2985
      %v2997 = vsel %vm362, %v2971, %v2987
      %v2998 = vsel %vm362, %v2973, %v2989
      %v2999 = vsel %vm362, %v2975, %v2991
      %v3000 = vsel %vm362, %v2977, %v2961
      %v3001 = vsel %vm362, %v2979, %v2963
      %v3002 = vsel %vm362, %v2981, %v2965
      %v3003 = vsel %vm362, %v2983, %v2967
      %v3004 = vsel %vm362, %v2985, %v2969
      %v3005 = vsel %vm362, %v2987, %v2971
      %v3006 = vsel %vm362, %v2989, %v2973
      %v3007 = vsel %vm362, %v2991, %v2975
      %v3008 = vld [vmem:[%s365] sm:$0x3]
      %v3010 = vlaneseq
      %v3011 = vshrl.u32 %v3010, 7
      %v3012 = vsub.s32 0, %v3011
      %v3013 = vrot.slane %v3008, %v3012
      %v3014 = vlaneseq
      %v3015 = vshrl.u32 %v3014, 7
      %v3016 = vsub.s32 1, %v3015
      %v3017 = vrot.slane %v3008, %v3016
      %v3020 = vmul.f32 %v3000, %v3013
      %v3021 = vmul.f32 %v2992, %v3017
      %v3022 = vmul.f32 %v3001, %v3013
      %v3023 = vmul.f32 %v2993, %v3017
      %v3024 = vmul.f32 %v3002, %v3013
      %v3025 = vmul.f32 %v2994, %v3017
      %v3026 = vmul.f32 %v3003, %v3013
      %v3027 = vmul.f32 %v2995, %v3017
      %v3028 = vmul.f32 %v3004, %v3013
      %v3029 = vmul.f32 %v2996, %v3017
      %v3030 = vmul.f32 %v3005, %v3013
      %v3031 = vmul.f32 %v2997, %v3017
      %v3032 = vmul.f32 %v3006, %v3013
      %v3033 = vmul.f32 %v2998, %v3017
      %v3034 = vmul.f32 %v3007, %v3013
      %v3035 = vmul.f32 %v2999, %v3017
      %v3036 = vpack.c.bf16 %v3022, %v3020
      %v3037 = vpack.c.bf16 %v3023, %v3021
      %v3038 = vpack.c.bf16 %v3026, %v3024
      %v3039 = vpack.c.bf16 %v3027, %v3025
      %v3040 = vpack.c.bf16 %v3030, %v3028
      %v3041 = vpack.c.bf16 %v3031, %v3029
      %v3042 = vpack.c.bf16 %v3034, %v3032
      %v3043 = vpack.c.bf16 %v3035, %v3033
      %v3052 = vunpack.c.l.b16 %v3036
      %v3053 = vunpack.c.l.b16 %v3037
      %v3054 = vunpack.c.h.b16 %v3036
      %v3055 = vunpack.c.h.b16 %v3037
      %v3056 = vunpack.c.l.b16 %v3038
      %v3057 = vunpack.c.l.b16 %v3039
      %v3058 = vunpack.c.h.b16 %v3038
      %v3059 = vunpack.c.h.b16 %v3039
      %v3060 = vunpack.c.l.b16 %v3040
      %v3061 = vunpack.c.l.b16 %v3041
      %v3062 = vunpack.c.h.b16 %v3040
      %v3063 = vunpack.c.h.b16 %v3041
      %v3064 = vunpack.c.l.b16 %v3042
      %v3065 = vunpack.c.l.b16 %v3043
      %v3066 = vunpack.c.h.b16 %v3042
      %v3067 = vunpack.c.h.b16 %v3043
      %v3068 = vpack.c.b16 %v3053, %v3052
      %v3069 = vpack.c.b16 %v3055, %v3054
      %v3070 = vpack.c.b16 %v3057, %v3056
      %v3071 = vpack.c.b16 %v3059, %v3058
      %v3072 = vpack.c.b16 %v3061, %v3060
      %v3073 = vpack.c.b16 %v3063, %v3062
      %v3074 = vpack.c.b16 %v3065, %v3064
      %v3075 = vpack.c.b16 %v3067, %v3066
      %3084 = vst [vmem:[#allocation3 + $0x80] sm:$0xff] %v3068
      %3085 = vst [vmem:[#allocation3 + $0x88] sm:$0xff] %v3069
      %3086 = vst [vmem:[#allocation3 + $0x90] sm:$0xff] %v3070
      %3087 = vst [vmem:[#allocation3 + $0x98] sm:$0xff] %v3071
      %3088 = vst [vmem:[#allocation3 + $0xa0] sm:$0xff] %v3072
      %3089 = vst [vmem:[#allocation3 + $0xa8] sm:$0xff] %v3073
      %3090 = vst [vmem:[#allocation3 + $0xb0] sm:$0xff] %v3074
      %3091 = vst [vmem:[#allocation3 + $0xb8] sm:$0xff] %v3075
      %3092 = vrot.lane.b32.xlu0 %v2680, 1
      %v3093 = vpop.permute.xlu0 %3092
      %3094 = vrot.lane.b32.xlu0 %v2682, 1
      %v3095 = vpop.permute.xlu0 %3094
      %3096 = vrot.lane.b32.xlu0 %v2684, 1
      %v3097 = vpop.permute.xlu0 %3096
      %3098 = vrot.lane.b32.xlu0 %v2686, 1
      %v3099 = vpop.permute.xlu0 %3098
      %3100 = vrot.lane.b32.xlu0 %v2688, 1
      %v3101 = vpop.permute.xlu0 %3100
      %3102 = vrot.lane.b32.xlu0 %v2690, 1
      %v3103 = vpop.permute.xlu0 %3102
      %3104 = vrot.lane.b32.xlu0 %v2692, 1
      %v3105 = vpop.permute.xlu0 %3104
      %3106 = vrot.lane.b32.xlu0 %v2694, 1
      %v3107 = vpop.permute.xlu0 %3106
      %3108 = vrot.lane.b32.xlu0 %v2681, 1
      %v3109 = vpop.permute.xlu0 %3108
      %3110 = vrot.lane.b32.xlu0 %v2683, 1
      %v3111 = vpop.permute.xlu0 %3110
      %3112 = vrot.lane.b32.xlu0 %v2685, 1
      %v3113 = vpop.permute.xlu0 %3112
      %3114 = vrot.lane.b32.xlu0 %v2687, 1
      %v3115 = vpop.permute.xlu0 %3114
      %3116 = vrot.lane.b32.xlu0 %v2689, 1
      %v3117 = vpop.permute.xlu0 %3116
      %3118 = vrot.lane.b32.xlu0 %v2691, 1
      %v3119 = vpop.permute.xlu0 %3118
      %3120 = vrot.lane.b32.xlu0 %v2693, 1
      %v3121 = vpop.permute.xlu0 %3120
      %3122 = vrot.lane.b32.xlu0 %v2695, 1
      %v3123 = vpop.permute.xlu0 %3122
      %v3124 = vsel %vm386, %v3093, %v3109
      %v3125 = vsel %vm386, %v3095, %v3111
      %v3126 = vsel %vm386, %v3097, %v3113
      %v3127 = vsel %vm386, %v3099, %v3115
      %v3128 = vsel %vm386, %v3101, %v3117
      %v3129 = vsel %vm386, %v3103, %v3119
      %v3130 = vsel %vm386, %v3105, %v3121
      %v3131 = vsel %vm386, %v3107, %v3123
      %v3132 = vsel %vm386, %v3109, %v3093
      %v3133 = vsel %vm386, %v3111, %v3095
      %v3134 = vsel %vm386, %v3113, %v3097
      %v3135 = vsel %vm386, %v3115, %v3099
      %v3136 = vsel %vm386, %v3117, %v3101
      %v3137 = vsel %vm386, %v3119, %v3103
      %v3138 = vsel %vm386, %v3121, %v3105
      %v3139 = vsel %vm386, %v3123, %v3107
      %v3140 = vld [vmem:[%s389] sm:$0x3]
      %v3142 = vlaneseq
      %v3143 = vshrl.u32 %v3142, 7
      %v3144 = vsub.s32 0, %v3143
      %v3145 = vrot.slane %v3140, %v3144
      %v3146 = vlaneseq
      %v3147 = vshrl.u32 %v3146, 7
      %v3148 = vsub.s32 1, %v3147
      %v3149 = vrot.slane %v3140, %v3148
      %v3152 = vmul.f32 %v3132, %v3145
      %v3153 = vmul.f32 %v3124, %v3149
      %v3154 = vmul.f32 %v3133, %v3145
      %v3155 = vmul.f32 %v3125, %v3149
      %v3156 = vmul.f32 %v3134, %v3145
      %v3157 = vmul.f32 %v3126, %v3149
      %v3158 = vmul.f32 %v3135, %v3145
      %v3159 = vmul.f32 %v3127, %v3149
      %v3160 = vmul.f32 %v3136, %v3145
      %v3161 = vmul.f32 %v3128, %v3149
      %v3162 = vmul.f32 %v3137, %v3145
      %v3163 = vmul.f32 %v3129, %v3149
      %v3164 = vmul.f32 %v3138, %v3145
      %v3165 = vmul.f32 %v3130, %v3149
      %v3166 = vmul.f32 %v3139, %v3145
      %v3167 = vmul.f32 %v3131, %v3149
      %v3168 = vpack.c.bf16 %v3154, %v3152
      %v3169 = vpack.c.bf16 %v3155, %v3153
      %v3170 = vpack.c.bf16 %v3158, %v3156
      %v3171 = vpack.c.bf16 %v3159, %v3157
      %v3172 = vpack.c.bf16 %v3162, %v3160
      %v3173 = vpack.c.bf16 %v3163, %v3161
      %v3174 = vpack.c.bf16 %v3166, %v3164
      %v3175 = vpack.c.bf16 %v3167, %v3165
      %v3184 = vunpack.c.l.b16 %v3168
      %v3185 = vunpack.c.l.b16 %v3169
      %v3186 = vunpack.c.h.b16 %v3168
      %v3187 = vunpack.c.h.b16 %v3169
      %v3188 = vunpack.c.l.b16 %v3170
      %v3189 = vunpack.c.l.b16 %v3171
      %v3190 = vunpack.c.h.b16 %v3170
      %v3191 = vunpack.c.h.b16 %v3171
      %v3192 = vunpack.c.l.b16 %v3172
      %v3193 = vunpack.c.l.b16 %v3173
      %v3194 = vunpack.c.h.b16 %v3172
      %v3195 = vunpack.c.h.b16 %v3173
      %v3196 = vunpack.c.l.b16 %v3174
      %v3197 = vunpack.c.l.b16 %v3175
      %v3198 = vunpack.c.h.b16 %v3174
      %v3199 = vunpack.c.h.b16 %v3175
      %v3200 = vpack.c.b16 %v3185, %v3184
      %v3201 = vpack.c.b16 %v3187, %v3186
      %v3202 = vpack.c.b16 %v3189, %v3188
      %v3203 = vpack.c.b16 %v3191, %v3190
      %v3204 = vpack.c.b16 %v3193, %v3192
      %v3205 = vpack.c.b16 %v3195, %v3194
      %v3206 = vpack.c.b16 %v3197, %v3196
      %v3207 = vpack.c.b16 %v3199, %v3198
      %3216 = vst [vmem:[#allocation3 + $0xc0] sm:$0xff] %v3200
      %3217 = vst [vmem:[#allocation3 + $0xc8] sm:$0xff] %v3201
      %3218 = vst [vmem:[#allocation3 + $0xd0] sm:$0xff] %v3202
      %3219 = vst [vmem:[#allocation3 + $0xd8] sm:$0xff] %v3203
      %3220 = vst [vmem:[#allocation3 + $0xe0] sm:$0xff] %v3204
      %3221 = vst [vmem:[#allocation3 + $0xe8] sm:$0xff] %v3205
      %3222 = vst [vmem:[#allocation3 + $0xf0] sm:$0xff] %v3206
      %3223 = vst [vmem:[#allocation3 + $0xf8] sm:$0xff] %v3207
      %v3224 = vpack.c.bf16 %v2682, %v2680
      %v3225 = vpack.c.bf16 %v2683, %v2681
      %v3226 = vpack.c.bf16 %v2686, %v2684
      %v3227 = vpack.c.bf16 %v2687, %v2685
      %v3228 = vpack.c.bf16 %v2690, %v2688
      %v3229 = vpack.c.bf16 %v2691, %v2689
      %v3230 = vpack.c.bf16 %v2694, %v2692
      %v3231 = vpack.c.bf16 %v2695, %v2693
      %v3240 = vunpack.c.l.b16 %v3224
      %v3241 = vunpack.c.l.b16 %v3225
      %v3242 = vunpack.c.h.b16 %v3224
      %v3243 = vunpack.c.h.b16 %v3225
      %v3244 = vunpack.c.l.b16 %v3226
      %v3245 = vunpack.c.l.b16 %v3227
      %v3246 = vunpack.c.h.b16 %v3226
      %v3247 = vunpack.c.h.b16 %v3227
      %v3248 = vunpack.c.l.b16 %v3228
      %v3249 = vunpack.c.l.b16 %v3229
      %v3250 = vunpack.c.h.b16 %v3228
      %v3251 = vunpack.c.h.b16 %v3229
      %v3252 = vunpack.c.l.b16 %v3230
      %v3253 = vunpack.c.l.b16 %v3231
      %v3254 = vunpack.c.h.b16 %v3230
      %v3255 = vunpack.c.h.b16 %v3231
      %v3256 = vpack.c.b16 %v3241, %v3240
      %v3257 = vpack.c.b16 %v3243, %v3242
      %v3258 = vpack.c.b16 %v3245, %v3244
      %v3259 = vpack.c.b16 %v3247, %v3246
      %v3260 = vpack.c.b16 %v3249, %v3248
      %v3261 = vpack.c.b16 %v3251, %v3250
      %v3262 = vpack.c.b16 %v3253, %v3252
      %v3263 = vpack.c.b16 %v3255, %v3254
      %3272 = vst [vmem:[#allocation3 + $0x100] sm:$0xff] %v3256
      %3273 = vst [vmem:[#allocation3 + $0x108] sm:$0xff] %v3257
      %3274 = vst [vmem:[#allocation3 + $0x110] sm:$0xff] %v3258
      %3275 = vst [vmem:[#allocation3 + $0x118] sm:$0xff] %v3259
      %3276 = vst [vmem:[#allocation3 + $0x120] sm:$0xff] %v3260
      %3277 = vst [vmem:[#allocation3 + $0x128] sm:$0xff] %v3261
      %3278 = vst [vmem:[#allocation3 + $0x130] sm:$0xff] %v3262
      %3279 = vst [vmem:[#allocation3 + $0x138] sm:$0xff] %v3263
      %3280 = vrot.lane.b32.xlu0 %v2680, 127
      %v3281 = vpop.permute.xlu0 %3280
      %3282 = vrot.lane.b32.xlu0 %v2682, 127
      %v3283 = vpop.permute.xlu0 %3282
      %3284 = vrot.lane.b32.xlu0 %v2684, 127
      %v3285 = vpop.permute.xlu0 %3284
      %3286 = vrot.lane.b32.xlu0 %v2686, 127
      %v3287 = vpop.permute.xlu0 %3286
      %3288 = vrot.lane.b32.xlu0 %v2688, 127
      %v3289 = vpop.permute.xlu0 %3288
      %3290 = vrot.lane.b32.xlu0 %v2690, 127
      %v3291 = vpop.permute.xlu0 %3290
      %3292 = vrot.lane.b32.xlu0 %v2692, 127
      %v3293 = vpop.permute.xlu0 %3292
      %3294 = vrot.lane.b32.xlu0 %v2694, 127
      %v3295 = vpop.permute.xlu0 %3294
      %3296 = vrot.lane.b32.xlu0 %v2681, 127
      %v3297 = vpop.permute.xlu0 %3296
      %3298 = vrot.lane.b32.xlu0 %v2683, 127
      %v3299 = vpop.permute.xlu0 %3298
      %3300 = vrot.lane.b32.xlu0 %v2685, 127
      %v3301 = vpop.permute.xlu0 %3300
      %3302 = vrot.lane.b32.xlu0 %v2687, 127
      %v3303 = vpop.permute.xlu0 %3302
      %3304 = vrot.lane.b32.xlu0 %v2689, 127
      %v3305 = vpop.permute.xlu0 %3304
      %3306 = vrot.lane.b32.xlu0 %v2691, 127
      %v3307 = vpop.permute.xlu0 %3306
      %3308 = vrot.lane.b32.xlu0 %v2693, 127
      %v3309 = vpop.permute.xlu0 %3308
      %3310 = vrot.lane.b32.xlu0 %v2695, 127
      %v3311 = vpop.permute.xlu0 %3310
      %v3312 = vsel %vm412, %v3281, %v3297
      %v3313 = vsel %vm412, %v3283, %v3299
      %v3314 = vsel %vm412, %v3285, %v3301
      %v3315 = vsel %vm412, %v3287, %v3303
      %v3316 = vsel %vm412, %v3289, %v3305
      %v3317 = vsel %vm412, %v3291, %v3307
      %v3318 = vsel %vm412, %v3293, %v3309
      %v3319 = vsel %vm412, %v3295, %v3311
      %v3320 = vsel %vm412, %v3297, %v3281
      %v3321 = vsel %vm412, %v3299, %v3283
      %v3322 = vsel %vm412, %v3301, %v3285
      %v3323 = vsel %vm412, %v3303, %v3287
      %v3324 = vsel %vm412, %v3305, %v3289
      %v3325 = vsel %vm412, %v3307, %v3291
      %v3326 = vsel %vm412, %v3309, %v3293
      %v3327 = vsel %vm412, %v3311, %v3295
      %v3328 = vld [vmem:[%s415] sm:$0x3]
      %v3330 = vlaneseq
      %v3331 = vshrl.u32 %v3330, 7
      %v3332 = vsub.s32 0, %v3331
      %v3333 = vrot.slane %v3328, %v3332
      %v3334 = vlaneseq
      %v3335 = vshrl.u32 %v3334, 7
      %v3336 = vsub.s32 1, %v3335
      %v3337 = vrot.slane %v3328, %v3336
      %v3340 = vmul.f32 %v3312, %v3333
      %v3341 = vmul.f32 %v3320, %v3337
      %v3342 = vmul.f32 %v3313, %v3333
      %v3343 = vmul.f32 %v3321, %v3337
      %v3344 = vmul.f32 %v3314, %v3333
      %v3345 = vmul.f32 %v3322, %v3337
      %v3346 = vmul.f32 %v3315, %v3333
      %v3347 = vmul.f32 %v3323, %v3337
      %v3348 = vmul.f32 %v3316, %v3333
      %v3349 = vmul.f32 %v3324, %v3337
      %v3350 = vmul.f32 %v3317, %v3333
      %v3351 = vmul.f32 %v3325, %v3337
      %v3352 = vmul.f32 %v3318, %v3333
      %v3353 = vmul.f32 %v3326, %v3337
      %v3354 = vmul.f32 %v3319, %v3333
      %v3355 = vmul.f32 %v3327, %v3337
      %v3356 = vpack.c.bf16 %v3342, %v3340
      %v3357 = vpack.c.bf16 %v3343, %v3341
      %v3358 = vpack.c.bf16 %v3346, %v3344
      %v3359 = vpack.c.bf16 %v3347, %v3345
      %v3360 = vpack.c.bf16 %v3350, %v3348
      %v3361 = vpack.c.bf16 %v3351, %v3349
      %v3362 = vpack.c.bf16 %v3354, %v3352
      %v3363 = vpack.c.bf16 %v3355, %v3353
      %v3372 = vunpack.c.l.b16 %v3356
      %v3373 = vunpack.c.l.b16 %v3357
      %v3374 = vunpack.c.h.b16 %v3356
      %v3375 = vunpack.c.h.b16 %v3357
      %v3376 = vunpack.c.l.b16 %v3358
      %v3377 = vunpack.c.l.b16 %v3359
      %v3378 = vunpack.c.h.b16 %v3358
      %v3379 = vunpack.c.h.b16 %v3359
      %v3380 = vunpack.c.l.b16 %v3360
      %v3381 = vunpack.c.l.b16 %v3361
      %v3382 = vunpack.c.h.b16 %v3360
      %v3383 = vunpack.c.h.b16 %v3361
      %v3384 = vunpack.c.l.b16 %v3362
      %v3385 = vunpack.c.l.b16 %v3363
      %v3386 = vunpack.c.h.b16 %v3362
      %v3387 = vunpack.c.h.b16 %v3363
      %v3388 = vpack.c.b16 %v3373, %v3372
      %v3389 = vpack.c.b16 %v3375, %v3374
      %v3390 = vpack.c.b16 %v3377, %v3376
      %v3391 = vpack.c.b16 %v3379, %v3378
      %v3392 = vpack.c.b16 %v3381, %v3380
      %v3393 = vpack.c.b16 %v3383, %v3382
      %v3394 = vpack.c.b16 %v3385, %v3384
      %v3395 = vpack.c.b16 %v3387, %v3386
      %3404 = vst [vmem:[#allocation3 + $0x140] sm:$0xff] %v3388
      %3405 = vst [vmem:[#allocation3 + $0x148] sm:$0xff] %v3389
      %3406 = vst [vmem:[#allocation3 + $0x150] sm:$0xff] %v3390
      %3407 = vst [vmem:[#allocation3 + $0x158] sm:$0xff] %v3391
      %3408 = vst [vmem:[#allocation3 + $0x160] sm:$0xff] %v3392
      %3409 = vst [vmem:[#allocation3 + $0x168] sm:$0xff] %v3393
      %3410 = vst [vmem:[#allocation3 + $0x170] sm:$0xff] %v3394
      %3411 = vst [vmem:[#allocation3 + $0x178] sm:$0xff] %v3395
      %3412 = vrot.lane.b32.xlu0 %v2680, 113
      %v3413 = vpop.permute.xlu0 %3412
      %3414 = vrot.lane.b32.xlu0 %v2682, 113
      %v3415 = vpop.permute.xlu0 %3414
      %3416 = vrot.lane.b32.xlu0 %v2684, 113
      %v3417 = vpop.permute.xlu0 %3416
      %3418 = vrot.lane.b32.xlu0 %v2686, 113
      %v3419 = vpop.permute.xlu0 %3418
      %3420 = vrot.lane.b32.xlu0 %v2688, 113
      %v3421 = vpop.permute.xlu0 %3420
      %3422 = vrot.lane.b32.xlu0 %v2690, 113
      %v3423 = vpop.permute.xlu0 %3422
      %3424 = vrot.lane.b32.xlu0 %v2692, 113
      %v3425 = vpop.permute.xlu0 %3424
      %3426 = vrot.lane.b32.xlu0 %v2694, 113
      %v3427 = vpop.permute.xlu0 %3426
      %3428 = vrot.lane.b32.xlu0 %v2681, 113
      %v3429 = vpop.permute.xlu0 %3428
      %3430 = vrot.lane.b32.xlu0 %v2683, 113
      %v3431 = vpop.permute.xlu0 %3430
      %3432 = vrot.lane.b32.xlu0 %v2685, 113
      %v3433 = vpop.permute.xlu0 %3432
      %3434 = vrot.lane.b32.xlu0 %v2687, 113
      %v3435 = vpop.permute.xlu0 %3434
      %3436 = vrot.lane.b32.xlu0 %v2689, 113
      %v3437 = vpop.permute.xlu0 %3436
      %3438 = vrot.lane.b32.xlu0 %v2691, 113
      %v3439 = vpop.permute.xlu0 %3438
      %3440 = vrot.lane.b32.xlu0 %v2693, 113
      %v3441 = vpop.permute.xlu0 %3440
      %3442 = vrot.lane.b32.xlu0 %v2695, 113
      %v3443 = vpop.permute.xlu0 %3442
      %v3444 = vsel %vm436, %v3413, %v3429
      %v3445 = vsel %vm436, %v3415, %v3431
      %v3446 = vsel %vm436, %v3417, %v3433
      %v3447 = vsel %vm436, %v3419, %v3435
      %v3448 = vsel %vm436, %v3421, %v3437
      %v3449 = vsel %vm436, %v3423, %v3439
      %v3450 = vsel %vm436, %v3425, %v3441
      %v3451 = vsel %vm436, %v3427, %v3443
      %v3452 = vsel %vm436, %v3429, %v3413
      %v3453 = vsel %vm436, %v3431, %v3415
      %v3454 = vsel %vm436, %v3433, %v3417
      %v3455 = vsel %vm436, %v3435, %v3419
      %v3456 = vsel %vm436, %v3437, %v3421
      %v3457 = vsel %vm436, %v3439, %v3423
      %v3458 = vsel %vm436, %v3441, %v3425
      %v3459 = vsel %vm436, %v3443, %v3427
      %v3460 = vld [vmem:[%s439] sm:$0x3]
      %v3462 = vlaneseq
      %v3463 = vshrl.u32 %v3462, 7
      %v3464 = vsub.s32 0, %v3463
      %v3465 = vrot.slane %v3460, %v3464
      %v3466 = vlaneseq
      %v3467 = vshrl.u32 %v3466, 7
      %v3468 = vsub.s32 1, %v3467
      %v3469 = vrot.slane %v3460, %v3468
      %v3472 = vmul.f32 %v3444, %v3465
      %v3473 = vmul.f32 %v3452, %v3469
      %v3474 = vmul.f32 %v3445, %v3465
      %v3475 = vmul.f32 %v3453, %v3469
      %v3476 = vmul.f32 %v3446, %v3465
      %v3477 = vmul.f32 %v3454, %v3469
      %v3478 = vmul.f32 %v3447, %v3465
      %v3479 = vmul.f32 %v3455, %v3469
      %v3480 = vmul.f32 %v3448, %v3465
      %v3481 = vmul.f32 %v3456, %v3469
      %v3482 = vmul.f32 %v3449, %v3465
      %v3483 = vmul.f32 %v3457, %v3469
      %v3484 = vmul.f32 %v3450, %v3465
      %v3485 = vmul.f32 %v3458, %v3469
      %v3486 = vmul.f32 %v3451, %v3465
      %v3487 = vmul.f32 %v3459, %v3469
      %v3488 = vpack.c.bf16 %v3474, %v3472
      %v3489 = vpack.c.bf16 %v3475, %v3473
      %v3490 = vpack.c.bf16 %v3478, %v3476
      %v3491 = vpack.c.bf16 %v3479, %v3477
      %v3492 = vpack.c.bf16 %v3482, %v3480
      %v3493 = vpack.c.bf16 %v3483, %v3481
      %v3494 = vpack.c.bf16 %v3486, %v3484
      %v3495 = vpack.c.bf16 %v3487, %v3485
      %v3504 = vunpack.c.l.b16 %v3488
      %v3505 = vunpack.c.l.b16 %v3489
      %v3506 = vunpack.c.h.b16 %v3488
      %v3507 = vunpack.c.h.b16 %v3489
      %v3508 = vunpack.c.l.b16 %v3490
      %v3509 = vunpack.c.l.b16 %v3491
      %v3510 = vunpack.c.h.b16 %v3490
      %v3511 = vunpack.c.h.b16 %v3491
      %v3512 = vunpack.c.l.b16 %v3492
      %v3513 = vunpack.c.l.b16 %v3493
      %v3514 = vunpack.c.h.b16 %v3492
      %v3515 = vunpack.c.h.b16 %v3493
      %v3516 = vunpack.c.l.b16 %v3494
      %v3517 = vunpack.c.l.b16 %v3495
      %v3518 = vunpack.c.h.b16 %v3494
      %v3519 = vunpack.c.h.b16 %v3495
      %v3520 = vpack.c.b16 %v3505, %v3504
      %v3521 = vpack.c.b16 %v3507, %v3506
      %v3522 = vpack.c.b16 %v3509, %v3508
      %v3523 = vpack.c.b16 %v3511, %v3510
      %v3524 = vpack.c.b16 %v3513, %v3512
      %v3525 = vpack.c.b16 %v3515, %v3514
      %v3526 = vpack.c.b16 %v3517, %v3516
      %v3527 = vpack.c.b16 %v3519, %v3518
      %3536 = vst [vmem:[#allocation3 + $0x180] sm:$0xff] %v3520
      %3537 = vst [vmem:[#allocation3 + $0x188] sm:$0xff] %v3521
      %3538 = vst [vmem:[#allocation3 + $0x190] sm:$0xff] %v3522
      %3539 = vst [vmem:[#allocation3 + $0x198] sm:$0xff] %v3523
      %3540 = vst [vmem:[#allocation3 + $0x1a0] sm:$0xff] %v3524
      %3541 = vst [vmem:[#allocation3 + $0x1a8] sm:$0xff] %v3525
      %3542 = vst [vmem:[#allocation3 + $0x1b0] sm:$0xff] %v3526
      %3543 = vst [vmem:[#allocation3 + $0x1b8] sm:$0xff] %v3527
      %3544 = vrot.lane.b32.xlu0 %v2680, 112
      %v3545 = vpop.permute.xlu0 %3544
      %3546 = vrot.lane.b32.xlu0 %v2682, 112
      %v3547 = vpop.permute.xlu0 %3546
      %3548 = vrot.lane.b32.xlu0 %v2684, 112
      %v3549 = vpop.permute.xlu0 %3548
      %3550 = vrot.lane.b32.xlu0 %v2686, 112
      %v3551 = vpop.permute.xlu0 %3550
      %3552 = vrot.lane.b32.xlu0 %v2688, 112
      %v3553 = vpop.permute.xlu0 %3552
      %3554 = vrot.lane.b32.xlu0 %v2690, 112
      %v3555 = vpop.permute.xlu0 %3554
      %3556 = vrot.lane.b32.xlu0 %v2692, 112
      %v3557 = vpop.permute.xlu0 %3556
      %3558 = vrot.lane.b32.xlu0 %v2694, 112
      %v3559 = vpop.permute.xlu0 %3558
      %3560 = vrot.lane.b32.xlu0 %v2681, 112
      %v3561 = vpop.permute.xlu0 %3560
      %3562 = vrot.lane.b32.xlu0 %v2683, 112
      %v3563 = vpop.permute.xlu0 %3562
      %3564 = vrot.lane.b32.xlu0 %v2685, 112
      %v3565 = vpop.permute.xlu0 %3564
      %3566 = vrot.lane.b32.xlu0 %v2687, 112
      %v3567 = vpop.permute.xlu0 %3566
      %3568 = vrot.lane.b32.xlu0 %v2689, 112
      %v3569 = vpop.permute.xlu0 %3568
      %3570 = vrot.lane.b32.xlu0 %v2691, 112
      %v3571 = vpop.permute.xlu0 %3570
      %3572 = vrot.lane.b32.xlu0 %v2693, 112
      %v3573 = vpop.permute.xlu0 %3572
      %3574 = vrot.lane.b32.xlu0 %v2695, 112
      %v3575 = vpop.permute.xlu0 %3574
      %v3576 = vsel %vm460, %v3545, %v3561
      %v3577 = vsel %vm460, %v3547, %v3563
      %v3578 = vsel %vm460, %v3549, %v3565
      %v3579 = vsel %vm460, %v3551, %v3567
      %v3580 = vsel %vm460, %v3553, %v3569
      %v3581 = vsel %vm460, %v3555, %v3571
      %v3582 = vsel %vm460, %v3557, %v3573
      %v3583 = vsel %vm460, %v3559, %v3575
      %v3584 = vsel %vm460, %v3561, %v3545
      %v3585 = vsel %vm460, %v3563, %v3547
      %v3586 = vsel %vm460, %v3565, %v3549
      %v3587 = vsel %vm460, %v3567, %v3551
      %v3588 = vsel %vm460, %v3569, %v3553
      %v3589 = vsel %vm460, %v3571, %v3555
      %v3590 = vsel %vm460, %v3573, %v3557
      %v3591 = vsel %vm460, %v3575, %v3559
      %v3592 = vld [vmem:[%s463] sm:$0x3]
      %v3594 = vlaneseq
      %v3595 = vshrl.u32 %v3594, 7
      %v3596 = vsub.s32 0, %v3595
      %v3597 = vrot.slane %v3592, %v3596
      %v3598 = vlaneseq
      %v3599 = vshrl.u32 %v3598, 7
      %v3600 = vsub.s32 1, %v3599
      %v3601 = vrot.slane %v3592, %v3600
      %v3604 = vmul.f32 %v3576, %v3597
      %v3605 = vmul.f32 %v3584, %v3601
      %v3606 = vmul.f32 %v3577, %v3597
      %v3607 = vmul.f32 %v3585, %v3601
      %v3608 = vmul.f32 %v3578, %v3597
      %v3609 = vmul.f32 %v3586, %v3601
      %v3610 = vmul.f32 %v3579, %v3597
      %v3611 = vmul.f32 %v3587, %v3601
      %v3612 = vmul.f32 %v3580, %v3597
      %v3613 = vmul.f32 %v3588, %v3601
      %v3614 = vmul.f32 %v3581, %v3597
      %v3615 = vmul.f32 %v3589, %v3601
      %v3616 = vmul.f32 %v3582, %v3597
      %v3617 = vmul.f32 %v3590, %v3601
      %v3618 = vmul.f32 %v3583, %v3597
      %v3619 = vmul.f32 %v3591, %v3601
      %v3620 = vpack.c.bf16 %v3606, %v3604
      %v3621 = vpack.c.bf16 %v3607, %v3605
      %v3622 = vpack.c.bf16 %v3610, %v3608
      %v3623 = vpack.c.bf16 %v3611, %v3609
      %v3624 = vpack.c.bf16 %v3614, %v3612
      %v3625 = vpack.c.bf16 %v3615, %v3613
      %v3626 = vpack.c.bf16 %v3618, %v3616
      %v3627 = vpack.c.bf16 %v3619, %v3617
      %v3636 = vunpack.c.l.b16 %v3620
      %v3637 = vunpack.c.l.b16 %v3621
      %v3638 = vunpack.c.h.b16 %v3620
      %v3639 = vunpack.c.h.b16 %v3621
      %v3640 = vunpack.c.l.b16 %v3622
      %v3641 = vunpack.c.l.b16 %v3623
      %v3642 = vunpack.c.h.b16 %v3622
      %v3643 = vunpack.c.h.b16 %v3623
      %v3644 = vunpack.c.l.b16 %v3624
      %v3645 = vunpack.c.l.b16 %v3625
      %v3646 = vunpack.c.h.b16 %v3624
      %v3647 = vunpack.c.h.b16 %v3625
      %v3648 = vunpack.c.l.b16 %v3626
      %v3649 = vunpack.c.l.b16 %v3627
      %v3650 = vunpack.c.h.b16 %v3626
      %v3651 = vunpack.c.h.b16 %v3627
      %v3652 = vpack.c.b16 %v3637, %v3636
      %v3653 = vpack.c.b16 %v3639, %v3638
      %v3654 = vpack.c.b16 %v3641, %v3640
      %v3655 = vpack.c.b16 %v3643, %v3642
      %v3656 = vpack.c.b16 %v3645, %v3644
      %v3657 = vpack.c.b16 %v3647, %v3646
      %v3658 = vpack.c.b16 %v3649, %v3648
      %v3659 = vpack.c.b16 %v3651, %v3650
      %3668 = vst [vmem:[#allocation3 + $0x1c0] sm:$0xff] %v3652
      %3669 = vst [vmem:[#allocation3 + $0x1c8] sm:$0xff] %v3653
      %3670 = vst [vmem:[#allocation3 + $0x1d0] sm:$0xff] %v3654
      %3671 = vst [vmem:[#allocation3 + $0x1d8] sm:$0xff] %v3655
      %3672 = vst [vmem:[#allocation3 + $0x1e0] sm:$0xff] %v3656
      %3673 = vst [vmem:[#allocation3 + $0x1e8] sm:$0xff] %v3657
      %3674 = vst [vmem:[#allocation3 + $0x1f0] sm:$0xff] %v3658
      %3675 = vst [vmem:[#allocation3 + $0x1f8] sm:$0xff] %v3659
      %3676 = vrot.lane.b32.xlu0 %v2680, 111
      %v3677 = vpop.permute.xlu0 %3676
      %3678 = vrot.lane.b32.xlu0 %v2682, 111
      %v3679 = vpop.permute.xlu0 %3678
      %3680 = vrot.lane.b32.xlu0 %v2684, 111
      %v3681 = vpop.permute.xlu0 %3680
      %3682 = vrot.lane.b32.xlu0 %v2686, 111
      %v3683 = vpop.permute.xlu0 %3682
      %3684 = vrot.lane.b32.xlu0 %v2688, 111
      %v3685 = vpop.permute.xlu0 %3684
      %3686 = vrot.lane.b32.xlu0 %v2690, 111
      %v3687 = vpop.permute.xlu0 %3686
      %3688 = vrot.lane.b32.xlu0 %v2692, 111
      %v3689 = vpop.permute.xlu0 %3688
      %3690 = vrot.lane.b32.xlu0 %v2694, 111
      %v3691 = vpop.permute.xlu0 %3690
      %3692 = vrot.lane.b32.xlu0 %v2681, 111
      %v3693 = vpop.permute.xlu0 %3692
      %3694 = vrot.lane.b32.xlu0 %v2683, 111
      %v3695 = vpop.permute.xlu0 %3694
      %3696 = vrot.lane.b32.xlu0 %v2685, 111
      %v3697 = vpop.permute.xlu0 %3696
      %3698 = vrot.lane.b32.xlu0 %v2687, 111
      %v3699 = vpop.permute.xlu0 %3698
      %3700 = vrot.lane.b32.xlu0 %v2689, 111
      %v3701 = vpop.permute.xlu0 %3700
      %3702 = vrot.lane.b32.xlu0 %v2691, 111
      %v3703 = vpop.permute.xlu0 %3702
      %3704 = vrot.lane.b32.xlu0 %v2693, 111
      %v3705 = vpop.permute.xlu0 %3704
      %3706 = vrot.lane.b32.xlu0 %v2695, 111
      %v3707 = vpop.permute.xlu0 %3706
      %v3708 = vsel %vm484, %v3677, %v3693
      %v3709 = vsel %vm484, %v3679, %v3695
      %v3710 = vsel %vm484, %v3681, %v3697
      %v3711 = vsel %vm484, %v3683, %v3699
      %v3712 = vsel %vm484, %v3685, %v3701
      %v3713 = vsel %vm484, %v3687, %v3703
      %v3714 = vsel %vm484, %v3689, %v3705
      %v3715 = vsel %vm484, %v3691, %v3707
      %v3716 = vsel %vm484, %v3693, %v3677
      %v3717 = vsel %vm484, %v3695, %v3679
      %v3718 = vsel %vm484, %v3697, %v3681
      %v3719 = vsel %vm484, %v3699, %v3683
      %v3720 = vsel %vm484, %v3701, %v3685
      %v3721 = vsel %vm484, %v3703, %v3687
      %v3722 = vsel %vm484, %v3705, %v3689
      %v3723 = vsel %vm484, %v3707, %v3691
      %v3724 = vld [vmem:[%s487] sm:$0x3]
      %v3726 = vlaneseq
      %v3727 = vshrl.u32 %v3726, 7
      %v3728 = vsub.s32 0, %v3727
      %v3729 = vrot.slane %v3724, %v3728
      %v3730 = vlaneseq
      %v3731 = vshrl.u32 %v3730, 7
      %v3732 = vsub.s32 1, %v3731
      %v3733 = vrot.slane %v3724, %v3732
      %v3736 = vmul.f32 %v3708, %v3729
      %v3737 = vmul.f32 %v3716, %v3733
      %v3738 = vmul.f32 %v3709, %v3729
      %v3739 = vmul.f32 %v3717, %v3733
      %v3740 = vmul.f32 %v3710, %v3729
      %v3741 = vmul.f32 %v3718, %v3733
      %v3742 = vmul.f32 %v3711, %v3729
      %v3743 = vmul.f32 %v3719, %v3733
      %v3744 = vmul.f32 %v3712, %v3729
      %v3745 = vmul.f32 %v3720, %v3733
      %v3746 = vmul.f32 %v3713, %v3729
      %v3747 = vmul.f32 %v3721, %v3733
      %v3748 = vmul.f32 %v3714, %v3729
      %v3749 = vmul.f32 %v3722, %v3733
      %v3750 = vmul.f32 %v3715, %v3729
      %v3751 = vmul.f32 %v3723, %v3733
      %v3752 = vpack.c.bf16 %v3738, %v3736
      %v3753 = vpack.c.bf16 %v3739, %v3737
      %v3754 = vpack.c.bf16 %v3742, %v3740
      %v3755 = vpack.c.bf16 %v3743, %v3741
      %v3756 = vpack.c.bf16 %v3746, %v3744
      %v3757 = vpack.c.bf16 %v3747, %v3745
      %v3758 = vpack.c.bf16 %v3750, %v3748
      %v3759 = vpack.c.bf16 %v3751, %v3749
      %v3768 = vunpack.c.l.b16 %v3752
      %v3769 = vunpack.c.l.b16 %v3753
      %v3770 = vunpack.c.h.b16 %v3752
      %v3771 = vunpack.c.h.b16 %v3753
      %v3772 = vunpack.c.l.b16 %v3754
      %v3773 = vunpack.c.l.b16 %v3755
      %v3774 = vunpack.c.h.b16 %v3754
      %v3775 = vunpack.c.h.b16 %v3755
      %v3776 = vunpack.c.l.b16 %v3756
      %v3777 = vunpack.c.l.b16 %v3757
      %v3778 = vunpack.c.h.b16 %v3756
      %v3779 = vunpack.c.h.b16 %v3757
      %v3780 = vunpack.c.l.b16 %v3758
      %v3781 = vunpack.c.l.b16 %v3759
      %v3782 = vunpack.c.h.b16 %v3758
      %v3783 = vunpack.c.h.b16 %v3759
      %v3784 = vpack.c.b16 %v3769, %v3768
      %v3785 = vpack.c.b16 %v3771, %v3770
      %v3786 = vpack.c.b16 %v3773, %v3772
      %v3787 = vpack.c.b16 %v3775, %v3774
      %v3788 = vpack.c.b16 %v3777, %v3776
      %v3789 = vpack.c.b16 %v3779, %v3778
      %v3790 = vpack.c.b16 %v3781, %v3780
      %v3791 = vpack.c.b16 %v3783, %v3782
      %3800 = vst [vmem:[#allocation3 + $0x200] sm:$0xff] %v3784
      %3801 = vst [vmem:[#allocation3 + $0x208] sm:$0xff] %v3785
      %3802 = vst [vmem:[#allocation3 + $0x210] sm:$0xff] %v3786
      %3803 = vst [vmem:[#allocation3 + $0x218] sm:$0xff] %v3787
      %3804 = vst [vmem:[#allocation3 + $0x220] sm:$0xff] %v3788
      %3805 = vst [vmem:[#allocation3 + $0x228] sm:$0xff] %v3789
      %3806 = vst [vmem:[#allocation3 + $0x230] sm:$0xff] %v3790
      %3807 = vst [vmem:[#allocation3 + $0x238] sm:$0xff] %v3791
      %v3808 = vld [vmem:[%s5] sm:$0xff]
      %v3809 = vld [vmem:[%s5 + $0x8] sm:$0x3]
      %v3810 = vld [vmem:[#allocation3] sm:$0xff]
      %v3811 = vld [vmem:[#allocation3 + $0x8] sm:$0xff]
      %v3812 = vld [vmem:[#allocation3 + $0x10] sm:$0xff]
      %v3813 = vld [vmem:[#allocation3 + $0x18] sm:$0xff]
      %v3814 = vld [vmem:[#allocation3 + $0x20] sm:$0xff]
      %v3815 = vld [vmem:[#allocation3 + $0x28] sm:$0xff]
      %v3816 = vld [vmem:[#allocation3 + $0x30] sm:$0xff]
      %v3817 = vld [vmem:[#allocation3 + $0x38] sm:$0xff]
      %v3818 = vld [vmem:[#allocation3 + $0x40] sm:$0xff]
      %v3819 = vld [vmem:[#allocation3 + $0x48] sm:$0xff]
      %v3820 = vld [vmem:[#allocation3 + $0x50] sm:$0xff]
      %v3821 = vld [vmem:[#allocation3 + $0x58] sm:$0xff]
      %v3822 = vld [vmem:[#allocation3 + $0x60] sm:$0xff]
      %v3823 = vld [vmem:[#allocation3 + $0x68] sm:$0xff]
      %v3824 = vld [vmem:[#allocation3 + $0x70] sm:$0xff]
      %v3825 = vld [vmem:[#allocation3 + $0x78] sm:$0xff]
      %v3826 = vld [vmem:[#allocation3 + $0x80] sm:$0xff]
      %v3827 = vld [vmem:[#allocation3 + $0x88] sm:$0xff]
      %v3828 = vld [vmem:[#allocation3 + $0x90] sm:$0xff]
      %v3829 = vld [vmem:[#allocation3 + $0x98] sm:$0xff]
      %v3830 = vld [vmem:[#allocation3 + $0xa0] sm:$0xff]
      %v3831 = vld [vmem:[#allocation3 + $0xa8] sm:$0xff]
      %v3832 = vld [vmem:[#allocation3 + $0xb0] sm:$0xff]
      %v3833 = vld [vmem:[#allocation3 + $0xb8] sm:$0xff]
      %v3834 = vld [vmem:[#allocation3 + $0xc0] sm:$0xff]
      %v3835 = vld [vmem:[#allocation3 + $0xc8] sm:$0xff]
      %v3836 = vld [vmem:[#allocation3 + $0xd0] sm:$0xff]
      %v3837 = vld [vmem:[#allocation3 + $0xd8] sm:$0xff]
      %v3838 = vld [vmem:[#allocation3 + $0xe0] sm:$0xff]
      %v3839 = vld [vmem:[#allocation3 + $0xe8] sm:$0xff]
      %v3840 = vld [vmem:[#allocation3 + $0xf0] sm:$0xff]
      %v3841 = vld [vmem:[#allocation3 + $0xf8] sm:$0xff]
      %v3842 = vld [vmem:[#allocation3 + $0x100] sm:$0xff]
      %v3843 = vld [vmem:[#allocation3 + $0x108] sm:$0xff]
      %v3844 = vld [vmem:[#allocation3 + $0x110] sm:$0xff]
      %v3845 = vld [vmem:[#allocation3 + $0x118] sm:$0xff]
      %v3846 = vld [vmem:[#allocation3 + $0x120] sm:$0xff]
      %v3847 = vld [vmem:[#allocation3 + $0x128] sm:$0xff]
      %v3848 = vld [vmem:[#allocation3 + $0x130] sm:$0xff]
      %v3849 = vld [vmem:[#allocation3 + $0x138] sm:$0xff]
      %v3850 = vld [vmem:[#allocation3 + $0x140] sm:$0xff]
      %v3851 = vld [vmem:[#allocation3 + $0x148] sm:$0xff]
      %v3852 = vld [vmem:[#allocation3 + $0x150] sm:$0xff]
      %v3853 = vld [vmem:[#allocation3 + $0x158] sm:$0xff]
      %v3854 = vld [vmem:[#allocation3 + $0x160] sm:$0xff]
      %v3855 = vld [vmem:[#allocation3 + $0x168] sm:$0xff]
      %v3856 = vld [vmem:[#allocation3 + $0x170] sm:$0xff]
      %v3857 = vld [vmem:[#allocation3 + $0x178] sm:$0xff]
      %v3858 = vld [vmem:[#allocation3 + $0x180] sm:$0xff]
      %v3859 = vld [vmem:[#allocation3 + $0x188] sm:$0xff]
      %v3860 = vld [vmem:[#allocation3 + $0x190] sm:$0xff]
      %v3861 = vld [vmem:[#allocation3 + $0x198] sm:$0xff]
      %v3862 = vld [vmem:[#allocation3 + $0x1a0] sm:$0xff]
      %v3863 = vld [vmem:[#allocation3 + $0x1a8] sm:$0xff]
      %v3864 = vld [vmem:[#allocation3 + $0x1b0] sm:$0xff]
      %v3865 = vld [vmem:[#allocation3 + $0x1b8] sm:$0xff]
      %v3866 = vld [vmem:[#allocation3 + $0x1c0] sm:$0xff]
      %v3867 = vld [vmem:[#allocation3 + $0x1c8] sm:$0xff]
      %v3868 = vld [vmem:[#allocation3 + $0x1d0] sm:$0xff]
      %v3869 = vld [vmem:[#allocation3 + $0x1d8] sm:$0xff]
      %v3870 = vld [vmem:[#allocation3 + $0x1e0] sm:$0xff]
      %v3871 = vld [vmem:[#allocation3 + $0x1e8] sm:$0xff]
      %v3872 = vld [vmem:[#allocation3 + $0x1f0] sm:$0xff]
      %v3873 = vld [vmem:[#allocation3 + $0x1f8] sm:$0xff]
      %v3874 = vld [vmem:[#allocation3 + $0x200] sm:$0xff]
      %v3875 = vld [vmem:[#allocation3 + $0x208] sm:$0xff]
      %v3876 = vld [vmem:[#allocation3 + $0x210] sm:$0xff]
      %v3877 = vld [vmem:[#allocation3 + $0x218] sm:$0xff]
      %v3878 = vld [vmem:[#allocation3 + $0x220] sm:$0xff]
      %v3879 = vld [vmem:[#allocation3 + $0x228] sm:$0xff]
      %v3880 = vld [vmem:[#allocation3 + $0x230] sm:$0xff]
      %v3881 = vld [vmem:[#allocation3 + $0x238] sm:$0xff]
      %v3882 = vld [vmem:[%s6] sm:$0x7]
      %3884 = vset.pattern.permute.xlu0 0
      %3885 = vperm.xlu0 %3884, %v3882
      %v3886 = vpop.permute.xlu0 %3885
      %v3890 = vcombine.high %v3808, %v3808
      %v3892 = vunpack.c.l.s4 1983009808
      %v3893 = vunpack.c.0.s8 %v3892
      %v3894 = vlaneseq
      %v3895 = vshrl.u32 %v3894, 7
      %v3896 = vsub.s32 %v3893, %v3895
      %v3897 = vrot.slane %v3808, %v3896
      %v3899 = vunpack.c.l.s4 1983009808
      %v3900 = vunpack.c.0.s8 %v3899
      %v3901 = vlaneseq
      %v3902 = vshrl.u32 %v3901, 7
      %v3903 = vsub.s32 %v3900, %v3902
      %v3904 = vrot.slane %v3890, %v3903
      %v3905 = vcombine.high %v3897, %v3897
      %v3906 = vcombine.high %v3904, %v3904
      %v3908 = vunpack.c.l.s4 1983009808
      %v3909 = vunpack.c.0.s8 %v3908
      %v3910 = vlaneseq
      %v3911 = vshrl.u32 %v3910, 7
      %v3912 = vsub.s32 %v3909, %v3911
      %v3913 = vrot.slane %v3809, %v3912
      %v3990 = vunpack.c.l.b16 %v3810
      %v3991 = vunpack.c.h.b16 %v3810
      %v3992 = vunpack.c.l.b16 %v3811
      %v3993 = vunpack.c.h.b16 %v3811
      %v3994 = vunpack.c.l.b16 %v3812
      %v3995 = vunpack.c.h.b16 %v3812
      %v3996 = vunpack.c.l.b16 %v3813
      %v3997 = vunpack.c.h.b16 %v3813
      %v3998 = vunpack.c.l.b16 %v3814
      %v3999 = vunpack.c.h.b16 %v3814
      %v4000 = vunpack.c.l.b16 %v3815
      %v4001 = vunpack.c.h.b16 %v3815
      %v4002 = vunpack.c.l.b16 %v3816
      %v4003 = vunpack.c.h.b16 %v3816
      %v4004 = vunpack.c.l.b16 %v3817
      %v4005 = vunpack.c.h.b16 %v3817
      %v4006 = vunpack.c.l.b16 %v3818
      %v4007 = vunpack.c.h.b16 %v3818
      %v4008 = vunpack.c.l.b16 %v3819
      %v4009 = vunpack.c.h.b16 %v3819
      %v4010 = vunpack.c.l.b16 %v3820
      %v4011 = vunpack.c.h.b16 %v3820
      %v4012 = vunpack.c.l.b16 %v3821
      %v4013 = vunpack.c.h.b16 %v3821
      %v4014 = vunpack.c.l.b16 %v3822
      %v4015 = vunpack.c.h.b16 %v3822
      %v4016 = vunpack.c.l.b16 %v3823
      %v4017 = vunpack.c.h.b16 %v3823
      %v4018 = vunpack.c.l.b16 %v3824
      %v4019 = vunpack.c.h.b16 %v3824
      %v4020 = vunpack.c.l.b16 %v3825
      %v4021 = vunpack.c.h.b16 %v3825
      %v4022 = vunpack.c.l.b16 %v3826
      %v4023 = vunpack.c.h.b16 %v3826
      %v4024 = vunpack.c.l.b16 %v3827
      %v4025 = vunpack.c.h.b16 %v3827
      %v4026 = vunpack.c.l.b16 %v3828
      %v4027 = vunpack.c.h.b16 %v3828
      %v4028 = vunpack.c.l.b16 %v3829
      %v4029 = vunpack.c.h.b16 %v3829
      %v4030 = vunpack.c.l.b16 %v3830
      %v4031 = vunpack.c.h.b16 %v3830
      %v4032 = vunpack.c.l.b16 %v3831
      %v4033 = vunpack.c.h.b16 %v3831
      %v4034 = vunpack.c.l.b16 %v3832
      %v4035 = vunpack.c.h.b16 %v3832
      %v4036 = vunpack.c.l.b16 %v3833
      %v4037 = vunpack.c.h.b16 %v3833
      %v4038 = vunpack.c.l.b16 %v3834
      %v4039 = vunpack.c.h.b16 %v3834
      %v4040 = vunpack.c.l.b16 %v3835
      %v4041 = vunpack.c.h.b16 %v3835
      %v4042 = vunpack.c.l.b16 %v3836
      %v4043 = vunpack.c.h.b16 %v3836
      %v4044 = vunpack.c.l.b16 %v3837
      %v4045 = vunpack.c.h.b16 %v3837
      %v4046 = vunpack.c.l.b16 %v3838
      %v4047 = vunpack.c.h.b16 %v3838
      %v4048 = vunpack.c.l.b16 %v3839
      %v4049 = vunpack.c.h.b16 %v3839
      %v4050 = vunpack.c.l.b16 %v3840
      %v4051 = vunpack.c.h.b16 %v3840
      %v4052 = vunpack.c.l.b16 %v3841
      %v4053 = vunpack.c.h.b16 %v3841
      %v4054 = vunpack.c.l.b16 %v3842
      %v4055 = vunpack.c.h.b16 %v3842
      %v4056 = vunpack.c.l.b16 %v3843
      %v4057 = vunpack.c.h.b16 %v3843
      %v4058 = vunpack.c.l.b16 %v3844
      %v4059 = vunpack.c.h.b16 %v3844
      %v4060 = vunpack.c.l.b16 %v3845
      %v4061 = vunpack.c.h.b16 %v3845
      %v4062 = vunpack.c.l.b16 %v3846
      %v4063 = vunpack.c.h.b16 %v3846
      %v4064 = vunpack.c.l.b16 %v3847
      %v4065 = vunpack.c.h.b16 %v3847
      %v4066 = vunpack.c.l.b16 %v3848
      %v4067 = vunpack.c.h.b16 %v3848
      %v4068 = vunpack.c.l.b16 %v3849
      %v4069 = vunpack.c.h.b16 %v3849
      %v4070 = vunpack.c.l.b16 %v3850
      %v4071 = vunpack.c.h.b16 %v3850
      %v4072 = vunpack.c.l.b16 %v3851
      %v4073 = vunpack.c.h.b16 %v3851
      %v4074 = vunpack.c.l.b16 %v3852
      %v4075 = vunpack.c.h.b16 %v3852
      %v4076 = vunpack.c.l.b16 %v3853
      %v4077 = vunpack.c.h.b16 %v3853
      %v4078 = vunpack.c.l.b16 %v3854
      %v4079 = vunpack.c.h.b16 %v3854
      %v4080 = vunpack.c.l.b16 %v3855
      %v4081 = vunpack.c.h.b16 %v3855
      %v4082 = vunpack.c.l.b16 %v3856
      %v4083 = vunpack.c.h.b16 %v3856
      %v4084 = vunpack.c.l.b16 %v3857
      %v4085 = vunpack.c.h.b16 %v3857
      %v4086 = vunpack.c.l.b16 %v3858
      %v4087 = vunpack.c.h.b16 %v3858
      %v4088 = vunpack.c.l.b16 %v3859
      %v4089 = vunpack.c.h.b16 %v3859
      %v4090 = vunpack.c.l.b16 %v3860
      %v4091 = vunpack.c.h.b16 %v3860
      %v4092 = vunpack.c.l.b16 %v3861
      %v4093 = vunpack.c.h.b16 %v3861
      %v4094 = vunpack.c.l.b16 %v3862
      %v4095 = vunpack.c.h.b16 %v3862
      %v4096 = vunpack.c.l.b16 %v3863
      %v4097 = vunpack.c.h.b16 %v3863
      %v4098 = vunpack.c.l.b16 %v3864
      %v4099 = vunpack.c.h.b16 %v3864
      %v4100 = vunpack.c.l.b16 %v3865
      %v4101 = vunpack.c.h.b16 %v3865
      %v4102 = vunpack.c.l.b16 %v3866
      %v4103 = vunpack.c.h.b16 %v3866
      %v4104 = vunpack.c.l.b16 %v3867
      %v4105 = vunpack.c.h.b16 %v3867
      %v4106 = vunpack.c.l.b16 %v3868
      %v4107 = vunpack.c.h.b16 %v3868
      %v4108 = vunpack.c.l.b16 %v3869
      %v4109 = vunpack.c.h.b16 %v3869
      %v4110 = vunpack.c.l.b16 %v3870
      %v4111 = vunpack.c.h.b16 %v3870
      %v4112 = vunpack.c.l.b16 %v3871
      %v4113 = vunpack.c.h.b16 %v3871
      %v4114 = vunpack.c.l.b16 %v3872
      %v4115 = vunpack.c.h.b16 %v3872
      %v4116 = vunpack.c.l.b16 %v3873
      %v4117 = vunpack.c.h.b16 %v3873
      %v4118 = vunpack.c.l.b16 %v3874
      %v4119 = vunpack.c.h.b16 %v3874
      %v4120 = vunpack.c.l.b16 %v3875
      %v4121 = vunpack.c.h.b16 %v3875
      %v4122 = vunpack.c.l.b16 %v3876
      %v4123 = vunpack.c.h.b16 %v3876
      %v4124 = vunpack.c.l.b16 %v3877
      %v4125 = vunpack.c.h.b16 %v3877
      %v4126 = vunpack.c.l.b16 %v3878
      %v4127 = vunpack.c.h.b16 %v3878
      %v4128 = vunpack.c.l.b16 %v3879
      %v4129 = vunpack.c.h.b16 %v3879
      %v4130 = vunpack.c.l.b16 %v3880
      %v4131 = vunpack.c.h.b16 %v3880
      %v4132 = vunpack.c.l.b16 %v3881
      %v4133 = vunpack.c.h.b16 %v3881
      %v4134 = vpack.c.b16 %v3992, %v3990
      %v4135 = vpack.c.b16 %v3993, %v3991
      %v4136 = vpack.c.b16 %v3996, %v3994
      %v4137 = vpack.c.b16 %v3997, %v3995
      %v4138 = vpack.c.b16 %v4000, %v3998
      %v4139 = vpack.c.b16 %v4001, %v3999
      %v4140 = vpack.c.b16 %v4004, %v4002
      %v4141 = vpack.c.b16 %v4005, %v4003
      %v4142 = vpack.c.b16 %v4008, %v4006
      %v4143 = vpack.c.b16 %v4009, %v4007
      %v4144 = vpack.c.b16 %v4012, %v4010
      %v4145 = vpack.c.b16 %v4013, %v4011
      %v4146 = vpack.c.b16 %v4016, %v4014
      %v4147 = vpack.c.b16 %v4017, %v4015
      %v4148 = vpack.c.b16 %v4020, %v4018
      %v4149 = vpack.c.b16 %v4021, %v4019
      %v4150 = vpack.c.b16 %v4024, %v4022
      %v4151 = vpack.c.b16 %v4025, %v4023
      %v4152 = vpack.c.b16 %v4028, %v4026
      %v4153 = vpack.c.b16 %v4029, %v4027
      %v4154 = vpack.c.b16 %v4032, %v4030
      %v4155 = vpack.c.b16 %v4033, %v4031
      %v4156 = vpack.c.b16 %v4036, %v4034
      %v4157 = vpack.c.b16 %v4037, %v4035
      %v4158 = vpack.c.b16 %v4040, %v4038
      %v4159 = vpack.c.b16 %v4041, %v4039
      %v4160 = vpack.c.b16 %v4044, %v4042
      %v4161 = vpack.c.b16 %v4045, %v4043
      %v4162 = vpack.c.b16 %v4048, %v4046
      %v4163 = vpack.c.b16 %v4049, %v4047
      %v4164 = vpack.c.b16 %v4052, %v4050
      %v4165 = vpack.c.b16 %v4053, %v4051
      %v4166 = vpack.c.b16 %v4056, %v4054
      %v4167 = vpack.c.b16 %v4057, %v4055
      %v4168 = vpack.c.b16 %v4060, %v4058
      %v4169 = vpack.c.b16 %v4061, %v4059
      %v4170 = vpack.c.b16 %v4064, %v4062
      %v4171 = vpack.c.b16 %v4065, %v4063
      %v4172 = vpack.c.b16 %v4068, %v4066
      %v4173 = vpack.c.b16 %v4069, %v4067
      %v4174 = vpack.c.b16 %v4072, %v4070
      %v4175 = vpack.c.b16 %v4073, %v4071
      %v4176 = vpack.c.b16 %v4076, %v4074
      %v4177 = vpack.c.b16 %v4077, %v4075
      %v4178 = vpack.c.b16 %v4080, %v4078
      %v4179 = vpack.c.b16 %v4081, %v4079
      %v4180 = vpack.c.b16 %v4084, %v4082
      %v4181 = vpack.c.b16 %v4085, %v4083
      %v4182 = vpack.c.b16 %v4088, %v4086
      %v4183 = vpack.c.b16 %v4089, %v4087
      %v4184 = vpack.c.b16 %v4092, %v4090
      %v4185 = vpack.c.b16 %v4093, %v4091
      %v4186 = vpack.c.b16 %v4096, %v4094
      %v4187 = vpack.c.b16 %v4097, %v4095
      %v4188 = vpack.c.b16 %v4100, %v4098
      %v4189 = vpack.c.b16 %v4101, %v4099
      %v4190 = vpack.c.b16 %v4104, %v4102
      %v4191 = vpack.c.b16 %v4105, %v4103
      %v4192 = vpack.c.b16 %v4108, %v4106
      %v4193 = vpack.c.b16 %v4109, %v4107
      %v4194 = vpack.c.b16 %v4112, %v4110
      %v4195 = vpack.c.b16 %v4113, %v4111
      %v4196 = vpack.c.b16 %v4116, %v4114
      %v4197 = vpack.c.b16 %v4117, %v4115
      %v4198 = vpack.c.b16 %v4120, %v4118
      %v4199 = vpack.c.b16 %v4121, %v4119
      %v4200 = vpack.c.b16 %v4124, %v4122
      %v4201 = vpack.c.b16 %v4125, %v4123
      %v4202 = vpack.c.b16 %v4128, %v4126
      %v4203 = vpack.c.b16 %v4129, %v4127
      %v4204 = vpack.c.b16 %v4132, %v4130
      %v4205 = vpack.c.b16 %v4133, %v4131
      %v4279 = vsel %vm2448, %v3913, 0
      %4281 = vmatprep.subr.bf16.mxu0 %v4149
      %4282 = vmatpush1.bf16.msra.mxu0 %v4148
      %4283 = vmatprep.subr.bf16.mxu0 %v4147
      %4284 = vmatpush1.bf16.msra.mxu0 %v4146
      %4285 = vmatprep.subr.bf16.mxu0 %v4145
      %4286 = vmatpush1.bf16.msra.mxu0 %v4144
      %4287 = vmatprep.subr.bf16.mxu0 %v4143
      %4288 = vmatpush1.bf16.msra.mxu0 %v4142
      %4289 = vmatprep.subr.bf16.mxu0 %v4141
      %4290 = vmatpush1.bf16.msra.mxu0 %v4140
      %4291 = vmatprep.subr.bf16.mxu0 %v4139
      %4292 = vmatpush1.bf16.msra.mxu0 %v4138
      %4293 = vmatprep.subr.bf16.mxu0 %v4137
      %4294 = vmatpush1.bf16.msra.mxu0 %v4136
      %4295 = vmatprep.subr.bf16.mxu0 %v4135
      %4296 = vmatpush1.bf16.msra.mxu0 %v4134
      %4297 = vmatprep.subr.bf16.mxu0 %v4165
      %4298 = vmatpush2.bf16.msra.mxu0 %v4164
      %4299 = vmatprep.subr.bf16.mxu0 %v4163
      %4300 = vmatpush2.bf16.msra.mxu0 %v4162
      %4301 = vmatprep.subr.bf16.mxu0 %v4161
      %4302 = vmatpush2.bf16.msra.mxu0 %v4160
      %4303 = vmatprep.subr.bf16.mxu0 %v4159
      %4304 = vmatpush2.bf16.msra.mxu0 %v4158
      %4305 = vmatprep.subr.bf16.mxu0 %v4157
      %4306 = vmatpush2.bf16.msra.mxu0 %v4156
      %4307 = vmatprep.subr.bf16.mxu0 %v4155
      %4308 = vmatpush2.bf16.msra.mxu0 %v4154
      %4309 = vmatprep.subr.bf16.mxu0 %v4153
      %4310 = vmatpush2.bf16.msra.mxu0 %v4152
      %4311 = vmatprep.subr.bf16.mxu0 %v4151
      %4312 = vmatpush2.bf16.msra.mxu0 %v4150
      %4313 = vmatprep.mubr.bf16.mxu0 %v3905
      %4314 = vmatmul.mubr.bf16.gmra.mxu0 %v3897
      %v4315 = vpop.f32.mrf.mxu0
      %v4316 = vadd.f32 %v3886, %v4315
      %v4317 = vpop.f32.mrf.mxu0
      %v4318 = vadd.f32 %v3886, %v4317
      %v4319 = vpop.f32.mrf.mxu0
      %v4320 = vpop.f32.mrf.mxu0
      %4321 = vdwg.mxu0
      %4322 = vmatprep.subr.bf16.mxu0 %v4181
      %4323 = vmatpush1.bf16.msra.mxu0 %v4180
      %4324 = vmatprep.subr.bf16.mxu0 %v4179
      %4325 = vmatpush1.bf16.msra.mxu0 %v4178
      %4326 = vmatprep.subr.bf16.mxu0 %v4177
      %4327 = vmatpush1.bf16.msra.mxu0 %v4176
      %4328 = vmatprep.subr.bf16.mxu0 %v4175
      %4329 = vmatpush1.bf16.msra.mxu0 %v4174
      %4330 = vmatprep.subr.bf16.mxu0 %v4173
      %4331 = vmatpush1.bf16.msra.mxu0 %v4172
      %4332 = vmatprep.subr.bf16.mxu0 %v4171
      %4333 = vmatpush1.bf16.msra.mxu0 %v4170
      %4334 = vmatprep.subr.bf16.mxu0 %v4169
      %4335 = vmatpush1.bf16.msra.mxu0 %v4168
      %4336 = vmatprep.subr.bf16.mxu0 %v4167
      %4337 = vmatpush1.bf16.msra.mxu0 %v4166
      %4338 = vmatprep.subr.bf16.mxu0 %v4197
      %4339 = vmatpush2.bf16.msra.mxu0 %v4196
      %4340 = vmatprep.subr.bf16.mxu0 %v4195
      %4341 = vmatpush2.bf16.msra.mxu0 %v4194
      %4342 = vmatprep.subr.bf16.mxu0 %v4193
      %4343 = vmatpush2.bf16.msra.mxu0 %v4192
      %4344 = vmatprep.subr.bf16.mxu0 %v4191
      %4345 = vmatpush2.bf16.msra.mxu0 %v4190
      %4346 = vmatprep.subr.bf16.mxu0 %v4189
      %4347 = vmatpush2.bf16.msra.mxu0 %v4188
      %4348 = vmatprep.subr.bf16.mxu0 %v4187
      %4349 = vmatpush2.bf16.msra.mxu0 %v4186
      %4350 = vmatprep.subr.bf16.mxu0 %v4185
      %4351 = vmatpush2.bf16.msra.mxu0 %v4184
      %4352 = vmatprep.subr.bf16.mxu0 %v4183
      %4353 = vmatpush2.bf16.msra.mxu0 %v4182
      %4354 = vmatprep.mubr.bf16.mxu0 %v3906
      %4355 = vmatmul.mubr.bf16.gmra.mxu0 %v3904
      %v4356 = vpop.f32.mrf.mxu0
      %v4357 = vadd.f32 %v4316, %v4356
      %v4358 = vpop.f32.mrf.mxu0
      %v4359 = vadd.f32 %v4318, %v4358
      %v4360 = vpop.f32.mrf.mxu0
      %v4361 = vpop.f32.mrf.mxu0
      %4362 = vdwg.mxu0
      %4363 = vmatprep.subr.bf16.mxu0 0
      %4364 = vmatpush1.bf16.msra.mxu0 0
      %4365 = vmatprep.subr.bf16.mxu0 0
      %4366 = vmatpush1.bf16.msra.mxu0 0
      %4367 = vmatprep.subr.bf16.mxu0 0
      %4368 = vmatpush1.bf16.msra.mxu0 0
      %4369 = vmatprep.subr.bf16.mxu0 0
      %4370 = vmatpush1.bf16.msra.mxu0 0
      %4371 = vmatprep.subr.bf16.mxu0 %v4205
      %4372 = vmatpush1.bf16.msra.mxu0 %v4204
      %4373 = vmatprep.subr.bf16.mxu0 %v4203
      %4374 = vmatpush1.bf16.msra.mxu0 %v4202
      %4375 = vmatprep.subr.bf16.mxu0 %v4201
      %4376 = vmatpush1.bf16.msra.mxu0 %v4200
      %4377 = vmatprep.subr.bf16.mxu0 %v4199
      %4378 = vmatpush1.bf16.msra.mxu0 %v4198
      %4379 = vmatprep.subr.bf16.mxu0 0
      %4380 = vmatpush2.bf16.msra.mxu0 0
      %4381 = vmatprep.subr.bf16.mxu0 0
      %4382 = vmatpush2.bf16.msra.mxu0 0
      %4383 = vmatprep.subr.bf16.mxu0 0
      %4384 = vmatpush2.bf16.msra.mxu0 0
      %4385 = vmatprep.subr.bf16.mxu0 0
      %4386 = vmatpush2.bf16.msra.mxu0 0
      %4387 = vmatprep.subr.bf16.mxu0 0
      %4388 = vmatpush2.bf16.msra.mxu0 0
      %4389 = vmatprep.subr.bf16.mxu0 0
      %4390 = vmatpush2.bf16.msra.mxu0 0
      %4391 = vmatprep.subr.bf16.mxu0 0
      %4392 = vmatpush2.bf16.msra.mxu0 0
      %4393 = vmatprep.subr.bf16.mxu0 0
      %4394 = vmatpush2.bf16.msra.mxu0 0
      %4395 = vmatprep.mubr.bf16.mxu0 0
      %4396 = vmatmul.mubr.bf16.gmra.mxu0 %v4279
      %v4397 = vpop.f32.mrf.mxu0
      %v4398 = vadd.f32 %v4357, %v4397
      %v4399 = vpop.f32.mrf.mxu0
      %v4400 = vadd.f32 %v4359, %v4399
      %v4401 = vpop.f32.mrf.mxu0
      %v4402 = vpop.f32.mrf.mxu0
      %4403 = vdwg.mxu0
      %v4406 = vcombine.low %v4398, %v4400
      %4408 = vst [vmem:[%s305] sm:$0x77] %v4406
      %p4409 = scmp.lt.s32.totalorder %s19, 1
      %s4410 = scalar_select %p4409, %s19, 1
      %s4411 = smul.addr %s4410, 2
      %s4412 = smul.addr %s4411, 4
      %s4413 = scalar_lea.vmem %s8, %s4412
      // Predicated region
      $region53: #{simple3to3cnn_forward.1} parent=51 // pred_check
        %p4414 = pneg %p210
      $region54: #{simple3to3cnn_forward.1} parent=51 // pred_check_branch
        %4416 = sbr.rel (%p4414) target = $region56
      $region55: #{simple3to3cnn_forward.1} parent=51 // pred_region
        _
      $region56: #{simple3to3cnn_forward.1} parent=51 // pred_fallthru
        _
    $region52: #{simple3to3cnn_forward.1} parent=5 // pred_fallthru
      _
    %p4417 = scmp.le.s32.totalorder 2, %s14
    // Predicated region
    $region57: #{simple3to3cnn_forward.1} parent=5 // pred_check
      %p4418 = pneg %p4417
    $region58: #{simple3to3cnn_forward.1} parent=5 // pred_check_branch
      %4420 = sbr.rel (%p4418) target = $region60
    $region59: #{simple3to3cnn_forward.1} parent=5 // pred_region
      %s4421 = ssub.s32 %s14, 2
      // Predicated region
      $region61: #{simple3to3cnn_forward.1} parent=59 // pred_check
        %p4422 = pneg %p216
      $region62: #{simple3to3cnn_forward.1} parent=59 // pred_check_branch
        %4424 = sbr.rel (%p4422) target = $region64
      $region63: #{simple3to3cnn_forward.1} parent=59 // pred_region
        %p4425 = scmp.lt.s32.totalorder %s20, 1
        %s4426 = scalar_select %p4425, %s20, 1
        %s4427 = smul.addr %s4426, 2
        %s4428 = smul.addr %s4427, 4
        %s4429 = scalar_lea.vmem %s8, %s4428
      $region64: #{simple3to3cnn_forward.1} parent=59 // pred_fallthru
        _
    $region60: #{simple3to3cnn_forward.1} parent=5 // pred_fallthru
      _
  $region6: #{simple3to3cnn_forward.1} parent=0 // loop_footer
    %s18 = sadd.s32 1, %s14
  $region7: #{simple3to3cnn_forward.1} parent=0 // loop_footer_branch
    %13 = sbr.rel target = $region3
  $region8: #{simple3to3cnn_forward.1} parent=0 // loop_exit
    _

</llo_original>
